<compile_context>
chip_gen: v7x
topology: tpu7x:2x2x1
jax: 0.10.0
libtpu: 0.0.40
codegen_flags: <defaults>
</compile_context>

<pallas_src>
import numpy as np
import jax
import jax.numpy as jnp
from jax.experimental import pallas as pl
from jax.experimental.pallas import tpu as pltpu

A_SCALE = 1.7159


# ----------------------------------------------------------------------------
# Fused LeNet-5 kernel: one grid step == one image, everything VMEM-resident.
# ----------------------------------------------------------------------------
def _lenet5_kernel(x_ref, w1m_ref, b1_ref, sw1_ref, sh1_ref,
                   w3m_ref, b3_ref, sw3_ref, sh3_ref,
                   w5m_ref, b5_ref, w6_ref, b6_ref, w7_ref, b7_ref,
                   o_ref):
    f32 = jnp.float32

    def mm(a, w):  # bf16 MXU matmul, f32 accumulation
        return jnp.dot(a.astype(jnp.bfloat16), w, preferred_element_type=f32)

    def sel(a, s):  # exact f32 matmul against a 0/1 selection matrix
        return jnp.dot(a, s, preferred_element_type=f32)

    def sigmoid(v):  # exp + reciprocal both land on the EUP slot
        return pl.reciprocal(1.0 + jnp.exp(-v), approx=True)

    x = x_ref[0]                                                         # (32, 32) f32

    # ---- c1: Conv2d(1, 6, 5) -> g1[h, co*32 + wo], valid h, wo in [0, 28) ----
    g1 = b1_ref[...]                                                     # (1, 192)
    for di in range(5):
        g1 = g1 + mm(x[di:di + 28, :], w1m_ref[di])                      # (28, 192)

    # ---- s2: MaxPool2d(2, 2) + Sigmoid via even/odd selection matmuls ----
    a1 = jnp.maximum(sel(g1, sw1_ref[0]), sel(g1, sw1_ref[1]))           # (28, 96)
    f2 = sigmoid(jnp.maximum(sel(sh1_ref[0], a1), sel(sh1_ref[1], a1)))  # (16, 96)

    # ---- c3: 16 sparsely-connected convs folded into dense Conv2d(6, 16, 5) ----
    g3 = b3_ref[...]                                                     # (1, 256)
    for di in range(5):
        g3 = g3 + mm(f2[di:di + 10, :], w3m_ref[di])                     # (10, 256)

    # ---- s4: MaxPool2d(2, 2) + Sigmoid ----
    a3 = jnp.maximum(sel(g3, sw3_ref[0]), sel(g3, sw3_ref[1]))           # (10, 128)
    f4 = sigmoid(jnp.maximum(sel(sh3_ref[0], a3), sel(sh3_ref[1], a3)))  # (8, 128)

    # ---- c5: Conv2d(16, 120, 5) on a 5x5 map == dense 400 -> 120 (pad 128) ----
    f5 = b5_ref[...]                                                     # (1, 128)
    for di in range(5):
        f5 = f5 + mm(f4[di:di + 1, :], w5m_ref[di])                      # (1, 128)

    # ---- fc6: Linear(120, 84) + Tanh, scaled by A ----
    f6 = jnp.tanh(mm(f5, w6_ref[...]) + b6_ref[...]) * A_SCALE           # (1, 128)

    # ---- fc7: Linear(84, 10) + Softmax (padded logits carry a -1e30 bias) ----
    z = mm(f6, w7_ref[...]) + b7_ref[...]                                # (1, 128)
    z = z - jnp.max(z, axis=-1, keepdims=True)
    e = jnp.exp(z)
    probs = e / jnp.sum(e, axis=-1, keepdims=True)   # exact normalisation
    o_ref[0] = probs.astype(o_ref.dtype)


# ----------------------------------------------------------------------------
# Wrapper: one launch, grid over the batch, lane-dense (B, 128) output.
# ----------------------------------------------------------------------------
def _const_map(ndim):
    return lambda b: (0,) * ndim


_WEIGHT_ORDER = ("w1m", "b1", "sw1", "sh1", "w3m", "b3", "sw3", "sh3",
                 "w5m", "b5", "w6", "b6", "w7", "b7")


@jax.jit
def lenet5_forward(img, prep):
    """img: (B, 1, 32, 32) float32 NCHW -> (B, 10) softmax probabilities."""
    B = img.shape[0]
    x = img.reshape(B, 32, 32).astype(jnp.float32)     # Cin == 1: drop channel dim
    weights = [prep[k] for k in _WEIGHT_ORDER]

    in_specs = [pl.BlockSpec((1, 32, 32), lambda b: (b, 0, 0))]
    in_specs += [pl.BlockSpec(w.shape, _const_map(w.ndim)) for w in weights]

    out = pl.pallas_call(
        _lenet5_kernel,
        out_shape=jax.ShapeDtypeStruct((B, 1, 128), jnp.float32),
        grid=(B,),
        in_specs=in_specs,
        out_specs=pl.BlockSpec((1, 1, 128), lambda b: (b, 0, 0)),
        compiler_params=pltpu.CompilerParams(dimension_semantics=("parallel",)),
    )(x, *weights)
    return out.reshape(B, 128)[:, :10]


# ----------------------------------------------------------------------------
# Parameter construction (deterministic, in-script)
# ----------------------------------------------------------------------------
def c3_index_lists():
    temp = [0, 1, 2, 3, 4, 5, 0, 1, 2, 3, 4, 5]
    idx = []
    for i in range(6):
        idx.append(temp[i:i + 3])
    for i in range(6):
        idx.append(temp[i:i + 4])
    for i in range(3):
        idx.append(temp[i:i + 2] + temp[i + 3:i + 5])
    idx.append(temp[0:6])
    return idx


def _uniform(key, shape, fan_in):
    bound = 1.0 / float(np.sqrt(fan_in))
    return jax.random.uniform(key, shape, jnp.float32, -bound, bound)


def init_params(key):
    keys = jax.random.split(key, 16)
    p = {}
    # c1: Conv2d(1, 6, 5)
    p["w1"] = _uniform(keys[0], (6, 1, 5, 5), 1 * 25)
    p["b1"] = _uniform(keys[1], (6,), 1 * 25)
    # c3: 16 sparse convs folded into a dense (16, 6, 5, 5) weight.
    idx_lists = c3_index_lists()
    w3 = np.zeros((16, 6, 5, 5), np.float32)
    b3 = np.zeros((16,), np.float32)
    ck = jax.random.split(keys[2], 32)
    for i, idx in enumerate(idx_lists):
        cin = len(idx)
        wi = np.asarray(_uniform(ck[2 * i], (1, cin, 5, 5), cin * 25))
        bi = np.asarray(_uniform(ck[2 * i + 1], (1,), cin * 25))
        for j, ch in enumerate(idx):
            w3[i, ch] += wi[0, j]
        b3[i] = bi[0]
    p["w3"], p["b3"] = jnp.asarray(w3), jnp.asarray(b3)
    # c5: Conv2d(16, 120, 5)
    p["w5"] = _uniform(keys[3], (120, 16, 5, 5), 16 * 25)
    p["b5"] = _uniform(keys[4], (120,), 16 * 25)
    # fc6: Linear(120, 84)
    p["w6"] = _uniform(keys[5], (84, 120), 120)
    p["b6"] = _uniform(keys[6], (84,), 120)
    # fc7: Linear(84, 10)
    p["w7"] = _uniform(keys[7], (10, 84), 84)
    p["b7"] = _uniform(keys[8], (10,), 84)
    return p


# ----------------------------------------------------------------------------
# One-time weight re-layout (hoisted out of the forward pass)
# ----------------------------------------------------------------------------
def _band_matrix(w, wi_blk, wo_blk, wo_valid):
    """Banded matrix for a valid stride-1 5x5 conv with lanes = (channel, col).

    m[di][ci*wi_blk + (wo+dj), co*wo_blk + wo] = w[co, ci, di, dj].
    """
    cout, cin, k, _ = w.shape
    m = np.zeros((k, cin * wi_blk, cout * wo_blk), np.float32)
    ci = np.arange(cin)[:, None]
    co = np.arange(cout)[None, :]
    for di in range(k):
        for dj in range(k):
            for wo in range(wo_valid):
                m[di, ci * wi_blk + wo + dj, co * wo_blk + wo] = w[:, :, di, dj].T
    return m


def _pool_col_sel(c, blk_in, blk_out, n_valid, parity):
    s = np.zeros((c * blk_in, c * blk_out), np.float32)
    for ci in range(c):
        for w in range(n_valid):
            s[ci * blk_in + 2 * w + parity, ci * blk_out + w] = 1.0
    return s


def _pool_row_sel(rows_out, rows_in, n_valid, parity):
    s = np.zeros((rows_out, rows_in), np.float32)
    for h in range(n_valid):
        s[h, 2 * h + parity] = 1.0
    return s


def prepare_params(p):
    w1 = np.asarray(p["w1"], np.float32); b1 = np.asarray(p["b1"], np.float32)
    w3 = np.asarray(p["w3"], np.float32); b3 = np.asarray(p["b3"], np.float32)
    w5 = np.asarray(p["w5"], np.float32); b5 = np.asarray(p["b5"], np.float32)
    w6 = np.asarray(p["w6"], np.float32); b6 = np.asarray(p["b6"], np.float32)
    w7 = np.asarray(p["w7"], np.float32); b7 = np.asarray(p["b7"], np.float32)

    # Banded conv matrices.
    w1m = _band_matrix(w1, 32, 32, 28)            # (5, 32, 192)
    w3m = _band_matrix(w3, 16, 16, 10)            # (5, 96, 256)

    # c5 == dense 400 -> 120: one (128, 128) matrix per kernel row di.
    w5m = np.zeros((5, 128, 128), np.float32)
    for di in range(5):
        for dj in range(5):
            w5m[di, np.arange(16) * 8 + dj, :120] = w5[:, :, di, dj].T
    w6p = np.zeros((128, 128), np.float32); w6p[:120, :84] = w6.T
    w7p = np.zeros((128, 128), np.float32); w7p[:84, :10] = w7.T

    # Even/odd 2x2-pool selectors (stacked as [even, odd]).
    sw1 = np.stack([_pool_col_sel(6, 32, 16, 14, 0), _pool_col_sel(6, 32, 16, 14, 1)])
    sh1 = np.stack([_pool_row_sel(16, 28, 14, 0), _pool_row_sel(16, 28, 14, 1)])
    sw3 = np.stack([_pool_col_sel(16, 16, 8, 5, 0), _pool_col_sel(16, 16, 8, 5, 1)])
    sh3 = np.stack([_pool_row_sel(8, 10, 5, 0), _pool_row_sel(8, 10, 5, 1)])

    # Lane-padded bias rows.
    b1r = np.zeros((1, 192), np.float32)
    for co in range(6):
        b1r[0, co * 32:(co + 1) * 32] = b1[co]
    b3r = np.zeros((1, 256), np.float32)
    for co in range(16):
        b3r[0, co * 16:(co + 1) * 16] = b3[co]
    b5r = np.zeros((1, 128), np.float32); b5r[0, :120] = b5
    b6r = np.zeros((1, 128), np.float32); b6r[0, :84] = b6
    b7r = np.full((1, 128), -1e30, np.float32); b7r[0, :10] = b7  # mask padded logits

    bf = lambda a: jnp.asarray(a, jnp.bfloat16)    # MXU operands
    f32 = lambda a: jnp.asarray(a, jnp.float32)    # exact selectors / biases
    return {
        "w1m": bf(w1m), "b1": f32(b1r), "sw1": f32(sw1), "sh1": f32(sh1),
        "w3m": bf(w3m), "b3": f32(b3r), "sw3": f32(sw3), "sh3": f32(sh3),
        "w5m": bf(w5m), "b5": f32(b5r), "w6": bf(w6p), "b6": f32(b6r),
        "w7": bf(w7p), "b7": f32(b7r),
    }


if __name__ == "__main__":
    key = jax.random.PRNGKey(0)
    pkey, xkey = jax.random.split(key)
    params = init_params(pkey)
    prep = prepare_params(params)
    # Architecture requires a 32x32 single-channel input (32->28->14->10->5->1).
    img = jax.random.normal(xkey, (2, 1, 32, 32), jnp.float32)

    out = jax.block_until_ready(lenet5_forward(img, prep))

    assert out.shape == (2, 10), out.shape
    row_sums = jnp.sum(out, axis=1)
    assert bool(jnp.all(jnp.abs(row_sums - 1.0) < 1e-4)), row_sums
    print("KERNEL_OK")
</pallas_src>

<mosaic_0001>
module attributes {stable_mosaic.version = 11 : i64} {
  func.func @_lenet5_kernel(%arg0: i32, %arg1: memref<1x32x32xf32, #tpu.memory_space<vmem>>, %arg2: memref<5x32x192xbf16, #tpu.memory_space<vmem>>, %arg3: memref<1x192xf32, #tpu.memory_space<vmem>>, %arg4: memref<2x192x96xf32, #tpu.memory_space<vmem>>, %arg5: memref<2x16x28xf32, #tpu.memory_space<vmem>>, %arg6: memref<5x96x256xbf16, #tpu.memory_space<vmem>>, %arg7: memref<1x256xf32, #tpu.memory_space<vmem>>, %arg8: memref<2x256x128xf32, #tpu.memory_space<vmem>>, %arg9: memref<2x8x10xf32, #tpu.memory_space<vmem>>, %arg10: memref<5x128x128xbf16, #tpu.memory_space<vmem>>, %arg11: memref<1x128xf32, #tpu.memory_space<vmem>>, %arg12: memref<128x128xbf16, #tpu.memory_space<vmem>>, %arg13: memref<1x128xf32, #tpu.memory_space<vmem>>, %arg14: memref<128x128xbf16, #tpu.memory_space<vmem>>, %arg15: memref<1x128xf32, #tpu.memory_space<vmem>>, %arg16: memref<1x1x128xf32, #tpu.memory_space<vmem>>) attributes {dimension_semantics = [#tpu.dimension_semantics<parallel>], iteration_bounds = array<i64: 2>, scalar_prefetch = 0 : i64, scratch_operands = 0 : i64, tpu.core_type = #tpu.core_type<tc>, window_params = [{transform_indices = @transform_0, window_bounds = array<i64: 1, 32, 32>}, {pipeline_mode = #tpu.pipeline_mode<synchronous>, transform_indices = @transform_1, window_bounds = array<i64: 5, 32, 192>}, {pipeline_mode = #tpu.pipeline_mode<synchronous>, transform_indices = @transform_2, window_bounds = array<i64: 1, 192>}, {pipeline_mode = #tpu.pipeline_mode<synchronous>, transform_indices = @transform_3, window_bounds = array<i64: 2, 192, 96>}, {pipeline_mode = #tpu.pipeline_mode<synchronous>, transform_indices = @transform_4, window_bounds = array<i64: 2, 16, 28>}, {pipeline_mode = #tpu.pipeline_mode<synchronous>, transform_indices = @transform_5, window_bounds = array<i64: 5, 96, 256>}, {pipeline_mode = #tpu.pipeline_mode<synchronous>, transform_indices = @transform_6, window_bounds = array<i64: 1, 256>}, {pipeline_mode = #tpu.pipeline_mode<synchronous>, transform_indices = @transform_7, window_bounds = array<i64: 2, 256, 128>}, {pipeline_mode = #tpu.pipeline_mode<synchronous>, transform_indices = @transform_8, window_bounds = array<i64: 2, 8, 10>}, {pipeline_mode = #tpu.pipeline_mode<synchronous>, transform_indices = @transform_9, window_bounds = array<i64: 5, 128, 128>}, {pipeline_mode = #tpu.pipeline_mode<synchronous>, transform_indices = @transform_10, window_bounds = array<i64: 1, 128>}, {pipeline_mode = #tpu.pipeline_mode<synchronous>, transform_indices = @transform_11, window_bounds = array<i64: 128, 128>}, {pipeline_mode = #tpu.pipeline_mode<synchronous>, transform_indices = @transform_12, window_bounds = array<i64: 1, 128>}, {pipeline_mode = #tpu.pipeline_mode<synchronous>, transform_indices = @transform_13, window_bounds = array<i64: 128, 128>}, {pipeline_mode = #tpu.pipeline_mode<synchronous>, transform_indices = @transform_14, window_bounds = array<i64: 1, 128>}, {transform_indices = @transform_15, window_bounds = array<i64: 1, 1, 128>}]} {
    %c0 = arith.constant 0 : index
    %c0_0 = arith.constant 0 : index
    %c0_1 = arith.constant 0 : index
    %0 = vector.load %arg1[%c0, %c0_0, %c0_1] : memref<1x32x32xf32, #tpu.memory_space<vmem>>, vector<1x32x32xf32>
    %1 = vector.shape_cast %0 : vector<1x32x32xf32> to vector<32x32xf32>
    %c0_2 = arith.constant 0 : index
    %c0_3 = arith.constant 0 : index
    %2 = vector.load %arg3[%c0_2, %c0_3] : memref<1x192xf32, #tpu.memory_space<vmem>>, vector<1x192xf32>
    %3 = vector.extract_strided_slice %1 {offsets = [0, 0], sizes = [28, 32], strides = [1, 1]} : vector<32x32xf32> to vector<28x32xf32>
    %c0_4 = arith.constant 0 : index
    %c0_5 = arith.constant 0 : index
    %c0_6 = arith.constant 0 : index
    %4 = vector.load %arg2[%c0_4, %c0_5, %c0_6] : memref<5x32x192xbf16, #tpu.memory_space<vmem>>, vector<1x32x192xbf16>
    %5 = vector.shape_cast %4 : vector<1x32x192xbf16> to vector<32x192xbf16>
    %6 = arith.truncf %3 : vector<28x32xf32> to vector<28x32xbf16>
    %cst = arith.constant dense<0.000000e+00> : vector<28x192xf32>
    %7 = tpu.matmul %6, %5, %cst {dimension_numbers = #tpu.dot_dimension_numbers<[1], [0], [0], [1], [0, 0, 1, 1], [], []>} : vector<28x32xbf16>, vector<32x192xbf16>, vector<28x192xf32> -> vector<28x192xf32>
    %8 = vector.broadcast %2 : vector<1x192xf32> to vector<28x192xf32>
    %9 = arith.addf %8, %7 : vector<28x192xf32>
    %10 = vector.extract_strided_slice %1 {offsets = [1, 0], sizes = [28, 32], strides = [1, 1]} : vector<32x32xf32> to vector<28x32xf32>
    %c1 = arith.constant 1 : index
    %c0_7 = arith.constant 0 : index
    %c0_8 = arith.constant 0 : index
    %11 = vector.load %arg2[%c1, %c0_7, %c0_8] : memref<5x32x192xbf16, #tpu.memory_space<vmem>>, vector<1x32x192xbf16>
    %12 = vector.shape_cast %11 : vector<1x32x192xbf16> to vector<32x192xbf16>
    %13 = arith.truncf %10 : vector<28x32xf32> to vector<28x32xbf16>
    %cst_9 = arith.constant dense<0.000000e+00> : vector<28x192xf32>
    %14 = tpu.matmul %13, %12, %cst_9 {dimension_numbers = #tpu.dot_dimension_numbers<[1], [0], [0], [1], [0, 0, 1, 1], [], []>} : vector<28x32xbf16>, vector<32x192xbf16>, vector<28x192xf32> -> vector<28x192xf32>
    %15 = arith.addf %9, %14 : vector<28x192xf32>
    %16 = vector.extract_strided_slice %1 {offsets = [2, 0], sizes = [28, 32], strides = [1, 1]} : vector<32x32xf32> to vector<28x32xf32>
    %c2 = arith.constant 2 : index
    %c0_10 = arith.constant 0 : index
    %c0_11 = arith.constant 0 : index
    %17 = vector.load %arg2[%c2, %c0_10, %c0_11] : memref<5x32x192xbf16, #tpu.memory_space<vmem>>, vector<1x32x192xbf16>
    %18 = vector.shape_cast %17 : vector<1x32x192xbf16> to vector<32x192xbf16>
    %19 = arith.truncf %16 : vector<28x32xf32> to vector<28x32xbf16>
    %cst_12 = arith.constant dense<0.000000e+00> : vector<28x192xf32>
    %20 = tpu.matmul %19, %18, %cst_12 {dimension_numbers = #tpu.dot_dimension_numbers<[1], [0], [0], [1], [0, 0, 1, 1], [], []>} : vector<28x32xbf16>, vector<32x192xbf16>, vector<28x192xf32> -> vector<28x192xf32>
    %21 = arith.addf %15, %20 : vector<28x192xf32>
    %22 = vector.extract_strided_slice %1 {offsets = [3, 0], sizes = [28, 32], strides = [1, 1]} : vector<32x32xf32> to vector<28x32xf32>
    %c3 = arith.constant 3 : index
    %c0_13 = arith.constant 0 : index
    %c0_14 = arith.constant 0 : index
    %23 = vector.load %arg2[%c3, %c0_13, %c0_14] : memref<5x32x192xbf16, #tpu.memory_space<vmem>>, vector<1x32x192xbf16>
    %24 = vector.shape_cast %23 : vector<1x32x192xbf16> to vector<32x192xbf16>
    %25 = arith.truncf %22 : vector<28x32xf32> to vector<28x32xbf16>
    %cst_15 = arith.constant dense<0.000000e+00> : vector<28x192xf32>
    %26 = tpu.matmul %25, %24, %cst_15 {dimension_numbers = #tpu.dot_dimension_numbers<[1], [0], [0], [1], [0, 0, 1, 1], [], []>} : vector<28x32xbf16>, vector<32x192xbf16>, vector<28x192xf32> -> vector<28x192xf32>
    %27 = arith.addf %21, %26 : vector<28x192xf32>
    %28 = vector.extract_strided_slice %1 {offsets = [4, 0], sizes = [28, 32], strides = [1, 1]} : vector<32x32xf32> to vector<28x32xf32>
    %c4 = arith.constant 4 : index
    %c0_16 = arith.constant 0 : index
    %c0_17 = arith.constant 0 : index
    %29 = vector.load %arg2[%c4, %c0_16, %c0_17] : memref<5x32x192xbf16, #tpu.memory_space<vmem>>, vector<1x32x192xbf16>
    %30 = vector.shape_cast %29 : vector<1x32x192xbf16> to vector<32x192xbf16>
    %31 = arith.truncf %28 : vector<28x32xf32> to vector<28x32xbf16>
    %cst_18 = arith.constant dense<0.000000e+00> : vector<28x192xf32>
    %32 = tpu.matmul %31, %30, %cst_18 {dimension_numbers = #tpu.dot_dimension_numbers<[1], [0], [0], [1], [0, 0, 1, 1], [], []>} : vector<28x32xbf16>, vector<32x192xbf16>, vector<28x192xf32> -> vector<28x192xf32>
    %33 = arith.addf %27, %32 : vector<28x192xf32>
    %c0_19 = arith.constant 0 : index
    %c0_20 = arith.constant 0 : index
    %c0_21 = arith.constant 0 : index
    %34 = vector.load %arg4[%c0_19, %c0_20, %c0_21] : memref<2x192x96xf32, #tpu.memory_space<vmem>>, vector<1x192x96xf32>
    %35 = vector.shape_cast %34 : vector<1x192x96xf32> to vector<192x96xf32>
    %cst_22 = arith.constant dense<0.000000e+00> : vector<28x96xf32>
    %36 = tpu.matmul %33, %35, %cst_22 {dimension_numbers = #tpu.dot_dimension_numbers<[1], [0], [0], [1], [0, 0, 1, 1], [], []>} : vector<28x192xf32>, vector<192x96xf32>, vector<28x96xf32> -> vector<28x96xf32>
    %c1_23 = arith.constant 1 : index
    %c0_24 = arith.constant 0 : index
    %c0_25 = arith.constant 0 : index
    %37 = vector.load %arg4[%c1_23, %c0_24, %c0_25] : memref<2x192x96xf32, #tpu.memory_space<vmem>>, vector<1x192x96xf32>
    %38 = vector.shape_cast %37 : vector<1x192x96xf32> to vector<192x96xf32>
    %cst_26 = arith.constant dense<0.000000e+00> : vector<28x96xf32>
    %39 = tpu.matmul %33, %38, %cst_26 {dimension_numbers = #tpu.dot_dimension_numbers<[1], [0], [0], [1], [0, 0, 1, 1], [], []>} : vector<28x192xf32>, vector<192x96xf32>, vector<28x96xf32> -> vector<28x96xf32>
    %40 = arith.maximumf %36, %39 : vector<28x96xf32>
    %c0_27 = arith.constant 0 : index
    %c0_28 = arith.constant 0 : index
    %c0_29 = arith.constant 0 : index
    %41 = vector.load %arg5[%c0_27, %c0_28, %c0_29] : memref<2x16x28xf32, #tpu.memory_space<vmem>>, vector<1x16x28xf32>
    %42 = vector.shape_cast %41 : vector<1x16x28xf32> to vector<16x28xf32>
    %cst_30 = arith.constant dense<0.000000e+00> : vector<16x96xf32>
    %43 = tpu.matmul %42, %40, %cst_30 {dimension_numbers = #tpu.dot_dimension_numbers<[1], [0], [0], [1], [0, 0, 1, 1], [], []>} : vector<16x28xf32>, vector<28x96xf32>, vector<16x96xf32> -> vector<16x96xf32>
    %c1_31 = arith.constant 1 : index
    %c0_32 = arith.constant 0 : index
    %c0_33 = arith.constant 0 : index
    %44 = vector.load %arg5[%c1_31, %c0_32, %c0_33] : memref<2x16x28xf32, #tpu.memory_space<vmem>>, vector<1x16x28xf32>
    %45 = vector.shape_cast %44 : vector<1x16x28xf32> to vector<16x28xf32>
    %cst_34 = arith.constant dense<0.000000e+00> : vector<16x96xf32>
    %46 = tpu.matmul %45, %40, %cst_34 {dimension_numbers = #tpu.dot_dimension_numbers<[1], [0], [0], [1], [0, 0, 1, 1], [], []>} : vector<16x28xf32>, vector<28x96xf32>, vector<16x96xf32> -> vector<16x96xf32>
    %47 = arith.maximumf %43, %46 : vector<16x96xf32>
    %cst_35 = arith.constant 0.000000e+00 : f32
    %48 = vector.broadcast %cst_35 : f32 to vector<16x96xf32>
    %49 = arith.subf %48, %47 : vector<16x96xf32>
    %50 = math.exp %49 : vector<16x96xf32>
    %cst_36 = arith.constant 1.000000e+00 : f32
    %51 = vector.broadcast %cst_36 : f32 to vector<16x96xf32>
    %52 = arith.addf %51, %50 : vector<16x96xf32>
    %53 = tpu.reciprocal %52 {approx = true} : vector<16x96xf32> -> vector<16x96xf32>
    %c0_37 = arith.constant 0 : index
    %c0_38 = arith.constant 0 : index
    %54 = vector.load %arg7[%c0_37, %c0_38] : memref<1x256xf32, #tpu.memory_space<vmem>>, vector<1x256xf32>
    %55 = vector.extract_strided_slice %53 {offsets = [0, 0], sizes = [10, 96], strides = [1, 1]} : vector<16x96xf32> to vector<10x96xf32>
    %c0_39 = arith.constant 0 : index
    %c0_40 = arith.constant 0 : index
    %c0_41 = arith.constant 0 : index
    %56 = vector.load %arg6[%c0_39, %c0_40, %c0_41] : memref<5x96x256xbf16, #tpu.memory_space<vmem>>, vector<1x96x256xbf16>
    %57 = vector.shape_cast %56 : vector<1x96x256xbf16> to vector<96x256xbf16>
    %58 = arith.truncf %55 : vector<10x96xf32> to vector<10x96xbf16>
    %cst_42 = arith.constant dense<0.000000e+00> : vector<10x256xf32>
    %59 = tpu.matmul %58, %57, %cst_42 {dimension_numbers = #tpu.dot_dimension_numbers<[1], [0], [0], [1], [0, 0, 1, 1], [], []>} : vector<10x96xbf16>, vector<96x256xbf16>, vector<10x256xf32> -> vector<10x256xf32>
    %60 = vector.broadcast %54 : vector<1x256xf32> to vector<10x256xf32>
    %61 = arith.addf %60, %59 : vector<10x256xf32>
    %62 = vector.extract_strided_slice %53 {offsets = [1, 0], sizes = [10, 96], strides = [1, 1]} : vector<16x96xf32> to vector<10x96xf32>
    %c1_43 = arith.constant 1 : index
    %c0_44 = arith.constant 0 : index
    %c0_45 = arith.constant 0 : index
    %63 = vector.load %arg6[%c1_43, %c0_44, %c0_45] : memref<5x96x256xbf16, #tpu.memory_space<vmem>>, vector<1x96x256xbf16>
    %64 = vector.shape_cast %63 : vector<1x96x256xbf16> to vector<96x256xbf16>
    %65 = arith.truncf %62 : vector<10x96xf32> to vector<10x96xbf16>
    %cst_46 = arith.constant dense<0.000000e+00> : vector<10x256xf32>
    %66 = tpu.matmul %65, %64, %cst_46 {dimension_numbers = #tpu.dot_dimension_numbers<[1], [0], [0], [1], [0, 0, 1, 1], [], []>} : vector<10x96xbf16>, vector<96x256xbf16>, vector<10x256xf32> -> vector<10x256xf32>
    %67 = arith.addf %61, %66 : vector<10x256xf32>
    %68 = vector.extract_strided_slice %53 {offsets = [2, 0], sizes = [10, 96], strides = [1, 1]} : vector<16x96xf32> to vector<10x96xf32>
    %c2_47 = arith.constant 2 : index
    %c0_48 = arith.constant 0 : index
    %c0_49 = arith.constant 0 : index
    %69 = vector.load %arg6[%c2_47, %c0_48, %c0_49] : memref<5x96x256xbf16, #tpu.memory_space<vmem>>, vector<1x96x256xbf16>
    %70 = vector.shape_cast %69 : vector<1x96x256xbf16> to vector<96x256xbf16>
    %71 = arith.truncf %68 : vector<10x96xf32> to vector<10x96xbf16>
    %cst_50 = arith.constant dense<0.000000e+00> : vector<10x256xf32>
    %72 = tpu.matmul %71, %70, %cst_50 {dimension_numbers = #tpu.dot_dimension_numbers<[1], [0], [0], [1], [0, 0, 1, 1], [], []>} : vector<10x96xbf16>, vector<96x256xbf16>, vector<10x256xf32> -> vector<10x256xf32>
    %73 = arith.addf %67, %72 : vector<10x256xf32>
    %74 = vector.extract_strided_slice %53 {offsets = [3, 0], sizes = [10, 96], strides = [1, 1]} : vector<16x96xf32> to vector<10x96xf32>
    %c3_51 = arith.constant 3 : index
    %c0_52 = arith.constant 0 : index
    %c0_53 = arith.constant 0 : index
    %75 = vector.load %arg6[%c3_51, %c0_52, %c0_53] : memref<5x96x256xbf16, #tpu.memory_space<vmem>>, vector<1x96x256xbf16>
    %76 = vector.shape_cast %75 : vector<1x96x256xbf16> to vector<96x256xbf16>
    %77 = arith.truncf %74 : vector<10x96xf32> to vector<10x96xbf16>
    %cst_54 = arith.constant dense<0.000000e+00> : vector<10x256xf32>
    %78 = tpu.matmul %77, %76, %cst_54 {dimension_numbers = #tpu.dot_dimension_numbers<[1], [0], [0], [1], [0, 0, 1, 1], [], []>} : vector<10x96xbf16>, vector<96x256xbf16>, vector<10x256xf32> -> vector<10x256xf32>
    %79 = arith.addf %73, %78 : vector<10x256xf32>
    %80 = vector.extract_strided_slice %53 {offsets = [4, 0], sizes = [10, 96], strides = [1, 1]} : vector<16x96xf32> to vector<10x96xf32>
    %c4_55 = arith.constant 4 : index
    %c0_56 = arith.constant 0 : index
    %c0_57 = arith.constant 0 : index
    %81 = vector.load %arg6[%c4_55, %c0_56, %c0_57] : memref<5x96x256xbf16, #tpu.memory_space<vmem>>, vector<1x96x256xbf16>
    %82 = vector.shape_cast %81 : vector<1x96x256xbf16> to vector<96x256xbf16>
    %83 = arith.truncf %80 : vector<10x96xf32> to vector<10x96xbf16>
    %cst_58 = arith.constant dense<0.000000e+00> : vector<10x256xf32>
    %84 = tpu.matmul %83, %82, %cst_58 {dimension_numbers = #tpu.dot_dimension_numbers<[1], [0], [0], [1], [0, 0, 1, 1], [], []>} : vector<10x96xbf16>, vector<96x256xbf16>, vector<10x256xf32> -> vector<10x256xf32>
    %85 = arith.addf %79, %84 : vector<10x256xf32>
    %c0_59 = arith.constant 0 : index
    %c0_60 = arith.constant 0 : index
    %c0_61 = arith.constant 0 : index
    %86 = vector.load %arg8[%c0_59, %c0_60, %c0_61] : memref<2x256x128xf32, #tpu.memory_space<vmem>>, vector<1x256x128xf32>
    %87 = vector.shape_cast %86 : vector<1x256x128xf32> to vector<256x128xf32>
    %cst_62 = arith.constant dense<0.000000e+00> : vector<10x128xf32>
    %88 = tpu.matmul %85, %87, %cst_62 {dimension_numbers = #tpu.dot_dimension_numbers<[1], [0], [0], [1], [0, 0, 1, 1], [], []>} : vector<10x256xf32>, vector<256x128xf32>, vector<10x128xf32> -> vector<10x128xf32>
    %c1_63 = arith.constant 1 : index
    %c0_64 = arith.constant 0 : index
    %c0_65 = arith.constant 0 : index
    %89 = vector.load %arg8[%c1_63, %c0_64, %c0_65] : memref<2x256x128xf32, #tpu.memory_space<vmem>>, vector<1x256x128xf32>
    %90 = vector.shape_cast %89 : vector<1x256x128xf32> to vector<256x128xf32>
    %cst_66 = arith.constant dense<0.000000e+00> : vector<10x128xf32>
    %91 = tpu.matmul %85, %90, %cst_66 {dimension_numbers = #tpu.dot_dimension_numbers<[1], [0], [0], [1], [0, 0, 1, 1], [], []>} : vector<10x256xf32>, vector<256x128xf32>, vector<10x128xf32> -> vector<10x128xf32>
    %92 = arith.maximumf %88, %91 : vector<10x128xf32>
    %c0_67 = arith.constant 0 : index
    %c0_68 = arith.constant 0 : index
    %c0_69 = arith.constant 0 : index
    %93 = vector.load %arg9[%c0_67, %c0_68, %c0_69] : memref<2x8x10xf32, #tpu.memory_space<vmem>>, vector<1x8x10xf32>
    %94 = vector.shape_cast %93 : vector<1x8x10xf32> to vector<8x10xf32>
    %cst_70 = arith.constant dense<0.000000e+00> : vector<8x128xf32>
    %95 = tpu.matmul %94, %92, %cst_70 {dimension_numbers = #tpu.dot_dimension_numbers<[1], [0], [0], [1], [0, 0, 1, 1], [], []>} : vector<8x10xf32>, vector<10x128xf32>, vector<8x128xf32> -> vector<8x128xf32>
    %c1_71 = arith.constant 1 : index
    %c0_72 = arith.constant 0 : index
    %c0_73 = arith.constant 0 : index
    %96 = vector.load %arg9[%c1_71, %c0_72, %c0_73] : memref<2x8x10xf32, #tpu.memory_space<vmem>>, vector<1x8x10xf32>
    %97 = vector.shape_cast %96 : vector<1x8x10xf32> to vector<8x10xf32>
    %cst_74 = arith.constant dense<0.000000e+00> : vector<8x128xf32>
    %98 = tpu.matmul %97, %92, %cst_74 {dimension_numbers = #tpu.dot_dimension_numbers<[1], [0], [0], [1], [0, 0, 1, 1], [], []>} : vector<8x10xf32>, vector<10x128xf32>, vector<8x128xf32> -> vector<8x128xf32>
    %99 = arith.maximumf %95, %98 : vector<8x128xf32>
    %cst_75 = arith.constant 0.000000e+00 : f32
    %100 = vector.broadcast %cst_75 : f32 to vector<8x128xf32>
    %101 = arith.subf %100, %99 : vector<8x128xf32>
    %102 = math.exp %101 : vector<8x128xf32>
    %cst_76 = arith.constant 1.000000e+00 : f32
    %103 = vector.broadcast %cst_76 : f32 to vector<8x128xf32>
    %104 = arith.addf %103, %102 : vector<8x128xf32>
    %105 = tpu.reciprocal %104 {approx = true} : vector<8x128xf32> -> vector<8x128xf32>
    %c0_77 = arith.constant 0 : index
    %c0_78 = arith.constant 0 : index
    %106 = vector.load %arg11[%c0_77, %c0_78] : memref<1x128xf32, #tpu.memory_space<vmem>>, vector<1x128xf32>
    %107 = vector.extract_strided_slice %105 {offsets = [0, 0], sizes = [1, 128], strides = [1, 1]} : vector<8x128xf32> to vector<1x128xf32>
    %c0_79 = arith.constant 0 : index
    %c0_80 = arith.constant 0 : index
    %c0_81 = arith.constant 0 : index
    %108 = vector.load %arg10[%c0_79, %c0_80, %c0_81] : memref<5x128x128xbf16, #tpu.memory_space<vmem>>, vector<1x128x128xbf16>
    %109 = vector.shape_cast %108 : vector<1x128x128xbf16> to vector<128x128xbf16>
    %110 = arith.truncf %107 : vector<1x128xf32> to vector<1x128xbf16>
    %cst_82 = arith.constant dense<0.000000e+00> : vector<1x128xf32>
    %111 = tpu.matmul %110, %109, %cst_82 {dimension_numbers = #tpu.dot_dimension_numbers<[1], [0], [0], [1], [0, 0, 1, 1], [], []>} : vector<1x128xbf16>, vector<128x128xbf16>, vector<1x128xf32> -> vector<1x128xf32>
    %112 = arith.addf %106, %111 : vector<1x128xf32>
    %113 = vector.extract_strided_slice %105 {offsets = [1, 0], sizes = [1, 128], strides = [1, 1]} : vector<8x128xf32> to vector<1x128xf32>
    %c1_83 = arith.constant 1 : index
    %c0_84 = arith.constant 0 : index
    %c0_85 = arith.constant 0 : index
    %114 = vector.load %arg10[%c1_83, %c0_84, %c0_85] : memref<5x128x128xbf16, #tpu.memory_space<vmem>>, vector<1x128x128xbf16>
    %115 = vector.shape_cast %114 : vector<1x128x128xbf16> to vector<128x128xbf16>
    %116 = arith.truncf %113 : vector<1x128xf32> to vector<1x128xbf16>
    %cst_86 = arith.constant dense<0.000000e+00> : vector<1x128xf32>
    %117 = tpu.matmul %116, %115, %cst_86 {dimension_numbers = #tpu.dot_dimension_numbers<[1], [0], [0], [1], [0, 0, 1, 1], [], []>} : vector<1x128xbf16>, vector<128x128xbf16>, vector<1x128xf32> -> vector<1x128xf32>
    %118 = arith.addf %112, %117 : vector<1x128xf32>
    %119 = vector.extract_strided_slice %105 {offsets = [2, 0], sizes = [1, 128], strides = [1, 1]} : vector<8x128xf32> to vector<1x128xf32>
    %c2_87 = arith.constant 2 : index
    %c0_88 = arith.constant 0 : index
    %c0_89 = arith.constant 0 : index
    %120 = vector.load %arg10[%c2_87, %c0_88, %c0_89] : memref<5x128x128xbf16, #tpu.memory_space<vmem>>, vector<1x128x128xbf16>
    %121 = vector.shape_cast %120 : vector<1x128x128xbf16> to vector<128x128xbf16>
    %122 = arith.truncf %119 : vector<1x128xf32> to vector<1x128xbf16>
    %cst_90 = arith.constant dense<0.000000e+00> : vector<1x128xf32>
    %123 = tpu.matmul %122, %121, %cst_90 {dimension_numbers = #tpu.dot_dimension_numbers<[1], [0], [0], [1], [0, 0, 1, 1], [], []>} : vector<1x128xbf16>, vector<128x128xbf16>, vector<1x128xf32> -> vector<1x128xf32>
    %124 = arith.addf %118, %123 : vector<1x128xf32>
    %125 = vector.extract_strided_slice %105 {offsets = [3, 0], sizes = [1, 128], strides = [1, 1]} : vector<8x128xf32> to vector<1x128xf32>
    %c3_91 = arith.constant 3 : index
    %c0_92 = arith.constant 0 : index
    %c0_93 = arith.constant 0 : index
    %126 = vector.load %arg10[%c3_91, %c0_92, %c0_93] : memref<5x128x128xbf16, #tpu.memory_space<vmem>>, vector<1x128x128xbf16>
    %127 = vector.shape_cast %126 : vector<1x128x128xbf16> to vector<128x128xbf16>
    %128 = arith.truncf %125 : vector<1x128xf32> to vector<1x128xbf16>
    %cst_94 = arith.constant dense<0.000000e+00> : vector<1x128xf32>
    %129 = tpu.matmul %128, %127, %cst_94 {dimension_numbers = #tpu.dot_dimension_numbers<[1], [0], [0], [1], [0, 0, 1, 1], [], []>} : vector<1x128xbf16>, vector<128x128xbf16>, vector<1x128xf32> -> vector<1x128xf32>
    %130 = arith.addf %124, %129 : vector<1x128xf32>
    %131 = vector.extract_strided_slice %105 {offsets = [4, 0], sizes = [1, 128], strides = [1, 1]} : vector<8x128xf32> to vector<1x128xf32>
    %c4_95 = arith.constant 4 : index
    %c0_96 = arith.constant 0 : index
    %c0_97 = arith.constant 0 : index
    %132 = vector.load %arg10[%c4_95, %c0_96, %c0_97] : memref<5x128x128xbf16, #tpu.memory_space<vmem>>, vector<1x128x128xbf16>
    %133 = vector.shape_cast %132 : vector<1x128x128xbf16> to vector<128x128xbf16>
    %134 = arith.truncf %131 : vector<1x128xf32> to vector<1x128xbf16>
    %cst_98 = arith.constant dense<0.000000e+00> : vector<1x128xf32>
    %135 = tpu.matmul %134, %133, %cst_98 {dimension_numbers = #tpu.dot_dimension_numbers<[1], [0], [0], [1], [0, 0, 1, 1], [], []>} : vector<1x128xbf16>, vector<128x128xbf16>, vector<1x128xf32> -> vector<1x128xf32>
    %136 = arith.addf %130, %135 : vector<1x128xf32>
    %c0_99 = arith.constant 0 : index
    %c0_100 = arith.constant 0 : index
    %137 = vector.load %arg12[%c0_99, %c0_100] : memref<128x128xbf16, #tpu.memory_space<vmem>>, vector<128x128xbf16>
    %138 = arith.truncf %136 : vector<1x128xf32> to vector<1x128xbf16>
    %cst_101 = arith.constant dense<0.000000e+00> : vector<1x128xf32>
    %139 = tpu.matmul %138, %137, %cst_101 {dimension_numbers = #tpu.dot_dimension_numbers<[1], [0], [0], [1], [0, 0, 1, 1], [], []>} : vector<1x128xbf16>, vector<128x128xbf16>, vector<1x128xf32> -> vector<1x128xf32>
    %c0_102 = arith.constant 0 : index
    %c0_103 = arith.constant 0 : index
    %140 = vector.load %arg13[%c0_102, %c0_103] : memref<1x128xf32, #tpu.memory_space<vmem>>, vector<1x128xf32>
    %141 = arith.addf %139, %140 : vector<1x128xf32>
    %142 = math.tanh %141 : vector<1x128xf32>
    %cst_104 = arith.constant 1.715900e+00 : f32
    %143 = vector.broadcast %cst_104 : f32 to vector<1x128xf32>
    %144 = arith.mulf %142, %143 : vector<1x128xf32>
    %c0_105 = arith.constant 0 : index
    %c0_106 = arith.constant 0 : index
    %145 = vector.load %arg14[%c0_105, %c0_106] : memref<128x128xbf16, #tpu.memory_space<vmem>>, vector<128x128xbf16>
    %146 = arith.truncf %144 : vector<1x128xf32> to vector<1x128xbf16>
    %cst_107 = arith.constant dense<0.000000e+00> : vector<1x128xf32>
    %147 = tpu.matmul %146, %145, %cst_107 {dimension_numbers = #tpu.dot_dimension_numbers<[1], [0], [0], [1], [0, 0, 1, 1], [], []>} : vector<1x128xbf16>, vector<128x128xbf16>, vector<1x128xf32> -> vector<1x128xf32>
    %c0_108 = arith.constant 0 : index
    %c0_109 = arith.constant 0 : index
    %148 = vector.load %arg15[%c0_108, %c0_109] : memref<1x128xf32, #tpu.memory_space<vmem>>, vector<1x128xf32>
    %149 = arith.addf %147, %148 : vector<1x128xf32>
    %cst_110 = arith.constant dense<0xFF800000> : vector<1xf32>
    %150 = vector.multi_reduction <maximumf>, %149, %cst_110 [1] : vector<1x128xf32> to vector<1xf32>
    %151 = vector.shape_cast %150 : vector<1xf32> to vector<1x1xf32>
    %152 = vector.broadcast %151 : vector<1x1xf32> to vector<1x128xf32>
    %153 = arith.subf %149, %152 : vector<1x128xf32>
    %154 = math.exp %153 : vector<1x128xf32>
    %cst_111 = arith.constant dense<0.000000e+00> : vector<1xf32>
    %155 = vector.multi_reduction <add>, %154, %cst_111 [1] : vector<1x128xf32> to vector<1xf32>
    %156 = vector.shape_cast %155 : vector<1xf32> to vector<1x1xf32>
    %157 = vector.broadcast %156 : vector<1x1xf32> to vector<1x128xf32>
    %158 = arith.divf %154, %157 : vector<1x128xf32>
    %c0_112 = arith.constant 0 : index
    %c0_113 = arith.constant 0 : index
    %c0_114 = arith.constant 0 : index
    %159 = vector.load %arg16[%c0_112, %c0_113, %c0_114] : memref<1x1x128xf32, #tpu.memory_space<vmem>>, vector<1x1x128xf32>
    %160 = vector.shape_cast %159 : vector<1x1x128xf32> to vector<1x128xf32>
    %161 = vector.shape_cast %158 : vector<1x128xf32> to vector<1x1x128xf32>
    tpu.vector_store %arg16[%c0_112, %c0_113, %c0_114], %161 {strides = array<i32>} : memref<1x1x128xf32, #tpu.memory_space<vmem>>, vector<1x1x128xf32>,
    return
  }
  func.func @transform_0(%arg0: i32) -> (i32, i32, i32) {
    %c0_i32 = arith.constant 0 : i32
    %c0_i32_0 = arith.constant 0 : i32
    %c0_i32_1 = arith.constant 0 : i32
    return %arg0, %c0_i32, %c0_i32_0 : i32, i32, i32
  }
  func.func @transform_1(%arg0: i32) -> (i32, i32, i32) {
    %c0_i32 = arith.constant 0 : i32
    %c0_i32_0 = arith.constant 0 : i32
    %c0_i32_1 = arith.constant 0 : i32
    %c0_i32_2 = arith.constant 0 : i32
    return %c0_i32, %c0_i32_0, %c0_i32_1 : i32, i32, i32
  }
  func.func @transform_2(%arg0: i32) -> (i32, i32) {
    %c0_i32 = arith.constant 0 : i32
    %c0_i32_0 = arith.constant 0 : i32
    %c0_i32_1 = arith.constant 0 : i32
    return %c0_i32, %c0_i32_0 : i32, i32
  }
  func.func @transform_3(%arg0: i32) -> (i32, i32, i32) {
    %c0_i32 = arith.constant 0 : i32
    %c0_i32_0 = arith.constant 0 : i32
    %c0_i32_1 = arith.constant 0 : i32
    %c0_i32_2 = arith.constant 0 : i32
    return %c0_i32, %c0_i32_0, %c0_i32_1 : i32, i32, i32
  }
  func.func @transform_4(%arg0: i32) -> (i32, i32, i32) {
    %c0_i32 = arith.constant 0 : i32
    %c0_i32_0 = arith.constant 0 : i32
    %c0_i32_1 = arith.constant 0 : i32
    %c0_i32_2 = arith.constant 0 : i32
    return %c0_i32, %c0_i32_0, %c0_i32_1 : i32, i32, i32
  }
  func.func @transform_5(%arg0: i32) -> (i32, i32, i32) {
    %c0_i32 = arith.constant 0 : i32
    %c0_i32_0 = arith.constant 0 : i32
    %c0_i32_1 = arith.constant 0 : i32
    %c0_i32_2 = arith.constant 0 : i32
    return %c0_i32, %c0_i32_0, %c0_i32_1 : i32, i32, i32
  }
  func.func @transform_6(%arg0: i32) -> (i32, i32) {
    %c0_i32 = arith.constant 0 : i32
    %c0_i32_0 = arith.constant 0 : i32
    %c0_i32_1 = arith.constant 0 : i32
    return %c0_i32, %c0_i32_0 : i32, i32
  }
  func.func @transform_7(%arg0: i32) -> (i32, i32, i32) {
    %c0_i32 = arith.constant 0 : i32
    %c0_i32_0 = arith.constant 0 : i32
    %c0_i32_1 = arith.constant 0 : i32
    %c0_i32_2 = arith.constant 0 : i32
    return %c0_i32, %c0_i32_0, %c0_i32_1 : i32, i32, i32
  }
  func.func @transform_8(%arg0: i32) -> (i32, i32, i32) {
    %c0_i32 = arith.constant 0 : i32
    %c0_i32_0 = arith.constant 0 : i32
    %c0_i32_1 = arith.constant 0 : i32
    %c0_i32_2 = arith.constant 0 : i32
    return %c0_i32, %c0_i32_0, %c0_i32_1 : i32, i32, i32
  }
  func.func @transform_9(%arg0: i32) -> (i32, i32, i32) {
    %c0_i32 = arith.constant 0 : i32
    %c0_i32_0 = arith.constant 0 : i32
    %c0_i32_1 = arith.constant 0 : i32
    %c0_i32_2 = arith.constant 0 : i32
    return %c0_i32, %c0_i32_0, %c0_i32_1 : i32, i32, i32
  }
  func.func @transform_10(%arg0: i32) -> (i32, i32) {
    %c0_i32 = arith.constant 0 : i32
    %c0_i32_0 = arith.constant 0 : i32
    %c0_i32_1 = arith.constant 0 : i32
    return %c0_i32, %c0_i32_0 : i32, i32
  }
  func.func @transform_11(%arg0: i32) -> (i32, i32) {
    %c0_i32 = arith.constant 0 : i32
    %c0_i32_0 = arith.constant 0 : i32
    %c0_i32_1 = arith.constant 0 : i32
    return %c0_i32, %c0_i32_0 : i32, i32
  }
  func.func @transform_12(%arg0: i32) -> (i32, i32) {
    %c0_i32 = arith.constant 0 : i32
    %c0_i32_0 = arith.constant 0 : i32
    %c0_i32_1 = arith.constant 0 : i32
    return %c0_i32, %c0_i32_0 : i32, i32
  }
  func.func @transform_13(%arg0: i32) -> (i32, i32) {
    %c0_i32 = arith.constant 0 : i32
    %c0_i32_0 = arith.constant 0 : i32
    %c0_i32_1 = arith.constant 0 : i32
    return %c0_i32, %c0_i32_0 : i32, i32
  }
  func.func @transform_14(%arg0: i32) -> (i32, i32) {
    %c0_i32 = arith.constant 0 : i32
    %c0_i32_0 = arith.constant 0 : i32
    %c0_i32_1 = arith.constant 0 : i32
    return %c0_i32, %c0_i32_0 : i32, i32
  }
  func.func @transform_15(%arg0: i32) -> (i32, i32, i32) {
    %c0_i32 = arith.constant 0 : i32
    %c0_i32_0 = arith.constant 0 : i32
    %c0_i32_1 = arith.constant 0 : i32
    return %arg0, %c0_i32, %c0_i32_0 : i32, i32, i32
  }
}

</mosaic_0001>

<llo_original>
// kernel: lenet5_forward.1
$region0: #{lenet5_forward.1}
  #allocation0 [shape = 'u32[]', space=smem, size = 0x4, offset = 0x4, fixed_abs, tag = 'smem constant byte address 0x4 - core index']
  #allocation1 [shape = 'u32[144,128]{1,0:T(1,128)}', space=vmem, size = 0x12000, scoped, tag = 'internal scratch']
  %s0 = inlined_call_operand.hbm [shape: f32[2,32,32], index: 0, kind: input, shape index: {}]
  %s1 = inlined_call_operand.hbm [shape: bf16[5,32,192], index: 1, kind: input, shape index: {}]
  %s2 = inlined_call_operand.vmem [shape: f32[1,192], index: 2, kind: input, shape index: {}]
  %s3 = inlined_call_operand.hbm [shape: f32[2,192,96], index: 3, kind: input, shape index: {}]
  %s4 = inlined_call_operand.hbm [shape: f32[2,16,28], index: 4, kind: input, shape index: {}]
  %s5 = inlined_call_operand.hbm [shape: bf16[5,96,256], index: 5, kind: input, shape index: {}]
  %s6 = inlined_call_operand.vmem [shape: f32[1,256], index: 6, kind: input, shape index: {}]
  %s7 = inlined_call_operand.hbm [shape: f32[2,256,128], index: 7, kind: input, shape index: {}]
  %s8 = inlined_call_operand.vmem [shape: f32[2,8,10], index: 8, kind: input, shape index: {}]
  %s9 = inlined_call_operand.hbm [shape: bf16[5,128,128], index: 9, kind: input, shape index: {}]
  %s10 = inlined_call_operand.vmem [shape: f32[1,128], index: 10, kind: input, shape index: {}]
  %s11 = inlined_call_operand.hbm [shape: bf16[128,128], index: 11, kind: input, shape index: {}]
  %s12 = inlined_call_operand.vmem [shape: f32[1,128], index: 12, kind: input, shape index: {}]
  %s13 = inlined_call_operand.hbm [shape: bf16[128,128], index: 13, kind: input, shape index: {}]
  %s14 = inlined_call_operand.vmem [shape: f32[1,128], index: 14, kind: input, shape index: {}]
  %s15 = inlined_call_operand.hbm [shape: f32[2,1,128], index: 15, kind: output, shape index: {}]
  %s16 = sld [smem:[#allocation0]]
  $region129: #{lenet5_forward.1} parent=0
    _
  %s18 = ssub.s32 1, %s16
  %s19 = scalar_select 0, %s18, %s16
  $region1: #{lenet5_forward.1} parent=0
    #allocation2 [shape = 'u8[32768]{0}', space=vmem, size = 0x8000, scoped, tag = 'input window, operand 0']
    #allocation3 [shape = 's32[2]{0}', space=sflag, size = 0x8, scoped, tag = 'scoped memory for lenet5_forward.1']
    #allocation4 [shape = 's32[2]{0}', space=sflag, size = 0x8, scoped, tag = 'scoped memory for lenet5_forward.1']
    #allocation5 [shape = 'u8[81920]{0}', space=vmem, size = 0x14000, scoped, tag = 'input window, operand 1, single buffered']
    #allocation6 [shape = 's32[1]{0}', space=sflag, size = 0x4, scoped, tag = 'scoped memory for lenet5_forward.1']
    #allocation7 [shape = 'u8[196608]{0}', space=vmem, size = 0x30000, scoped, tag = 'input window, operand 3, single buffered']
    #allocation8 [shape = 'u8[16384]{0}', space=vmem, size = 0x4000, scoped, tag = 'input window, operand 4, single buffered']
    #allocation9 [shape = 's32[1]{0}', space=sflag, size = 0x4, scoped, tag = 'scoped memory for lenet5_forward.1']
    #allocation10 [shape = 'u8[245760]{0}', space=vmem, size = 0x3c000, scoped, tag = 'input window, operand 5, single buffered']
    #allocation11 [shape = 'u8[262144]{0}', space=vmem, size = 0x40000, scoped, tag = 'input window, operand 7, single buffered']
    #allocation12 [shape = 's32[1]{0}', space=sflag, size = 0x4, scoped, tag = 'scoped memory for lenet5_forward.1']
    #allocation13 [shape = 'u8[163840]{0}', space=vmem, size = 0x28000, scoped, tag = 'input window, operand 9, single buffered']
    #allocation14 [shape = 'u8[32768]{0}', space=vmem, size = 0x8000, scoped, tag = 'input window, operand 11, single buffered']
    #allocation15 [shape = 's32[1]{0}', space=sflag, size = 0x4, scoped, tag = 'scoped memory for lenet5_forward.1']
    #allocation16 [shape = 'u8[32768]{0}', space=vmem, size = 0x8000, scoped, tag = 'input window, operand 13, single buffered']
    #allocation17 [shape = 'u8[1024]{0}', space=vmem, size = 0x400, scoped, tag = 'output window, operand 0']
    %20 = vsyncpa [#allocation3], 0
    %s21 = scalar_lea.sflag [#allocation3], 1
    %22 = vsyncpa %s21, 0
    %23 = vsyncpa [#allocation6], 0
    %24 = vsyncpa [#allocation9], 0
    %25 = vsyncpa [#allocation12], 0
    %26 = vsyncpa [#allocation15], 0
    %27 = vsyncpa [#allocation4], 0
    %s28 = scalar_lea.sflag [#allocation4], 1
    %29 = vsyncpa %s28, 0
    loop: start=0, step=1, limit=4
    $region2: #{lenet5_forward.1} parent=1 // loop_pre_header
      _
    $region3: #{lenet5_forward.1} parent=1 // loop_header
      %s31 = sphi 0, %s35
      %p32 = scmp.ge.s32.totalorder %s31, 4
      %s41 = sphi 0, %s43
      %s44 = sphi 0, %s41
      %s45 = sphi 0, %s44
      %s61 = sphi 0, %s45
      %s65 = sphi 0, %s65
      %s67 = sphi 0, %s65
      %s68 = sphi 0, %s67
      %s82 = sphi 0, %s68
      %s86 = sphi 0, %s86
      %s88 = sphi 0, %s86
      %s89 = sphi 0, %s88
      %s103 = sphi 0, %s89
      %s107 = sphi 0, %s107
      %s109 = sphi 0, %s107
      %s110 = sphi 0, %s109
      %s124 = sphi 0, %s110
      %s128 = sphi 0, %s128
      %s130 = sphi 0, %s128
      %s131 = sphi 0, %s130
      %s145 = sphi 0, %s131
      %s149 = sphi 0, %s149
      %s151 = sphi 0, %s149
      %s152 = sphi 0, %s151
      %s166 = sphi 0, %s152
      %s170 = sphi 0, %s170
      %s172 = sphi 0, %s170
      %s173 = sphi 0, %s172
      %s187 = sphi 0, %s173
      %s191 = sphi 0, %s191
      %s193 = sphi 0, %s191
      %s194 = sphi 0, %s193
      %s208 = sphi 0, %s194
      %s212 = sphi 0, %s212
      %s214 = sphi 0, %s212
      %s215 = sphi 0, %s214
      %s229 = sphi 0, %s215
      %s233 = sphi 0, %s233
      %s235 = sphi 0, %s233
      %s236 = sphi 0, %s235
      %s250 = sphi 0, %s236
      %s254 = sphi 0, %s254
      %s256 = sphi 0, %s254
      %s257 = sphi 0, %s256
      %s271 = sphi 0, %s257
      %s275 = sphi 0, %s275
      %s277 = sphi 0, %s275
      %s278 = sphi 0, %s277
      %s292 = sphi 0, %s278
      %s296 = sphi 0, %s296
      %s298 = sphi 0, %s296
      %s299 = sphi 0, %s298
      %s313 = sphi 0, %s299
      %s317 = sphi 0, %s317
      %s319 = sphi 0, %s317
      %s320 = sphi 0, %s319
      %s334 = sphi 0, %s320
      %s338 = sphi 0, %s338
      %s340 = sphi 0, %s338
      %s341 = sphi 0, %s340
      %s355 = sphi 0, %s341
      %s361 = sphi 0, %s363
      %s364 = sphi 0, %s361
      %s365 = sphi 0, %s364
      %s381 = sphi 0, %s365
    $region4: #{lenet5_forward.1} parent=1 // loop_header_branch
      %34 = sbr.rel (%p32) target = $region8
    $region5: #{lenet5_forward.1} parent=1 // loop_body
      %s36 = ssub.s32 %s31, 1
      %s37 = ssub.s32 %s31, 2
      %s38 = sadd.s32 %s31, 1
      %s39 = ssub.s32 %s31, %s38
      %p40 = scmp.eq.s32.totalorder %s39, 0
      %s42 = sadd.s32 %s41, 1
      %s43 = scalar_select %p40, %s41, %s42
      %p46 = pneg %p40
      %p47 = scmp.eq.s32.totalorder %s31, 1
      %p48 = por %p46, %p47
      %p49 = scmp.ne.s32.totalorder %s41, %s44
      %p50 = scmp.eq.s32.totalorder %s31, 0
      %p51 = por %p49, %p50
      %p52 = scmp.ne.s32.totalorder %s41, %s44
      %p53 = scmp.eq.s32.totalorder %s36, 1
      %p54 = por %p52, %p53
      %p55 = scmp.ne.s32.totalorder %s44, %s45
      %p56 = scmp.eq.s32.totalorder %s36, 0
      %p57 = por %p55, %p56
      %p58 = scmp.ne.s32.totalorder %s44, %s45
      %p59 = scmp.eq.s32.totalorder %s37, 1
      %p60 = por %p58, %p59
      %p62 = scmp.ne.s32.totalorder %s45, %s61
      %p63 = scmp.eq.s32.totalorder %s37, 0
      %p64 = por %p62, %p63
      %s66 = sadd.s32 %s65, 1
      %p69 = scmp.eq.s32.totalorder %s31, 1
      %p70 = scmp.ne.s32.totalorder %s65, %s67
      %p71 = scmp.eq.s32.totalorder %s31, 0
      %p72 = por %p70, %p71
      %p73 = scmp.ne.s32.totalorder %s65, %s67
      %p74 = scmp.eq.s32.totalorder %s36, 1
      %p75 = por %p73, %p74
      %p76 = scmp.ne.s32.totalorder %s67, %s68
      %p77 = scmp.eq.s32.totalorder %s36, 0
      %p78 = por %p76, %p77
      %p79 = scmp.ne.s32.totalorder %s67, %s68
      %p80 = scmp.eq.s32.totalorder %s37, 1
      %p81 = por %p79, %p80
      %p83 = scmp.ne.s32.totalorder %s68, %s82
      %p84 = scmp.eq.s32.totalorder %s37, 0
      %p85 = por %p83, %p84
      %s87 = sadd.s32 %s86, 1
      %p90 = scmp.eq.s32.totalorder %s31, 1
      %p91 = scmp.ne.s32.totalorder %s86, %s88
      %p92 = scmp.eq.s32.totalorder %s31, 0
      %p93 = por %p91, %p92
      %p94 = scmp.ne.s32.totalorder %s86, %s88
      %p95 = scmp.eq.s32.totalorder %s36, 1
      %p96 = por %p94, %p95
      %p97 = scmp.ne.s32.totalorder %s88, %s89
      %p98 = scmp.eq.s32.totalorder %s36, 0
      %p99 = por %p97, %p98
      %p100 = scmp.ne.s32.totalorder %s88, %s89
      %p101 = scmp.eq.s32.totalorder %s37, 1
      %p102 = por %p100, %p101
      %p104 = scmp.ne.s32.totalorder %s89, %s103
      %p105 = scmp.eq.s32.totalorder %s37, 0
      %p106 = por %p104, %p105
      %s108 = sadd.s32 %s107, 1
      %p111 = scmp.eq.s32.totalorder %s31, 1
      %p112 = scmp.ne.s32.totalorder %s107, %s109
      %p113 = scmp.eq.s32.totalorder %s31, 0
      %p114 = por %p112, %p113
      %p115 = scmp.ne.s32.totalorder %s107, %s109
      %p116 = scmp.eq.s32.totalorder %s36, 1
      %p117 = por %p115, %p116
      %p118 = scmp.ne.s32.totalorder %s109, %s110
      %p119 = scmp.eq.s32.totalorder %s36, 0
      %p120 = por %p118, %p119
      %p121 = scmp.ne.s32.totalorder %s109, %s110
      %p122 = scmp.eq.s32.totalorder %s37, 1
      %p123 = por %p121, %p122
      %p125 = scmp.ne.s32.totalorder %s110, %s124
      %p126 = scmp.eq.s32.totalorder %s37, 0
      %p127 = por %p125, %p126
      %s129 = sadd.s32 %s128, 1
      %p132 = scmp.eq.s32.totalorder %s31, 1
      %p133 = scmp.ne.s32.totalorder %s128, %s130
      %p134 = scmp.eq.s32.totalorder %s31, 0
      %p135 = por %p133, %p134
      %p136 = scmp.ne.s32.totalorder %s128, %s130
      %p137 = scmp.eq.s32.totalorder %s36, 1
      %p138 = por %p136, %p137
      %p139 = scmp.ne.s32.totalorder %s130, %s131
      %p140 = scmp.eq.s32.totalorder %s36, 0
      %p141 = por %p139, %p140
      %p142 = scmp.ne.s32.totalorder %s130, %s131
      %p143 = scmp.eq.s32.totalorder %s37, 1
      %p144 = por %p142, %p143
      %p146 = scmp.ne.s32.totalorder %s131, %s145
      %p147 = scmp.eq.s32.totalorder %s37, 0
      %p148 = por %p146, %p147
      %s150 = sadd.s32 %s149, 1
      %p153 = scmp.eq.s32.totalorder %s31, 1
      %p154 = scmp.ne.s32.totalorder %s149, %s151
      %p155 = scmp.eq.s32.totalorder %s31, 0
      %p156 = por %p154, %p155
      %p157 = scmp.ne.s32.totalorder %s149, %s151
      %p158 = scmp.eq.s32.totalorder %s36, 1
      %p159 = por %p157, %p158
      %p160 = scmp.ne.s32.totalorder %s151, %s152
      %p161 = scmp.eq.s32.totalorder %s36, 0
      %p162 = por %p160, %p161
      %p163 = scmp.ne.s32.totalorder %s151, %s152
      %p164 = scmp.eq.s32.totalorder %s37, 1
      %p165 = por %p163, %p164
      %p167 = scmp.ne.s32.totalorder %s152, %s166
      %p168 = scmp.eq.s32.totalorder %s37, 0
      %p169 = por %p167, %p168
      %s171 = sadd.s32 %s170, 1
      %p174 = scmp.eq.s32.totalorder %s31, 1
      %p175 = scmp.ne.s32.totalorder %s170, %s172
      %p176 = scmp.eq.s32.totalorder %s31, 0
      %p177 = por %p175, %p176
      %p178 = scmp.ne.s32.totalorder %s170, %s172
      %p179 = scmp.eq.s32.totalorder %s36, 1
      %p180 = por %p178, %p179
      %p181 = scmp.ne.s32.totalorder %s172, %s173
      %p182 = scmp.eq.s32.totalorder %s36, 0
      %p183 = por %p181, %p182
      %p184 = scmp.ne.s32.totalorder %s172, %s173
      %p185 = scmp.eq.s32.totalorder %s37, 1
      %p186 = por %p184, %p185
      %p188 = scmp.ne.s32.totalorder %s173, %s187
      %p189 = scmp.eq.s32.totalorder %s37, 0
      %p190 = por %p188, %p189
      %s192 = sadd.s32 %s191, 1
      %p195 = scmp.eq.s32.totalorder %s31, 1
      %p196 = scmp.ne.s32.totalorder %s191, %s193
      %p197 = scmp.eq.s32.totalorder %s31, 0
      %p198 = por %p196, %p197
      %p199 = scmp.ne.s32.totalorder %s191, %s193
      %p200 = scmp.eq.s32.totalorder %s36, 1
      %p201 = por %p199, %p200
      %p202 = scmp.ne.s32.totalorder %s193, %s194
      %p203 = scmp.eq.s32.totalorder %s36, 0
      %p204 = por %p202, %p203
      %p205 = scmp.ne.s32.totalorder %s193, %s194
      %p206 = scmp.eq.s32.totalorder %s37, 1
      %p207 = por %p205, %p206
      %p209 = scmp.ne.s32.totalorder %s194, %s208
      %p210 = scmp.eq.s32.totalorder %s37, 0
      %p211 = por %p209, %p210
      %s213 = sadd.s32 %s212, 1
      %p216 = scmp.eq.s32.totalorder %s31, 1
      %p217 = scmp.ne.s32.totalorder %s212, %s214
      %p218 = scmp.eq.s32.totalorder %s31, 0
      %p219 = por %p217, %p218
      %p220 = scmp.ne.s32.totalorder %s212, %s214
      %p221 = scmp.eq.s32.totalorder %s36, 1
      %p222 = por %p220, %p221
      %p223 = scmp.ne.s32.totalorder %s214, %s215
      %p224 = scmp.eq.s32.totalorder %s36, 0
      %p225 = por %p223, %p224
      %p226 = scmp.ne.s32.totalorder %s214, %s215
      %p227 = scmp.eq.s32.totalorder %s37, 1
      %p228 = por %p226, %p227
      %p230 = scmp.ne.s32.totalorder %s215, %s229
      %p231 = scmp.eq.s32.totalorder %s37, 0
      %p232 = por %p230, %p231
      %s234 = sadd.s32 %s233, 1
      %p237 = scmp.eq.s32.totalorder %s31, 1
      %p238 = scmp.ne.s32.totalorder %s233, %s235
      %p239 = scmp.eq.s32.totalorder %s31, 0
      %p240 = por %p238, %p239
      %p241 = scmp.ne.s32.totalorder %s233, %s235
      %p242 = scmp.eq.s32.totalorder %s36, 1
      %p243 = por %p241, %p242
      %p244 = scmp.ne.s32.totalorder %s235, %s236
      %p245 = scmp.eq.s32.totalorder %s36, 0
      %p246 = por %p244, %p245
      %p247 = scmp.ne.s32.totalorder %s235, %s236
      %p248 = scmp.eq.s32.totalorder %s37, 1
      %p249 = por %p247, %p248
      %p251 = scmp.ne.s32.totalorder %s236, %s250
      %p252 = scmp.eq.s32.totalorder %s37, 0
      %p253 = por %p251, %p252
      %s255 = sadd.s32 %s254, 1
      %p258 = scmp.eq.s32.totalorder %s31, 1
      %p259 = scmp.ne.s32.totalorder %s254, %s256
      %p260 = scmp.eq.s32.totalorder %s31, 0
      %p261 = por %p259, %p260
      %p262 = scmp.ne.s32.totalorder %s254, %s256
      %p263 = scmp.eq.s32.totalorder %s36, 1
      %p264 = por %p262, %p263
      %p265 = scmp.ne.s32.totalorder %s256, %s257
      %p266 = scmp.eq.s32.totalorder %s36, 0
      %p267 = por %p265, %p266
      %p268 = scmp.ne.s32.totalorder %s256, %s257
      %p269 = scmp.eq.s32.totalorder %s37, 1
      %p270 = por %p268, %p269
      %p272 = scmp.ne.s32.totalorder %s257, %s271
      %p273 = scmp.eq.s32.totalorder %s37, 0
      %p274 = por %p272, %p273
      %s276 = sadd.s32 %s275, 1
      %p279 = scmp.eq.s32.totalorder %s31, 1
      %p280 = scmp.ne.s32.totalorder %s275, %s277
      %p281 = scmp.eq.s32.totalorder %s31, 0
      %p282 = por %p280, %p281
      %p283 = scmp.ne.s32.totalorder %s275, %s277
      %p284 = scmp.eq.s32.totalorder %s36, 1
      %p285 = por %p283, %p284
      %p286 = scmp.ne.s32.totalorder %s277, %s278
      %p287 = scmp.eq.s32.totalorder %s36, 0
      %p288 = por %p286, %p287
      %p289 = scmp.ne.s32.totalorder %s277, %s278
      %p290 = scmp.eq.s32.totalorder %s37, 1
      %p291 = por %p289, %p290
      %p293 = scmp.ne.s32.totalorder %s278, %s292
      %p294 = scmp.eq.s32.totalorder %s37, 0
      %p295 = por %p293, %p294
      %s297 = sadd.s32 %s296, 1
      %p300 = scmp.eq.s32.totalorder %s31, 1
      %p301 = scmp.ne.s32.totalorder %s296, %s298
      %p302 = scmp.eq.s32.totalorder %s31, 0
      %p303 = por %p301, %p302
      %p304 = scmp.ne.s32.totalorder %s296, %s298
      %p305 = scmp.eq.s32.totalorder %s36, 1
      %p306 = por %p304, %p305
      %p307 = scmp.ne.s32.totalorder %s298, %s299
      %p308 = scmp.eq.s32.totalorder %s36, 0
      %p309 = por %p307, %p308
      %p310 = scmp.ne.s32.totalorder %s298, %s299
      %p311 = scmp.eq.s32.totalorder %s37, 1
      %p312 = por %p310, %p311
      %p314 = scmp.ne.s32.totalorder %s299, %s313
      %p315 = scmp.eq.s32.totalorder %s37, 0
      %p316 = por %p314, %p315
      %s318 = sadd.s32 %s317, 1
      %p321 = scmp.eq.s32.totalorder %s31, 1
      %p322 = scmp.ne.s32.totalorder %s317, %s319
      %p323 = scmp.eq.s32.totalorder %s31, 0
      %p324 = por %p322, %p323
      %p325 = scmp.ne.s32.totalorder %s317, %s319
      %p326 = scmp.eq.s32.totalorder %s36, 1
      %p327 = por %p325, %p326
      %p328 = scmp.ne.s32.totalorder %s319, %s320
      %p329 = scmp.eq.s32.totalorder %s36, 0
      %p330 = por %p328, %p329
      %p331 = scmp.ne.s32.totalorder %s319, %s320
      %p332 = scmp.eq.s32.totalorder %s37, 1
      %p333 = por %p331, %p332
      %p335 = scmp.ne.s32.totalorder %s320, %s334
      %p336 = scmp.eq.s32.totalorder %s37, 0
      %p337 = por %p335, %p336
      %s339 = sadd.s32 %s338, 1
      %p342 = scmp.eq.s32.totalorder %s31, 1
      %p343 = scmp.ne.s32.totalorder %s338, %s340
      %p344 = scmp.eq.s32.totalorder %s31, 0
      %p345 = por %p343, %p344
      %p346 = scmp.ne.s32.totalorder %s338, %s340
      %p347 = scmp.eq.s32.totalorder %s36, 1
      %p348 = por %p346, %p347
      %p349 = scmp.ne.s32.totalorder %s340, %s341
      %p350 = scmp.eq.s32.totalorder %s36, 0
      %p351 = por %p349, %p350
      %p352 = scmp.ne.s32.totalorder %s340, %s341
      %p353 = scmp.eq.s32.totalorder %s37, 1
      %p354 = por %p352, %p353
      %p356 = scmp.ne.s32.totalorder %s341, %s355
      %p357 = scmp.eq.s32.totalorder %s37, 0
      %p358 = por %p356, %p357
      %s359 = ssub.s32 %s31, %s38
      %p360 = scmp.eq.s32.totalorder %s359, 0
      %s362 = sadd.s32 %s361, 1
      %s363 = scalar_select %p360, %s361, %s362
      %p366 = pneg %p360
      %p367 = scmp.eq.s32.totalorder %s31, 1
      %p368 = por %p366, %p367
      %p369 = scmp.ne.s32.totalorder %s361, %s364
      %p370 = scmp.eq.s32.totalorder %s31, 0
      %p371 = por %p369, %p370
      %p372 = scmp.ne.s32.totalorder %s361, %s364
      %p373 = scmp.eq.s32.totalorder %s36, 1
      %p374 = por %p372, %p373
      %p375 = scmp.ne.s32.totalorder %s364, %s365
      %p376 = scmp.eq.s32.totalorder %s36, 0
      %p377 = por %p375, %p376
      %p378 = scmp.ne.s32.totalorder %s364, %s365
      %p379 = scmp.eq.s32.totalorder %s37, 1
      %p380 = por %p378, %p379
      %p382 = scmp.ne.s32.totalorder %s365, %s381
      %p383 = scmp.eq.s32.totalorder %s37, 0
      %p384 = por %p382, %p383
      %p385 = scmp.le.s32.totalorder 1, %s31
      %p386 = scmp.lt.s32.totalorder %s31, 3
      %p387 = pnand %p385, %p386
      %p388 = pneg %p387
      // Predicated region
      $region9: #{lenet5_forward.1} parent=5 // pred_check
        _
      $region10: #{lenet5_forward.1} parent=5 // pred_check_branch
        %390 = sbr.rel (%p387) target = $region12
      $region11: #{lenet5_forward.1} parent=5 // pred_region
        %s391 = ssub.s32 %s31, 1
        // Predicated region
        $region13: #{lenet5_forward.1} parent=11 // pred_check
          %p392 = pneg %p78
        $region14: #{lenet5_forward.1} parent=11 // pred_check_branch
          %394 = sbr.rel (%p392) target = $region16
        $region15: #{lenet5_forward.1} parent=11 // pred_region
          %s396 = ssub.s32 2560, 2560
          %397 = vsyncadd [#allocation6], %s396
          %s398 = sshll.u32 [#allocation5], 4
          %s399 = int_to_ptr.vmem [resolvable:$true] %s398
          %404 = dma.hbm_to_vmem [thread:$0]  %s1, 2560, %s399, [#allocation6], 128, 128, 8
        $region16: #{lenet5_forward.1} parent=11 // pred_fallthru
          _
        // Predicated region
        $region17: #{lenet5_forward.1} parent=11 // pred_check
          %p405 = pneg %p99
        $region18: #{lenet5_forward.1} parent=11 // pred_check_branch
          %407 = sbr.rel (%p405) target = $region20
        $region19: #{lenet5_forward.1} parent=11 // pred_region
          _
        $region20: #{lenet5_forward.1} parent=11 // pred_fallthru
          _
        // Predicated region
        $region21: #{lenet5_forward.1} parent=11 // pred_check
          %p408 = pneg %p120
        $region22: #{lenet5_forward.1} parent=11 // pred_check_branch
          %410 = sbr.rel (%p408) target = $region24
        $region23: #{lenet5_forward.1} parent=11 // pred_region
          %s412 = ssub.s32 6144, 6144
          %413 = vsyncadd [#allocation6], %s412
          %s414 = sshll.u32 [#allocation7], 4
          %s415 = int_to_ptr.vmem [resolvable:$true] %s414
          %420 = dma.hbm_to_vmem [thread:$0]  %s3, 6144, %s415, [#allocation6], 128, 128, 8
        $region24: #{lenet5_forward.1} parent=11 // pred_fallthru
          _
        // Predicated region
        $region25: #{lenet5_forward.1} parent=11 // pred_check
          %p421 = pneg %p141
        $region26: #{lenet5_forward.1} parent=11 // pred_check_branch
          %423 = sbr.rel (%p421) target = $region28
        $region27: #{lenet5_forward.1} parent=11 // pred_region
          %s425 = ssub.s32 512, 512
          %426 = vsyncadd [#allocation9], %s425
          %s427 = sshll.u32 [#allocation8], 4
          %s428 = int_to_ptr.vmem [resolvable:$true] %s427
          %433 = dma.hbm_to_vmem [thread:$0]  %s4, 512, %s428, [#allocation9], 128, 128, 8
        $region28: #{lenet5_forward.1} parent=11 // pred_fallthru
          _
        // Predicated region
        $region29: #{lenet5_forward.1} parent=11 // pred_check
          %p434 = pneg %p162
        $region30: #{lenet5_forward.1} parent=11 // pred_check_branch
          %436 = sbr.rel (%p434) target = $region32
        $region31: #{lenet5_forward.1} parent=11 // pred_region
          %s438 = ssub.s32 7680, 7680
          %439 = vsyncadd [#allocation9], %s438
          %s440 = sshll.u32 [#allocation10], 4
          %s441 = int_to_ptr.vmem [resolvable:$true] %s440
          %446 = dma.hbm_to_vmem [thread:$0]  %s5, 7680, %s441, [#allocation9], 128, 128, 8
        $region32: #{lenet5_forward.1} parent=11 // pred_fallthru
          _
        // Predicated region
        $region33: #{lenet5_forward.1} parent=11 // pred_check
          %p447 = pneg %p183
        $region34: #{lenet5_forward.1} parent=11 // pred_check_branch
          %449 = sbr.rel (%p447) target = $region36
        $region35: #{lenet5_forward.1} parent=11 // pred_region
          _
        $region36: #{lenet5_forward.1} parent=11 // pred_fallthru
          _
        // Predicated region
        $region37: #{lenet5_forward.1} parent=11 // pred_check
          %p450 = pneg %p204
        $region38: #{lenet5_forward.1} parent=11 // pred_check_branch
          %452 = sbr.rel (%p450) target = $region40
        $region39: #{lenet5_forward.1} parent=11 // pred_region
          %s454 = ssub.s32 8192, 8192
          %455 = vsyncadd [#allocation12], %s454
          %s456 = sshll.u32 [#allocation11], 4
          %s457 = int_to_ptr.vmem [resolvable:$true] %s456
          %462 = dma.hbm_to_vmem [thread:$0]  %s7, 8192, %s457, [#allocation12], 128, 128, 8
        $region40: #{lenet5_forward.1} parent=11 // pred_fallthru
          _
        // Predicated region
        $region41: #{lenet5_forward.1} parent=11 // pred_check
          %p463 = pneg %p225
        $region42: #{lenet5_forward.1} parent=11 // pred_check_branch
          %465 = sbr.rel (%p463) target = $region44
        $region43: #{lenet5_forward.1} parent=11 // pred_region
          _
        $region44: #{lenet5_forward.1} parent=11 // pred_fallthru
          _
        // Predicated region
        $region45: #{lenet5_forward.1} parent=11 // pred_check
          %p466 = pneg %p246
        $region46: #{lenet5_forward.1} parent=11 // pred_check_branch
          %468 = sbr.rel (%p466) target = $region48
        $region47: #{lenet5_forward.1} parent=11 // pred_region
          %s470 = ssub.s32 5120, 5120
          %471 = vsyncadd [#allocation12], %s470
          %s472 = sshll.u32 [#allocation13], 4
          %s473 = int_to_ptr.vmem [resolvable:$true] %s472
          %478 = dma.hbm_to_vmem [thread:$0]  %s9, 5120, %s473, [#allocation12], 64, 64, 4
        $region48: #{lenet5_forward.1} parent=11 // pred_fallthru
          _
        // Predicated region
        $region49: #{lenet5_forward.1} parent=11 // pred_check
          %p479 = pneg %p267
        $region50: #{lenet5_forward.1} parent=11 // pred_check_branch
          %481 = sbr.rel (%p479) target = $region52
        $region51: #{lenet5_forward.1} parent=11 // pred_region
          _
        $region52: #{lenet5_forward.1} parent=11 // pred_fallthru
          _
        // Predicated region
        $region53: #{lenet5_forward.1} parent=11 // pred_check
          %p482 = pneg %p288
        $region54: #{lenet5_forward.1} parent=11 // pred_check_branch
          %484 = sbr.rel (%p482) target = $region56
        $region55: #{lenet5_forward.1} parent=11 // pred_region
          %s486 = ssub.s32 1024, 1024
          %487 = vsyncadd [#allocation15], %s486
          %s488 = sshll.u32 [#allocation14], 4
          %s489 = int_to_ptr.vmem [resolvable:$true] %s488
          %494 = dma.hbm_to_vmem [thread:$0]  %s11, 1024, %s489, [#allocation15], 64, 64, 4
        $region56: #{lenet5_forward.1} parent=11 // pred_fallthru
          _
        // Predicated region
        $region57: #{lenet5_forward.1} parent=11 // pred_check
          %p495 = pneg %p309
        $region58: #{lenet5_forward.1} parent=11 // pred_check_branch
          %497 = sbr.rel (%p495) target = $region60
        $region59: #{lenet5_forward.1} parent=11 // pred_region
          _
        $region60: #{lenet5_forward.1} parent=11 // pred_fallthru
          _
        // Predicated region
        $region61: #{lenet5_forward.1} parent=11 // pred_check
          %p498 = pneg %p330
        $region62: #{lenet5_forward.1} parent=11 // pred_check_branch
          %500 = sbr.rel (%p498) target = $region64
        $region63: #{lenet5_forward.1} parent=11 // pred_region
          %s502 = ssub.s32 1024, 1024
          %503 = vsyncadd [#allocation15], %s502
          %s504 = sshll.u32 [#allocation16], 4
          %s505 = int_to_ptr.vmem [resolvable:$true] %s504
          %510 = dma.hbm_to_vmem [thread:$0]  %s13, 1024, %s505, [#allocation15], 64, 64, 4
        $region64: #{lenet5_forward.1} parent=11 // pred_fallthru
          _
        // Predicated region
        $region65: #{lenet5_forward.1} parent=11 // pred_check
          %p511 = pneg %p351
        $region66: #{lenet5_forward.1} parent=11 // pred_check_branch
          %513 = sbr.rel (%p511) target = $region68
        $region67: #{lenet5_forward.1} parent=11 // pred_region
          _
        $region68: #{lenet5_forward.1} parent=11 // pred_fallthru
          _
      $region12: #{lenet5_forward.1} parent=5 // pred_fallthru
        _
      %p514 = scmp.lt.s32.totalorder %s31, 2
      // Predicated region
      $region69: #{lenet5_forward.1} parent=5 // pred_check
        %p515 = pneg %p514
      $region70: #{lenet5_forward.1} parent=5 // pred_check_branch
        %517 = sbr.rel (%p515) target = $region72
      $region71: #{lenet5_forward.1} parent=5 // pred_region
        // Predicated region
        $region73: #{lenet5_forward.1} parent=71 // pred_check
          %p518 = pneg %p51
        $region74: #{lenet5_forward.1} parent=71 // pred_check_branch
          %520 = sbr.rel (%p518) target = $region76
        $region75: #{lenet5_forward.1} parent=71 // pred_region
          %s521 = sand.u32 %s41, 1
          %s522 = scalar_lea.sflag [#allocation3], %s521
          %s523 = sand.u32 %s41, 1
          %s524 = smul.addr %s523, 32
          %s525 = scalar_lea.vmem [#allocation2], %s524
          %s527 = ssub.s32 512, 512
          %528 = vsyncadd %s522, %s527
          %s529 = smul.addr %s31, 4
          %s530 = smul.addr %s529, 128
          %s531 = scalar_lea.hbm %s0, %s530
          %s532 = sshll.u32 %s525, 4
          %s533 = int_to_ptr.vmem [resolvable:$true] %s532
          %538 = dma.hbm_to_vmem [thread:$0]  %s531, 512, %s533, %s522, 128, 128, 8
        $region76: #{lenet5_forward.1} parent=71 // pred_fallthru
          _
      $region72: #{lenet5_forward.1} parent=5 // pred_fallthru
        _
      %p539 = scmp.le.s32.totalorder 1, %s31
      %p540 = scmp.lt.s32.totalorder %s31, 3
      %p541 = pnand %p539, %p540
      %p542 = pneg %p541
      // Predicated region
      $region77: #{lenet5_forward.1} parent=5 // pred_check
        _
      $region78: #{lenet5_forward.1} parent=5 // pred_check_branch
        %544 = sbr.rel (%p541) target = $region80
      $region79: #{lenet5_forward.1} parent=5 // pred_region
        %s545 = ssub.s32 %s31, 1
        %s546 = sand.u32 %s44, 1
        %s547 = scalar_lea.sflag [#allocation3], %s546
        %s548 = sand.u32 %s44, 1
        %s549 = smul.addr %s548, 32
        %s550 = scalar_lea.vmem [#allocation2], %s549
        // Predicated region
        $region81: #{lenet5_forward.1} parent=79 // pred_check
          %p551 = pneg %p57
        $region82: #{lenet5_forward.1} parent=79 // pred_check_branch
          %553 = sbr.rel (%p551) target = $region84
        $region83: #{lenet5_forward.1} parent=79 // pred_region
          %554 = dma.done %s547, 512
        $region84: #{lenet5_forward.1} parent=79 // pred_fallthru
          _
        // Predicated region
        $region85: #{lenet5_forward.1} parent=79 // pred_check
          %p555 = pneg %p78
        $region86: #{lenet5_forward.1} parent=79 // pred_check_branch
          %557 = sbr.rel (%p555) target = $region88
        $region87: #{lenet5_forward.1} parent=79 // pred_region
          %558 = dma.done [#allocation6], 2560
        $region88: #{lenet5_forward.1} parent=79 // pred_fallthru
          _
        // Predicated region
        $region89: #{lenet5_forward.1} parent=79 // pred_check
          %p559 = pneg %p120
        $region90: #{lenet5_forward.1} parent=79 // pred_check_branch
          %561 = sbr.rel (%p559) target = $region92
        $region91: #{lenet5_forward.1} parent=79 // pred_region
          %562 = dma.done [#allocation6], 6144
        $region92: #{lenet5_forward.1} parent=79 // pred_fallthru
          _
        // Predicated region
        $region93: #{lenet5_forward.1} parent=79 // pred_check
          %p563 = pneg %p141
        $region94: #{lenet5_forward.1} parent=79 // pred_check_branch
          %565 = sbr.rel (%p563) target = $region96
        $region95: #{lenet5_forward.1} parent=79 // pred_region
          %566 = dma.done [#allocation9], 512
        $region96: #{lenet5_forward.1} parent=79 // pred_fallthru
          _
        // Predicated region
        $region97: #{lenet5_forward.1} parent=79 // pred_check
          %p567 = pneg %p162
        $region98: #{lenet5_forward.1} parent=79 // pred_check_branch
          %569 = sbr.rel (%p567) target = $region100
        $region99: #{lenet5_forward.1} parent=79 // pred_region
          %570 = dma.done [#allocation9], 7680
        $region100: #{lenet5_forward.1} parent=79 // pred_fallthru
          _
        // Predicated region
        $region101: #{lenet5_forward.1} parent=79 // pred_check
          %p571 = pneg %p204
        $region102: #{lenet5_forward.1} parent=79 // pred_check_branch
          %573 = sbr.rel (%p571) target = $region104
        $region103: #{lenet5_forward.1} parent=79 // pred_region
          %574 = dma.done [#allocation12], 8192
        $region104: #{lenet5_forward.1} parent=79 // pred_fallthru
          _
        // Predicated region
        $region105: #{lenet5_forward.1} parent=79 // pred_check
          %p575 = pneg %p246
        $region106: #{lenet5_forward.1} parent=79 // pred_check_branch
          %577 = sbr.rel (%p575) target = $region108
        $region107: #{lenet5_forward.1} parent=79 // pred_region
          %578 = dma.done [#allocation12], 5120
        $region108: #{lenet5_forward.1} parent=79 // pred_fallthru
          _
        // Predicated region
        $region109: #{lenet5_forward.1} parent=79 // pred_check
          %p579 = pneg %p288
        $region110: #{lenet5_forward.1} parent=79 // pred_check_branch
          %581 = sbr.rel (%p579) target = $region112
        $region111: #{lenet5_forward.1} parent=79 // pred_region
          %582 = dma.done [#allocation15], 1024
        $region112: #{lenet5_forward.1} parent=79 // pred_fallthru
          _
        // Predicated region
        $region113: #{lenet5_forward.1} parent=79 // pred_check
          %p583 = pneg %p330
        $region114: #{lenet5_forward.1} parent=79 // pred_check_branch
          %585 = sbr.rel (%p583) target = $region116
        $region115: #{lenet5_forward.1} parent=79 // pred_region
          %586 = dma.done [#allocation15], 1024
        $region116: #{lenet5_forward.1} parent=79 // pred_fallthru
          _
        %s587 = sand.u32 %s44, 1
        %s588 = scalar_lea.sflag [#allocation3], %s587
        %s589 = sand.u32 %s44, 1
        %s590 = smul.addr %s589, 32
        %s591 = scalar_lea.vmem [#allocation2], %s590
        %p592 = pneg %p57
        %p593 = pneg %p54
        %p594 = pneg %p78
        %p595 = pneg %p75
        %p596 = pneg %p99
        %p597 = pneg %p96
        %p598 = pneg %p120
        %p599 = pneg %p117
        %p600 = pneg %p141
        %p601 = pneg %p138
        %p602 = pneg %p162
        %p603 = pneg %p159
        %p604 = pneg %p183
        %p605 = pneg %p180
        %p606 = pneg %p204
        %p607 = pneg %p201
        %p608 = pneg %p225
        %p609 = pneg %p222
        %p610 = pneg %p246
        %p611 = pneg %p243
        %p612 = pneg %p267
        %p613 = pneg %p264
        %p614 = pneg %p288
        %p615 = pneg %p285
        %p616 = pneg %p309
        %p617 = pneg %p306
        %p618 = pneg %p330
        %p619 = pneg %p327
        %p620 = pneg %p351
        %p621 = pneg %p348
        %p622 = pneg %p377
        %p623 = pneg %p374
        %s624 = sand.u32 %s364, 1
        %s625 = scalar_lea.sflag [#allocation4], %s624
        %s626 = sand.u32 %s364, 1
        %s627 = scalar_lea.vmem [#allocation17], %s626
        %v629 = vld [vmem:[%s550] sm:$0xff]
        %v630 = vld [vmem:[%s550 + $0x8] sm:$0xff]
        %v631 = vld [vmem:[%s550 + $0x10] sm:$0xff]
        %v632 = vld [vmem:[%s550 + $0x18] sm:$0xff]
        %v633 = vld [vmem:[%s2] sm:$0x3]
        %v634 = vld [vmem:[#allocation5] sm:$0xff]
        %v635 = vld [vmem:[#allocation5 + $0x8] sm:$0xff]
        %v636 = vld [vmem:[#allocation5 + $0x10] sm:$0xff]
        %v637 = vld [vmem:[#allocation5 + $0x18] sm:$0xff]
        %v638 = vpack.c.bf16 %v630, %v629
        %v639 = vpack.c.bf16 %v632, %v631
        %v644 = vunpack.c.l.b16 %v634
        %v645 = vunpack.c.h.b16 %v634
        %v646 = vunpack.c.l.b16 %v635
        %v647 = vunpack.c.h.b16 %v635
        %v648 = vunpack.c.l.b16 %v636
        %v649 = vunpack.c.h.b16 %v636
        %v650 = vunpack.c.l.b16 %v637
        %v651 = vunpack.c.h.b16 %v637
        %v652 = vpack.c.b16 %v646, %v644
        %v653 = vpack.c.b16 %v647, %v645
        %v654 = vpack.c.b16 %v650, %v648
        %v655 = vpack.c.b16 %v651, %v649
        %vm660 = vcmask 261120
        %v662 = vsel %vm660, %v638, 0
        %v665 = vsel %vm660, %v639, 0
        %667 = vmatprep.subr.bf16.mxu0 %v653
        %668 = vmatpush1.bf16.msra.mxu0 %v652
        %669 = vmatprep.subr.bf16.mxu0 %v655
        %670 = vmatpush1.bf16.msra.mxu0 %v654
        %671 = vmatprep.subr.bf16.mxu0 0
        %672 = vmatpush1.bf16.msra.mxu0 0
        %673 = vmatprep.subr.bf16.mxu0 0
        %674 = vmatpush1.bf16.msra.mxu0 0
        %675 = vmatprep.subr.bf16.mxu0 0
        %676 = vmatpush1.bf16.msra.mxu0 0
        %677 = vmatprep.subr.bf16.mxu0 0
        %678 = vmatpush1.bf16.msra.mxu0 0
        %679 = vmatprep.subr.bf16.mxu0 0
        %680 = vmatpush1.bf16.msra.mxu0 0
        %681 = vmatprep.subr.bf16.mxu0 0
        %682 = vmatpush1.bf16.msra.mxu0 0
        %683 = vmatprep.subr.bf16.mxu0 0
        %684 = vmatpush1.bf16.msra.mxu0 0
        %685 = vmatprep.subr.bf16.mxu0 0
        %686 = vmatpush1.bf16.msra.mxu0 0
        %687 = vmatprep.subr.bf16.mxu0 0
        %688 = vmatpush1.bf16.msra.mxu0 0
        %689 = vmatprep.subr.bf16.mxu0 0
        %690 = vmatpush1.bf16.msra.mxu0 0
        %691 = vmatprep.subr.bf16.mxu0 0
        %692 = vmatpush1.bf16.msra.mxu0 0
        %693 = vmatprep.subr.bf16.mxu0 0
        %694 = vmatpush1.bf16.msra.mxu0 0
        %695 = vmatprep.subr.bf16.mxu0 0
        %696 = vmatpush1.bf16.msra.mxu0 0
        %697 = vmatprep.subr.bf16.mxu0 0
        %698 = vmatpush1.bf16.msra.mxu0 0
        %699 = vmatprep.mubr.bf16.mxu0 0
        %700 = vmatmul.mubr.bf16.gmra.mrb[0].mxu0 %v662
        %v701 = vpop.f32.mrb[0].mxu0
        %v702 = vadd.f32 0.0, %v701
        %v703 = vpop.f32.mrb[0].mxu0
        %v704 = vadd.f32 0.0, %v703
        %v705 = vpop.f32.mrb[0].mxu0
        %v706 = vadd.f32 0.0, %v705
        %v707 = vpop.f32.mrb[0].mxu0
        %v708 = vadd.f32 0.0, %v707
        %709 = vmatprep.mubr.bf16.mxu0 0
        %710 = vmatmul.mubr.bf16.gmra.mrb[0].mxu0 %v665
        %v711 = vpop.f32.mrb[0].mxu0
        %v712 = vadd.f32 0.0, %v711
        %v713 = vpop.f32.mrb[0].mxu0
        %v714 = vadd.f32 0.0, %v713
        %v715 = vpop.f32.mrb[0].mxu0
        %v716 = vadd.f32 0.0, %v715
        %v717 = vpop.f32.mrb[0].mxu0
        %v718 = vadd.f32 0.0, %v717
        %719 = vdwg.mxu0
        %v721 = vlaneseq
        %v722 = vshrl.u32 %v721, 7
        %v723 = vsub.s32 0, %v722
        %v724 = vrot.slane %v633, %v723
        %v725 = vlaneseq
        %v726 = vshrl.u32 %v725, 7
        %v727 = vsub.s32 1, %v726
        %v728 = vrot.slane %v633, %v727
        %v731 = vadd.f32 %v724, %v702
        %v732 = vadd.f32 %v728, %v704
        %v733 = vadd.f32 %v724, %v706
        %v734 = vadd.f32 %v728, %v708
        %v735 = vadd.f32 %v724, %v712
        %v736 = vadd.f32 %v728, %v714
        %v737 = vadd.f32 %v724, %v716
        %v738 = vadd.f32 %v728, %v718
        %s739 = scalar_lea.vmem [#allocation5], 32
        %v740 = vld [vmem:[%s739] sm:$0xff]
        %v741 = vld [vmem:[%s739 + $0x8] sm:$0xff]
        %v742 = vld [vmem:[%s739 + $0x10] sm:$0xff]
        %v743 = vld [vmem:[%s739 + $0x18] sm:$0xff]
        %vm744 = vsmask.f32 7424
        %v745 = vshrl.u32 %v638, 16
        %v747 = vshll.u32 %v638, 16
        %v749 = vrot.slane %v747, 1
        %v750 = vor.u32 %v745, %v749
        %v751 = vshll.u32 %v639, 16
        %v753 = vrot.slane %v751, 1
        %v754 = vsel %vm744, %v750, %v753
        %v755 = vshrl.u32 %v639, 16
        %v757 = vor.u32 %v755, %v753
        %v762 = vunpack.c.l.b16 %v740
        %v763 = vunpack.c.h.b16 %v740
        %v764 = vunpack.c.l.b16 %v741
        %v765 = vunpack.c.h.b16 %v741
        %v766 = vunpack.c.l.b16 %v742
        %v767 = vunpack.c.h.b16 %v742
        %v768 = vunpack.c.l.b16 %v743
        %v769 = vunpack.c.h.b16 %v743
        %v770 = vpack.c.b16 %v764, %v762
        %v771 = vpack.c.b16 %v765, %v763
        %v772 = vpack.c.b16 %v768, %v766
        %v773 = vpack.c.b16 %v769, %v767
        %v779 = vsel %vm660, %v754, 0
        %v782 = vsel %vm660, %v757, 0
        %784 = vmatprep.subr.bf16.mxu0 %v771
        %785 = vmatpush1.bf16.msra.mxu0 %v770
        %786 = vmatprep.subr.bf16.mxu0 %v773
        %787 = vmatpush1.bf16.msra.mxu0 %v772
        %788 = vmatprep.subr.bf16.mxu0 0
        %789 = vmatpush1.bf16.msra.mxu0 0
        %790 = vmatprep.subr.bf16.mxu0 0
        %791 = vmatpush1.bf16.msra.mxu0 0
        %792 = vmatprep.subr.bf16.mxu0 0
        %793 = vmatpush1.bf16.msra.mxu0 0
        %794 = vmatprep.subr.bf16.mxu0 0
        %795 = vmatpush1.bf16.msra.mxu0 0
        %796 = vmatprep.subr.bf16.mxu0 0
        %797 = vmatpush1.bf16.msra.mxu0 0
        %798 = vmatprep.subr.bf16.mxu0 0
        %799 = vmatpush1.bf16.msra.mxu0 0
        %800 = vmatprep.subr.bf16.mxu0 0
        %801 = vmatpush1.bf16.msra.mxu0 0
        %802 = vmatprep.subr.bf16.mxu0 0
        %803 = vmatpush1.bf16.msra.mxu0 0
        %804 = vmatprep.subr.bf16.mxu0 0
        %805 = vmatpush1.bf16.msra.mxu0 0
        %806 = vmatprep.subr.bf16.mxu0 0
        %807 = vmatpush1.bf16.msra.mxu0 0
        %808 = vmatprep.subr.bf16.mxu0 0
        %809 = vmatpush1.bf16.msra.mxu0 0
        %810 = vmatprep.subr.bf16.mxu0 0
        %811 = vmatpush1.bf16.msra.mxu0 0
        %812 = vmatprep.subr.bf16.mxu0 0
        %813 = vmatpush1.bf16.msra.mxu0 0
        %814 = vmatprep.subr.bf16.mxu0 0
        %815 = vmatpush1.bf16.msra.mxu0 0
        %816 = vmatprep.mubr.bf16.mxu0 0
        %817 = vmatmul.mubr.bf16.gmra.mrb[0].mxu0 %v779
        %v818 = vpop.f32.mrb[0].mxu0
        %v819 = vadd.f32 0.0, %v818
        %v820 = vpop.f32.mrb[0].mxu0
        %v821 = vadd.f32 0.0, %v820
        %v822 = vpop.f32.mrb[0].mxu0
        %v823 = vadd.f32 0.0, %v822
        %v824 = vpop.f32.mrb[0].mxu0
        %v825 = vadd.f32 0.0, %v824
        %826 = vmatprep.mubr.bf16.mxu0 0
        %827 = vmatmul.mubr.bf16.gmra.mrb[0].mxu0 %v782
        %v828 = vpop.f32.mrb[0].mxu0
        %v829 = vadd.f32 0.0, %v828
        %v830 = vpop.f32.mrb[0].mxu0
        %v831 = vadd.f32 0.0, %v830
        %v832 = vpop.f32.mrb[0].mxu0
        %v833 = vadd.f32 0.0, %v832
        %v834 = vpop.f32.mrb[0].mxu0
        %v835 = vadd.f32 0.0, %v834
        %836 = vdwg.mxu0
        %v837 = vadd.f32 %v731, %v819
        %v838 = vadd.f32 %v732, %v821
        %v839 = vadd.f32 %v733, %v823
        %v840 = vadd.f32 %v734, %v825
        %v841 = vadd.f32 %v735, %v829
        %v842 = vadd.f32 %v736, %v831
        %v843 = vadd.f32 %v737, %v833
        %v844 = vadd.f32 %v738, %v835
        %s845 = scalar_lea.vmem [#allocation5], 64
        %v846 = vld [vmem:[%s845] sm:$0xff]
        %v847 = vld [vmem:[%s845 + $0x8] sm:$0xff]
        %v848 = vld [vmem:[%s845 + $0x10] sm:$0xff]
        %v849 = vld [vmem:[%s845 + $0x18] sm:$0xff]
        %vm852 = vcmask 1046528
        %v853 = vrot.slane %v638, 1
        %v854 = vrot.slane %v639, 1
        %v855 = vsel %vm852, %v853, %v854
        %v860 = vunpack.c.l.b16 %v846
        %v861 = vunpack.c.h.b16 %v846
        %v862 = vunpack.c.l.b16 %v847
        %v863 = vunpack.c.h.b16 %v847
        %v864 = vunpack.c.l.b16 %v848
        %v865 = vunpack.c.h.b16 %v848
        %v866 = vunpack.c.l.b16 %v849
        %v867 = vunpack.c.h.b16 %v849
        %v868 = vpack.c.b16 %v862, %v860
        %v869 = vpack.c.b16 %v863, %v861
        %v870 = vpack.c.b16 %v866, %v864
        %v871 = vpack.c.b16 %v867, %v865
        %v877 = vsel %vm660, %v855, 0
        %v880 = vsel %vm660, %v854, 0
        %882 = vmatprep.subr.bf16.mxu0 %v869
        %883 = vmatpush1.bf16.msra.mxu0 %v868
        %884 = vmatprep.subr.bf16.mxu0 %v871
        %885 = vmatpush1.bf16.msra.mxu0 %v870
        %886 = vmatprep.subr.bf16.mxu0 0
        %887 = vmatpush1.bf16.msra.mxu0 0
        %888 = vmatprep.subr.bf16.mxu0 0
        %889 = vmatpush1.bf16.msra.mxu0 0
        %890 = vmatprep.subr.bf16.mxu0 0
        %891 = vmatpush1.bf16.msra.mxu0 0
        %892 = vmatprep.subr.bf16.mxu0 0
        %893 = vmatpush1.bf16.msra.mxu0 0
        %894 = vmatprep.subr.bf16.mxu0 0
        %895 = vmatpush1.bf16.msra.mxu0 0
        %896 = vmatprep.subr.bf16.mxu0 0
        %897 = vmatpush1.bf16.msra.mxu0 0
        %898 = vmatprep.subr.bf16.mxu0 0
        %899 = vmatpush1.bf16.msra.mxu0 0
        %900 = vmatprep.subr.bf16.mxu0 0
        %901 = vmatpush1.bf16.msra.mxu0 0
        %902 = vmatprep.subr.bf16.mxu0 0
        %903 = vmatpush1.bf16.msra.mxu0 0
        %904 = vmatprep.subr.bf16.mxu0 0
        %905 = vmatpush1.bf16.msra.mxu0 0
        %906 = vmatprep.subr.bf16.mxu0 0
        %907 = vmatpush1.bf16.msra.mxu0 0
        %908 = vmatprep.subr.bf16.mxu0 0
        %909 = vmatpush1.bf16.msra.mxu0 0
        %910 = vmatprep.subr.bf16.mxu0 0
        %911 = vmatpush1.bf16.msra.mxu0 0
        %912 = vmatprep.subr.bf16.mxu0 0
        %913 = vmatpush1.bf16.msra.mxu0 0
        %914 = vmatprep.mubr.bf16.mxu0 0
        %915 = vmatmul.mubr.bf16.gmra.mrb[0].mxu0 %v877
        %v916 = vpop.f32.mrb[0].mxu0
        %v917 = vadd.f32 0.0, %v916
        %v918 = vpop.f32.mrb[0].mxu0
        %v919 = vadd.f32 0.0, %v918
        %v920 = vpop.f32.mrb[0].mxu0
        %v921 = vadd.f32 0.0, %v920
        %v922 = vpop.f32.mrb[0].mxu0
        %v923 = vadd.f32 0.0, %v922
        %924 = vmatprep.mubr.bf16.mxu0 0
        %925 = vmatmul.mubr.bf16.gmra.mrb[0].mxu0 %v880
        %v926 = vpop.f32.mrb[0].mxu0
        %v927 = vadd.f32 0.0, %v926
        %v928 = vpop.f32.mrb[0].mxu0
        %v929 = vadd.f32 0.0, %v928
        %v930 = vpop.f32.mrb[0].mxu0
        %v931 = vadd.f32 0.0, %v930
        %v932 = vpop.f32.mrb[0].mxu0
        %v933 = vadd.f32 0.0, %v932
        %934 = vdwg.mxu0
        %v935 = vadd.f32 %v837, %v917
        %v936 = vadd.f32 %v838, %v919
        %v937 = vadd.f32 %v839, %v921
        %v938 = vadd.f32 %v840, %v923
        %v939 = vadd.f32 %v841, %v927
        %v940 = vadd.f32 %v842, %v929
        %v941 = vadd.f32 %v843, %v931
        %v942 = vadd.f32 %v844, %v933
        %s943 = scalar_lea.vmem [#allocation5], 96
        %v944 = vld [vmem:[%s943] sm:$0xff]
        %v945 = vld [vmem:[%s943 + $0x8] sm:$0xff]
        %v946 = vld [vmem:[%s943 + $0x10] sm:$0xff]
        %v947 = vld [vmem:[%s943 + $0x18] sm:$0xff]
        %vm948 = vsmask.f32 6400
        %v949 = vrot.slane %v745, 1
        %v950 = vrot.slane %v747, 2
        %v951 = vor.u32 %v949, %v950
        %v952 = vrot.slane %v755, 1
        %v953 = vrot.slane %v751, 2
        %v954 = vor.u32 %v952, %v953
        %v955 = vsel %vm948, %v951, %v954
        %v960 = vunpack.c.l.b16 %v944
        %v961 = vunpack.c.h.b16 %v944
        %v962 = vunpack.c.l.b16 %v945
        %v963 = vunpack.c.h.b16 %v945
        %v964 = vunpack.c.l.b16 %v946
        %v965 = vunpack.c.h.b16 %v946
        %v966 = vunpack.c.l.b16 %v947
        %v967 = vunpack.c.h.b16 %v947
        %v968 = vpack.c.b16 %v962, %v960
        %v969 = vpack.c.b16 %v963, %v961
        %v970 = vpack.c.b16 %v966, %v964
        %v971 = vpack.c.b16 %v967, %v965
        %v977 = vsel %vm660, %v955, 0
        %v980 = vsel %vm660, %v954, 0
        %982 = vmatprep.subr.bf16.mxu0 %v969
        %983 = vmatpush1.bf16.msra.mxu0 %v968
        %984 = vmatprep.subr.bf16.mxu0 %v971
        %985 = vmatpush1.bf16.msra.mxu0 %v970
        %986 = vmatprep.subr.bf16.mxu0 0
        %987 = vmatpush1.bf16.msra.mxu0 0
        %988 = vmatprep.subr.bf16.mxu0 0
        %989 = vmatpush1.bf16.msra.mxu0 0
        %990 = vmatprep.subr.bf16.mxu0 0
        %991 = vmatpush1.bf16.msra.mxu0 0
        %992 = vmatprep.subr.bf16.mxu0 0
        %993 = vmatpush1.bf16.msra.mxu0 0
        %994 = vmatprep.subr.bf16.mxu0 0
        %995 = vmatpush1.bf16.msra.mxu0 0
        %996 = vmatprep.subr.bf16.mxu0 0
        %997 = vmatpush1.bf16.msra.mxu0 0
        %998 = vmatprep.subr.bf16.mxu0 0
        %999 = vmatpush1.bf16.msra.mxu0 0
        %1000 = vmatprep.subr.bf16.mxu0 0
        %1001 = vmatpush1.bf16.msra.mxu0 0
        %1002 = vmatprep.subr.bf16.mxu0 0
        %1003 = vmatpush1.bf16.msra.mxu0 0
        %1004 = vmatprep.subr.bf16.mxu0 0
        %1005 = vmatpush1.bf16.msra.mxu0 0
        %1006 = vmatprep.subr.bf16.mxu0 0
        %1007 = vmatpush1.bf16.msra.mxu0 0
        %1008 = vmatprep.subr.bf16.mxu0 0
        %1009 = vmatpush1.bf16.msra.mxu0 0
        %1010 = vmatprep.subr.bf16.mxu0 0
        %1011 = vmatpush1.bf16.msra.mxu0 0
        %1012 = vmatprep.subr.bf16.mxu0 0
        %1013 = vmatpush1.bf16.msra.mxu0 0
        %1014 = vmatprep.mubr.bf16.mxu0 0
        %1015 = vmatmul.mubr.bf16.gmra.mrb[0].mxu0 %v977
        %v1016 = vpop.f32.mrb[0].mxu0
        %v1017 = vadd.f32 0.0, %v1016
        %v1018 = vpop.f32.mrb[0].mxu0
        %v1019 = vadd.f32 0.0, %v1018
        %v1020 = vpop.f32.mrb[0].mxu0
        %v1021 = vadd.f32 0.0, %v1020
        %v1022 = vpop.f32.mrb[0].mxu0
        %v1023 = vadd.f32 0.0, %v1022
        %1024 = vmatprep.mubr.bf16.mxu0 0
        %1025 = vmatmul.mubr.bf16.gmra.mrb[0].mxu0 %v980
        %v1026 = vpop.f32.mrb[0].mxu0
        %v1027 = vadd.f32 0.0, %v1026
        %v1028 = vpop.f32.mrb[0].mxu0
        %v1029 = vadd.f32 0.0, %v1028
        %v1030 = vpop.f32.mrb[0].mxu0
        %v1031 = vadd.f32 0.0, %v1030
        %v1032 = vpop.f32.mrb[0].mxu0
        %v1033 = vadd.f32 0.0, %v1032
        %1034 = vdwg.mxu0
        %v1035 = vadd.f32 %v935, %v1017
        %v1036 = vadd.f32 %v936, %v1019
        %v1037 = vadd.f32 %v937, %v1021
        %v1038 = vadd.f32 %v938, %v1023
        %v1039 = vadd.f32 %v939, %v1027
        %v1040 = vadd.f32 %v940, %v1029
        %v1041 = vadd.f32 %v941, %v1031
        %v1042 = vadd.f32 %v942, %v1033
        %s1043 = scalar_lea.vmem [#allocation5], 128
        %v1044 = vld [vmem:[%s1043] sm:$0xff]
        %v1045 = vld [vmem:[%s1043 + $0x8] sm:$0xff]
        %v1046 = vld [vmem:[%s1043 + $0x10] sm:$0xff]
        %v1047 = vld [vmem:[%s1043 + $0x18] sm:$0xff]
        %vm1048 = vcmask 1045504
        %v1049 = vrot.slane %v638, 2
        %v1050 = vrot.slane %v639, 2
        %v1051 = vsel %vm1048, %v1049, %v1050
        %v1056 = vunpack.c.l.b16 %v1044
        %v1057 = vunpack.c.h.b16 %v1044
        %v1058 = vunpack.c.l.b16 %v1045
        %v1059 = vunpack.c.h.b16 %v1045
        %v1060 = vunpack.c.l.b16 %v1046
        %v1061 = vunpack.c.h.b16 %v1046
        %v1062 = vunpack.c.l.b16 %v1047
        %v1063 = vunpack.c.h.b16 %v1047
        %v1064 = vpack.c.b16 %v1058, %v1056
        %v1065 = vpack.c.b16 %v1059, %v1057
        %v1066 = vpack.c.b16 %v1062, %v1060
        %v1067 = vpack.c.b16 %v1063, %v1061
        %v1073 = vsel %vm660, %v1051, 0
        %v1076 = vsel %vm660, %v1050, 0
        %1078 = vmatprep.subr.bf16.mxu0 %v1065
        %1079 = vmatpush1.bf16.msra.mxu0 %v1064
        %1080 = vmatprep.subr.bf16.mxu0 %v1067
        %1081 = vmatpush1.bf16.msra.mxu0 %v1066
        %1082 = vmatprep.subr.bf16.mxu0 0
        %1083 = vmatpush1.bf16.msra.mxu0 0
        %1084 = vmatprep.subr.bf16.mxu0 0
        %1085 = vmatpush1.bf16.msra.mxu0 0
        %1086 = vmatprep.subr.bf16.mxu0 0
        %1087 = vmatpush1.bf16.msra.mxu0 0
        %1088 = vmatprep.subr.bf16.mxu0 0
        %1089 = vmatpush1.bf16.msra.mxu0 0
        %1090 = vmatprep.subr.bf16.mxu0 0
        %1091 = vmatpush1.bf16.msra.mxu0 0
        %1092 = vmatprep.subr.bf16.mxu0 0
        %1093 = vmatpush1.bf16.msra.mxu0 0
        %1094 = vmatprep.subr.bf16.mxu0 0
        %1095 = vmatpush1.bf16.msra.mxu0 0
        %1096 = vmatprep.subr.bf16.mxu0 0
        %1097 = vmatpush1.bf16.msra.mxu0 0
        %1098 = vmatprep.subr.bf16.mxu0 0
        %1099 = vmatpush1.bf16.msra.mxu0 0
        %1100 = vmatprep.subr.bf16.mxu0 0
        %1101 = vmatpush1.bf16.msra.mxu0 0
        %1102 = vmatprep.subr.bf16.mxu0 0
        %1103 = vmatpush1.bf16.msra.mxu0 0
        %1104 = vmatprep.subr.bf16.mxu0 0
        %1105 = vmatpush1.bf16.msra.mxu0 0
        %1106 = vmatprep.subr.bf16.mxu0 0
        %1107 = vmatpush1.bf16.msra.mxu0 0
        %1108 = vmatprep.subr.bf16.mxu0 0
        %1109 = vmatpush1.bf16.msra.mxu0 0
        %1110 = vmatprep.mubr.bf16.mxu0 0
        %1111 = vmatmul.mubr.bf16.gmra.mrb[0].mxu0 %v1073
        %v1112 = vpop.f32.mrb[0].mxu0
        %v1113 = vadd.f32 0.0, %v1112
        %v1114 = vpop.f32.mrb[0].mxu0
        %v1115 = vadd.f32 0.0, %v1114
        %v1116 = vpop.f32.mrb[0].mxu0
        %v1117 = vadd.f32 0.0, %v1116
        %v1118 = vpop.f32.mrb[0].mxu0
        %v1119 = vadd.f32 0.0, %v1118
        %1120 = vmatprep.mubr.bf16.mxu0 0
        %1121 = vmatmul.mubr.bf16.gmra.mrb[0].mxu0 %v1076
        %v1122 = vpop.f32.mrb[0].mxu0
        %v1123 = vadd.f32 0.0, %v1122
        %v1124 = vpop.f32.mrb[0].mxu0
        %v1125 = vadd.f32 0.0, %v1124
        %v1126 = vpop.f32.mrb[0].mxu0
        %v1127 = vadd.f32 0.0, %v1126
        %v1128 = vpop.f32.mrb[0].mxu0
        %v1129 = vadd.f32 0.0, %v1128
        %1130 = vdwg.mxu0
        %v1131 = vadd.f32 %v1035, %v1113
        %v1132 = vadd.f32 %v1036, %v1115
        %v1133 = vadd.f32 %v1037, %v1117
        %v1134 = vadd.f32 %v1038, %v1119
        %v1135 = vadd.f32 %v1039, %v1123
        %v1136 = vadd.f32 %v1040, %v1125
        %v1137 = vadd.f32 %v1041, %v1127
        %v1138 = vadd.f32 %v1042, %v1129
        %v1139 = vld [vmem:[#allocation7] sm:$0xff]
        %v1140 = vld [vmem:[#allocation7 + $0x8] sm:$0xff]
        %v1141 = vld [vmem:[#allocation7 + $0x10] sm:$0xff]
        %v1142 = vld [vmem:[#allocation7 + $0x18] sm:$0xff]
        %v1143 = vld [vmem:[#allocation7 + $0x20] sm:$0xff]
        %v1144 = vld [vmem:[#allocation7 + $0x28] sm:$0xff]
        %v1145 = vld [vmem:[#allocation7 + $0x30] sm:$0xff]
        %v1146 = vld [vmem:[#allocation7 + $0x38] sm:$0xff]
        %v1147 = vld [vmem:[#allocation7 + $0x40] sm:$0xff]
        %v1148 = vld [vmem:[#allocation7 + $0x48] sm:$0xff]
        %v1149 = vld [vmem:[#allocation7 + $0x50] sm:$0xff]
        %v1150 = vld [vmem:[#allocation7 + $0x58] sm:$0xff]
        %v1151 = vld [vmem:[#allocation7 + $0x60] sm:$0xff]
        %v1152 = vld [vmem:[#allocation7 + $0x68] sm:$0xff]
        %v1153 = vld [vmem:[#allocation7 + $0x70] sm:$0xff]
        %v1154 = vld [vmem:[#allocation7 + $0x78] sm:$0xff]
        %v1155 = vld [vmem:[#allocation7 + $0x80] sm:$0xff]
        %v1156 = vld [vmem:[#allocation7 + $0x88] sm:$0xff]
        %v1157 = vld [vmem:[#allocation7 + $0x90] sm:$0xff]
        %v1158 = vld [vmem:[#allocation7 + $0x98] sm:$0xff]
        %v1159 = vld [vmem:[#allocation7 + $0xa0] sm:$0xff]
        %v1160 = vld [vmem:[#allocation7 + $0xa8] sm:$0xff]
        %v1161 = vld [vmem:[#allocation7 + $0xb0] sm:$0xff]
        %v1162 = vld [vmem:[#allocation7 + $0xb8] sm:$0xff]
        %vm1163 = vcmask 523264
        %v1165 = vsel %vm1163, %v1132, 0
        %v1168 = vsel %vm1163, %v1134, 0
        %v1171 = vsel %vm1163, %v1136, 0
        %v1174 = vsel %vm1163, %v1138, 0
        %1176 = vmatprep.subr.mxu0 0.0
        %1177 = vmatpush1.msra.mxu0 %v1139
        %1178 = vmatprep.subr.mxu0 0.0
        %1179 = vmatpush1.msra.mxu0 %v1140
        %1180 = vmatprep.subr.mxu0 0.0
        %1181 = vmatpush1.msra.mxu0 %v1141
        %1182 = vmatprep.subr.mxu0 0.0
        %1183 = vmatpush1.msra.mxu0 %v1142
        %1184 = vmatprep.subr.mxu0 0.0
        %1185 = vmatpush1.msra.mxu0 %v1143
        %1186 = vmatprep.subr.mxu0 0.0
        %1187 = vmatpush1.msra.mxu0 %v1144
        %1188 = vmatprep.subr.mxu0 0.0
        %1189 = vmatpush1.msra.mxu0 %v1145
        %1190 = vmatprep.subr.mxu0 0.0
        %1191 = vmatpush1.msra.mxu0 %v1146
        %1192 = vmatprep.subr.mxu0 0.0
        %1193 = vmatpush1.msra.mxu0 %v1147
        %1194 = vmatprep.subr.mxu0 0.0
        %1195 = vmatpush1.msra.mxu0 %v1148
        %1196 = vmatprep.subr.mxu0 0.0
        %1197 = vmatpush1.msra.mxu0 %v1149
        %1198 = vmatprep.subr.mxu0 0.0
        %1199 = vmatpush1.msra.mxu0 %v1150
        %1200 = vmatprep.subr.mxu0 0.0
        %1201 = vmatpush1.msra.mxu0 %v1151
        %1202 = vmatprep.subr.mxu0 0.0
        %1203 = vmatpush1.msra.mxu0 %v1152
        %1204 = vmatprep.subr.mxu0 0.0
        %1205 = vmatpush1.msra.mxu0 %v1153
        %1206 = vmatprep.subr.mxu0 0.0
        %1207 = vmatpush1.msra.mxu0 %v1154
        %1208 = vmatprep.subr.mxu0 0.0
        %1209 = vmatpush1.msra.mxu0 %v1155
        %1210 = vmatprep.subr.mxu0 0.0
        %1211 = vmatpush1.msra.mxu0 %v1156
        %1212 = vmatprep.subr.mxu0 0.0
        %1213 = vmatpush1.msra.mxu0 %v1157
        %1214 = vmatprep.subr.mxu0 0.0
        %1215 = vmatpush1.msra.mxu0 %v1158
        %1216 = vmatprep.subr.mxu0 0.0
        %1217 = vmatpush1.msra.mxu0 %v1159
        %1218 = vmatprep.subr.mxu0 0.0
        %1219 = vmatpush1.msra.mxu0 %v1160
        %1220 = vmatprep.subr.mxu0 0.0
        %1221 = vmatpush1.msra.mxu0 %v1161
        %1222 = vmatprep.subr.mxu0 0.0
        %1223 = vmatpush1.msra.mxu0 %v1162
        %1224 = vmatprep.subr.mxu0 0.0
        %1225 = vmatpush1.msra.mxu0 0.0
        %1226 = vmatprep.subr.mxu0 0.0
        %1227 = vmatpush1.msra.mxu0 0.0
        %1228 = vmatprep.subr.mxu0 0.0
        %1229 = vmatpush1.msra.mxu0 0.0
        %1230 = vmatprep.subr.mxu0 0.0
        %1231 = vmatpush1.msra.mxu0 0.0
        %1232 = vmatprep.subr.mxu0 0.0
        %1233 = vmatpush1.msra.mxu0 0.0
        %1234 = vmatprep.subr.mxu0 0.0
        %1235 = vmatpush1.msra.mxu0 0.0
        %1236 = vmatprep.subr.mxu0 0.0
        %1237 = vmatpush1.msra.mxu0 0.0
        %1238 = vmatprep.subr.mxu0 0.0
        %1239 = vmatpush1.msra.mxu0 0.0
        %1240 = vmatprep.mubr.f32.mxu0 %v1165
        %1241 = vmatmul.mubr.f32.gmra.mrb[0].mxu0 %v1131
        %v1242 = vpop.f32.mrb[0].mxu0
        %v1243 = vadd.f32 0.0, %v1242
        %v1244 = vpop.f32.mrb[0].mxu0
        %1245 = vmatprep.mubr.f32.mxu0 %v1168
        %1246 = vmatmul.mubr.f32.gmra.mrb[0].mxu0 %v1133
        %v1247 = vpop.f32.mrb[0].mxu0
        %v1248 = vadd.f32 0.0, %v1247
        %v1249 = vpop.f32.mrb[0].mxu0
        %1250 = vmatprep.mubr.f32.mxu0 %v1171
        %1251 = vmatmul.mubr.f32.gmra.mrb[0].mxu0 %v1135
        %v1252 = vpop.f32.mrb[0].mxu0
        %v1253 = vadd.f32 0.0, %v1252
        %v1254 = vpop.f32.mrb[0].mxu0
        %1255 = vmatprep.mubr.f32.mxu0 %v1174
        %1256 = vmatmul.mubr.f32.gmra.mrb[0].mxu0 %v1137
        %v1257 = vpop.f32.mrb[0].mxu0
        %v1258 = vadd.f32 0.0, %v1257
        %v1259 = vpop.f32.mrb[0].mxu0
        %1260 = vdwg.mxu0
        %s1261 = scalar_lea.vmem [#allocation7], 192
        %v1262 = vld [vmem:[%s1261] sm:$0xff]
        %v1263 = vld [vmem:[%s1261 + $0x8] sm:$0xff]
        %v1264 = vld [vmem:[%s1261 + $0x10] sm:$0xff]
        %v1265 = vld [vmem:[%s1261 + $0x18] sm:$0xff]
        %v1266 = vld [vmem:[%s1261 + $0x20] sm:$0xff]
        %v1267 = vld [vmem:[%s1261 + $0x28] sm:$0xff]
        %v1268 = vld [vmem:[%s1261 + $0x30] sm:$0xff]
        %v1269 = vld [vmem:[%s1261 + $0x38] sm:$0xff]
        %v1270 = vld [vmem:[%s1261 + $0x40] sm:$0xff]
        %v1271 = vld [vmem:[%s1261 + $0x48] sm:$0xff]
        %v1272 = vld [vmem:[%s1261 + $0x50] sm:$0xff]
        %v1273 = vld [vmem:[%s1261 + $0x58] sm:$0xff]
        %v1274 = vld [vmem:[%s1261 + $0x60] sm:$0xff]
        %v1275 = vld [vmem:[%s1261 + $0x68] sm:$0xff]
        %v1276 = vld [vmem:[%s1261 + $0x70] sm:$0xff]
        %v1277 = vld [vmem:[%s1261 + $0x78] sm:$0xff]
        %v1278 = vld [vmem:[%s1261 + $0x80] sm:$0xff]
        %v1279 = vld [vmem:[%s1261 + $0x88] sm:$0xff]
        %v1280 = vld [vmem:[%s1261 + $0x90] sm:$0xff]
        %v1281 = vld [vmem:[%s1261 + $0x98] sm:$0xff]
        %v1282 = vld [vmem:[%s1261 + $0xa0] sm:$0xff]
        %v1283 = vld [vmem:[%s1261 + $0xa8] sm:$0xff]
        %v1284 = vld [vmem:[%s1261 + $0xb0] sm:$0xff]
        %v1285 = vld [vmem:[%s1261 + $0xb8] sm:$0xff]
        %1286 = vmatprep.subr.mxu0 0.0
        %1287 = vmatpush1.msra.mxu0 %v1262
        %1288 = vmatprep.subr.mxu0 0.0
        %1289 = vmatpush1.msra.mxu0 %v1263
        %1290 = vmatprep.subr.mxu0 0.0
        %1291 = vmatpush1.msra.mxu0 %v1264
        %1292 = vmatprep.subr.mxu0 0.0
        %1293 = vmatpush1.msra.mxu0 %v1265
        %1294 = vmatprep.subr.mxu0 0.0
        %1295 = vmatpush1.msra.mxu0 %v1266
        %1296 = vmatprep.subr.mxu0 0.0
        %1297 = vmatpush1.msra.mxu0 %v1267
        %1298 = vmatprep.subr.mxu0 0.0
        %1299 = vmatpush1.msra.mxu0 %v1268
        %1300 = vmatprep.subr.mxu0 0.0
        %1301 = vmatpush1.msra.mxu0 %v1269
        %1302 = vmatprep.subr.mxu0 0.0
        %1303 = vmatpush1.msra.mxu0 %v1270
        %1304 = vmatprep.subr.mxu0 0.0
        %1305 = vmatpush1.msra.mxu0 %v1271
        %1306 = vmatprep.subr.mxu0 0.0
        %1307 = vmatpush1.msra.mxu0 %v1272
        %1308 = vmatprep.subr.mxu0 0.0
        %1309 = vmatpush1.msra.mxu0 %v1273
        %1310 = vmatprep.subr.mxu0 0.0
        %1311 = vmatpush1.msra.mxu0 %v1274
        %1312 = vmatprep.subr.mxu0 0.0
        %1313 = vmatpush1.msra.mxu0 %v1275
        %1314 = vmatprep.subr.mxu0 0.0
        %1315 = vmatpush1.msra.mxu0 %v1276
        %1316 = vmatprep.subr.mxu0 0.0
        %1317 = vmatpush1.msra.mxu0 %v1277
        %1318 = vmatprep.subr.mxu0 0.0
        %1319 = vmatpush1.msra.mxu0 %v1278
        %1320 = vmatprep.subr.mxu0 0.0
        %1321 = vmatpush1.msra.mxu0 %v1279
        %1322 = vmatprep.subr.mxu0 0.0
        %1323 = vmatpush1.msra.mxu0 %v1280
        %1324 = vmatprep.subr.mxu0 0.0
        %1325 = vmatpush1.msra.mxu0 %v1281
        %1326 = vmatprep.subr.mxu0 0.0
        %1327 = vmatpush1.msra.mxu0 %v1282
        %1328 = vmatprep.subr.mxu0 0.0
        %1329 = vmatpush1.msra.mxu0 %v1283
        %1330 = vmatprep.subr.mxu0 0.0
        %1331 = vmatpush1.msra.mxu0 %v1284
        %1332 = vmatprep.subr.mxu0 0.0
        %1333 = vmatpush1.msra.mxu0 %v1285
        %1334 = vmatprep.subr.mxu0 0.0
        %1335 = vmatpush1.msra.mxu0 0.0
        %1336 = vmatprep.subr.mxu0 0.0
        %1337 = vmatpush1.msra.mxu0 0.0
        %1338 = vmatprep.subr.mxu0 0.0
        %1339 = vmatpush1.msra.mxu0 0.0
        %1340 = vmatprep.subr.mxu0 0.0
        %1341 = vmatpush1.msra.mxu0 0.0
        %1342 = vmatprep.subr.mxu0 0.0
        %1343 = vmatpush1.msra.mxu0 0.0
        %1344 = vmatprep.subr.mxu0 0.0
        %1345 = vmatpush1.msra.mxu0 0.0
        %1346 = vmatprep.subr.mxu0 0.0
        %1347 = vmatpush1.msra.mxu0 0.0
        %1348 = vmatprep.subr.mxu0 0.0
        %1349 = vmatpush1.msra.mxu0 0.0
        %1350 = vmatprep.mubr.f32.mxu0 %v1165
        %1351 = vmatmul.mubr.f32.gmra.mrb[0].mxu0 %v1131
        %v1352 = vpop.f32.mrb[0].mxu0
        %v1353 = vadd.f32 0.0, %v1352
        %v1354 = vpop.f32.mrb[0].mxu0
        %1355 = vmatprep.mubr.f32.mxu0 %v1168
        %1356 = vmatmul.mubr.f32.gmra.mrb[0].mxu0 %v1133
        %v1357 = vpop.f32.mrb[0].mxu0
        %v1358 = vadd.f32 0.0, %v1357
        %v1359 = vpop.f32.mrb[0].mxu0
        %1360 = vmatprep.mubr.f32.mxu0 %v1171
        %1361 = vmatmul.mubr.f32.gmra.mrb[0].mxu0 %v1135
        %v1362 = vpop.f32.mrb[0].mxu0
        %v1363 = vadd.f32 0.0, %v1362
        %v1364 = vpop.f32.mrb[0].mxu0
        %1365 = vmatprep.mubr.f32.mxu0 %v1174
        %1366 = vmatmul.mubr.f32.gmra.mrb[0].mxu0 %v1137
        %v1367 = vpop.f32.mrb[0].mxu0
        %v1368 = vadd.f32 0.0, %v1367
        %v1369 = vpop.f32.mrb[0].mxu0
        %1370 = vdwg.mxu0
        %v1371 = vmax.f32 %v1243, %v1353
        %v1372 = vmax.f32 %v1248, %v1358
        %v1373 = vmax.f32 %v1253, %v1363
        %v1374 = vmax.f32 %v1258, %v1368
        %v1375 = vld [vmem:[#allocation8] sm:$0xff]
        %v1376 = vld [vmem:[#allocation8 + $0x8] sm:$0xff]
        %vm1377 = vcmask 228352
        %v1379 = vsel %vm1377, %v1375, 0
        %v1382 = vsel %vm1377, %v1376, 0
        %vm1384 = vcmask 1043456
        %v1386 = vsel %vm1384, %v1374, 0
        %1388 = vmatprep.subr.mxu0 0.0
        %1389 = vmatpush1.msra.mxu0 %v1371
        %1390 = vmatprep.subr.mxu0 0.0
        %1391 = vmatpush1.msra.mxu0 %v1372
        %1392 = vmatprep.subr.mxu0 0.0
        %1393 = vmatpush1.msra.mxu0 %v1373
        %1394 = vmatprep.subr.mxu0 0.0
        %1395 = vmatpush1.msra.mxu0 %v1386
        %1396 = vmatprep.subr.mxu0 0.0
        %1397 = vmatpush1.msra.mxu0 0.0
        %1398 = vmatprep.subr.mxu0 0.0
        %1399 = vmatpush1.msra.mxu0 0.0
        %1400 = vmatprep.subr.mxu0 0.0
        %1401 = vmatpush1.msra.mxu0 0.0
        %1402 = vmatprep.subr.mxu0 0.0
        %1403 = vmatpush1.msra.mxu0 0.0
        %1404 = vmatprep.subr.mxu0 0.0
        %1405 = vmatpush1.msra.mxu0 0.0
        %1406 = vmatprep.subr.mxu0 0.0
        %1407 = vmatpush1.msra.mxu0 0.0
        %1408 = vmatprep.subr.mxu0 0.0
        %1409 = vmatpush1.msra.mxu0 0.0
        %1410 = vmatprep.subr.mxu0 0.0
        %1411 = vmatpush1.msra.mxu0 0.0
        %1412 = vmatprep.subr.mxu0 0.0
        %1413 = vmatpush1.msra.mxu0 0.0
        %1414 = vmatprep.subr.mxu0 0.0
        %1415 = vmatpush1.msra.mxu0 0.0
        %1416 = vmatprep.subr.mxu0 0.0
        %1417 = vmatpush1.msra.mxu0 0.0
        %1418 = vmatprep.subr.mxu0 0.0
        %1419 = vmatpush1.msra.mxu0 0.0
        %1420 = vmatprep.subr.mxu0 0.0
        %1421 = vmatpush1.msra.mxu0 0.0
        %1422 = vmatprep.subr.mxu0 0.0
        %1423 = vmatpush1.msra.mxu0 0.0
        %1424 = vmatprep.subr.mxu0 0.0
        %1425 = vmatpush1.msra.mxu0 0.0
        %1426 = vmatprep.subr.mxu0 0.0
        %1427 = vmatpush1.msra.mxu0 0.0
        %1428 = vmatprep.subr.mxu0 0.0
        %1429 = vmatpush1.msra.mxu0 0.0
        %1430 = vmatprep.subr.mxu0 0.0
        %1431 = vmatpush1.msra.mxu0 0.0
        %1432 = vmatprep.subr.mxu0 0.0
        %1433 = vmatpush1.msra.mxu0 0.0
        %1434 = vmatprep.subr.mxu0 0.0
        %1435 = vmatpush1.msra.mxu0 0.0
        %1436 = vmatprep.subr.mxu0 0.0
        %1437 = vmatpush1.msra.mxu0 0.0
        %1438 = vmatprep.subr.mxu0 0.0
        %1439 = vmatpush1.msra.mxu0 0.0
        %1440 = vmatprep.subr.mxu0 0.0
        %1441 = vmatpush1.msra.mxu0 0.0
        %1442 = vmatprep.subr.mxu0 0.0
        %1443 = vmatpush1.msra.mxu0 0.0
        %1444 = vmatprep.subr.mxu0 0.0
        %1445 = vmatpush1.msra.mxu0 0.0
        %1446 = vmatprep.subr.mxu0 0.0
        %1447 = vmatpush1.msra.mxu0 0.0
        %1448 = vmatprep.subr.mxu0 0.0
        %1449 = vmatpush1.msra.mxu0 0.0
        %1450 = vmatprep.subr.mxu0 0.0
        %1451 = vmatpush1.msra.mxu0 0.0
        %1452 = vmatprep.mubr.f32.mxu0 0.0
        %1453 = vmatmul.mubr.f32.gmra.mrb[0].mxu0 %v1379
        %v1454 = vpop.f32.mrb[0].mxu0
        %v1455 = vadd.f32 0.0, %v1454
        %v1456 = vpop.f32.mrb[0].mxu0
        %1457 = vmatprep.mubr.f32.mxu0 0.0
        %1458 = vmatmul.mubr.f32.gmra.mrb[0].mxu0 %v1382
        %v1459 = vpop.f32.mrb[0].mxu0
        %v1460 = vadd.f32 0.0, %v1459
        %v1461 = vpop.f32.mrb[0].mxu0
        %1462 = vdwg.mxu0
        %s1463 = scalar_lea.vmem [#allocation8], 16
        %v1464 = vld [vmem:[%s1463] sm:$0xff]
        %v1465 = vld [vmem:[%s1463 + $0x8] sm:$0xff]
        %v1467 = vsel %vm1377, %v1464, 0
        %v1470 = vsel %vm1377, %v1465, 0
        %1472 = vmatprep.subr.mxu0 0.0
        %1473 = vmatpush1.msra.mxu0 %v1371
        %1474 = vmatprep.subr.mxu0 0.0
        %1475 = vmatpush1.msra.mxu0 %v1372
        %1476 = vmatprep.subr.mxu0 0.0
        %1477 = vmatpush1.msra.mxu0 %v1373
        %1478 = vmatprep.subr.mxu0 0.0
        %1479 = vmatpush1.msra.mxu0 %v1386
        %1480 = vmatprep.subr.mxu0 0.0
        %1481 = vmatpush1.msra.mxu0 0.0
        %1482 = vmatprep.subr.mxu0 0.0
        %1483 = vmatpush1.msra.mxu0 0.0
        %1484 = vmatprep.subr.mxu0 0.0
        %1485 = vmatpush1.msra.mxu0 0.0
        %1486 = vmatprep.subr.mxu0 0.0
        %1487 = vmatpush1.msra.mxu0 0.0
        %1488 = vmatprep.subr.mxu0 0.0
        %1489 = vmatpush1.msra.mxu0 0.0
        %1490 = vmatprep.subr.mxu0 0.0
        %1491 = vmatpush1.msra.mxu0 0.0
        %1492 = vmatprep.subr.mxu0 0.0
        %1493 = vmatpush1.msra.mxu0 0.0
        %1494 = vmatprep.subr.mxu0 0.0
        %1495 = vmatpush1.msra.mxu0 0.0
        %1496 = vmatprep.subr.mxu0 0.0
        %1497 = vmatpush1.msra.mxu0 0.0
        %1498 = vmatprep.subr.mxu0 0.0
        %1499 = vmatpush1.msra.mxu0 0.0
        %1500 = vmatprep.subr.mxu0 0.0
        %1501 = vmatpush1.msra.mxu0 0.0
        %1502 = vmatprep.subr.mxu0 0.0
        %1503 = vmatpush1.msra.mxu0 0.0
        %1504 = vmatprep.subr.mxu0 0.0
        %1505 = vmatpush1.msra.mxu0 0.0
        %1506 = vmatprep.subr.mxu0 0.0
        %1507 = vmatpush1.msra.mxu0 0.0
        %1508 = vmatprep.subr.mxu0 0.0
        %1509 = vmatpush1.msra.mxu0 0.0
        %1510 = vmatprep.subr.mxu0 0.0
        %1511 = vmatpush1.msra.mxu0 0.0
        %1512 = vmatprep.subr.mxu0 0.0
        %1513 = vmatpush1.msra.mxu0 0.0
        %1514 = vmatprep.subr.mxu0 0.0
        %1515 = vmatpush1.msra.mxu0 0.0
        %1516 = vmatprep.subr.mxu0 0.0
        %1517 = vmatpush1.msra.mxu0 0.0
        %1518 = vmatprep.subr.mxu0 0.0
        %1519 = vmatpush1.msra.mxu0 0.0
        %1520 = vmatprep.subr.mxu0 0.0
        %1521 = vmatpush1.msra.mxu0 0.0
        %1522 = vmatprep.subr.mxu0 0.0
        %1523 = vmatpush1.msra.mxu0 0.0
        %1524 = vmatprep.subr.mxu0 0.0
        %1525 = vmatpush1.msra.mxu0 0.0
        %1526 = vmatprep.subr.mxu0 0.0
        %1527 = vmatpush1.msra.mxu0 0.0
        %1528 = vmatprep.subr.mxu0 0.0
        %1529 = vmatpush1.msra.mxu0 0.0
        %1530 = vmatprep.subr.mxu0 0.0
        %1531 = vmatpush1.msra.mxu0 0.0
        %1532 = vmatprep.subr.mxu0 0.0
        %1533 = vmatpush1.msra.mxu0 0.0
        %1534 = vmatprep.subr.mxu0 0.0
        %1535 = vmatpush1.msra.mxu0 0.0
        %1536 = vmatprep.mubr.f32.mxu0 0.0
        %1537 = vmatmul.mubr.f32.gmra.mrb[0].mxu0 %v1467
        %v1538 = vpop.f32.mrb[0].mxu0
        %v1539 = vadd.f32 0.0, %v1538
        %v1540 = vpop.f32.mrb[0].mxu0
        %1541 = vmatprep.mubr.f32.mxu0 0.0
        %1542 = vmatmul.mubr.f32.gmra.mrb[0].mxu0 %v1470
        %v1543 = vpop.f32.mrb[0].mxu0
        %v1544 = vadd.f32 0.0, %v1543
        %v1545 = vpop.f32.mrb[0].mxu0
        %1546 = vdwg.mxu0
        %v1547 = vmax.f32 %v1455, %v1539
        %v1548 = vmax.f32 %v1460, %v1544
        %v1549 = vsub.f32 0.0, %v1547
        %v1550 = vsub.f32 0.0, %v1548
        %v1551 = vmul.f32 %v1549, 1.442695
        %v1552 = vpow.pop %v1551
        %v1553 = vmul.f32 %v1550, 1.442695
        %v1554 = vpow.pop %v1553
        %v1555 = vadd.f32 %v1552, 1.0
        %v1556 = vadd.f32 %v1554, 1.0
        %v1557 = vrcp.pop %v1555
        %v1558 = vrcp.pop %v1556
        %v1559 = vld [vmem:[%s6] sm:$0x3]
        %v1560 = vld [vmem:[#allocation10] sm:$0xff]
        %v1561 = vld [vmem:[#allocation10 + $0x8] sm:$0xff]
        %v1562 = vld [vmem:[#allocation10 + $0x10] sm:$0xff]
        %v1563 = vld [vmem:[#allocation10 + $0x18] sm:$0xff]
        %v1564 = vld [vmem:[#allocation10 + $0x20] sm:$0xff]
        %v1565 = vld [vmem:[#allocation10 + $0x28] sm:$0xff]
        %v1566 = vld [vmem:[#allocation10 + $0x30] sm:$0xff]
        %v1567 = vld [vmem:[#allocation10 + $0x38] sm:$0xff]
        %v1568 = vld [vmem:[#allocation10 + $0x40] sm:$0xff]
        %v1569 = vld [vmem:[#allocation10 + $0x48] sm:$0xff]
        %v1570 = vld [vmem:[#allocation10 + $0x50] sm:$0xff]
        %v1571 = vld [vmem:[#allocation10 + $0x58] sm:$0xff]
        %v1572 = vpack.c.bf16 %v1558, %v1557
        %v1585 = vunpack.c.l.b16 %v1560
        %v1586 = vunpack.c.h.b16 %v1560
        %v1587 = vunpack.c.l.b16 %v1561
        %v1588 = vunpack.c.h.b16 %v1561
        %v1589 = vunpack.c.l.b16 %v1562
        %v1590 = vunpack.c.h.b16 %v1562
        %v1591 = vunpack.c.l.b16 %v1563
        %v1592 = vunpack.c.h.b16 %v1563
        %v1593 = vunpack.c.l.b16 %v1564
        %v1594 = vunpack.c.h.b16 %v1564
        %v1595 = vunpack.c.l.b16 %v1565
        %v1596 = vunpack.c.h.b16 %v1565
        %v1597 = vunpack.c.l.b16 %v1566
        %v1598 = vunpack.c.h.b16 %v1566
        %v1599 = vunpack.c.l.b16 %v1567
        %v1600 = vunpack.c.h.b16 %v1567
        %v1601 = vunpack.c.l.b16 %v1568
        %v1602 = vunpack.c.h.b16 %v1568
        %v1603 = vunpack.c.l.b16 %v1569
        %v1604 = vunpack.c.h.b16 %v1569
        %v1605 = vunpack.c.l.b16 %v1570
        %v1606 = vunpack.c.h.b16 %v1570
        %v1607 = vunpack.c.l.b16 %v1571
        %v1608 = vunpack.c.h.b16 %v1571
        %v1609 = vpack.c.b16 %v1587, %v1585
        %v1610 = vpack.c.b16 %v1588, %v1586
        %v1611 = vpack.c.b16 %v1591, %v1589
        %v1612 = vpack.c.b16 %v1592, %v1590
        %v1613 = vpack.c.b16 %v1595, %v1593
        %v1614 = vpack.c.b16 %v1596, %v1594
        %v1615 = vpack.c.b16 %v1599, %v1597
        %v1616 = vpack.c.b16 %v1600, %v1598
        %v1617 = vpack.c.b16 %v1603, %v1601
        %v1618 = vpack.c.b16 %v1604, %v1602
        %v1619 = vpack.c.b16 %v1607, %v1605
        %v1620 = vpack.c.b16 %v1608, %v1606
        %vm1633 = vcmask 785408
        %v1635 = vsel %vm1633, %v1572, 0
        %1637 = vmatprep.subr.bf16.mxu0 %v1610
        %1638 = vmatpush1.bf16.msra.mxu0 %v1609
        %1639 = vmatprep.subr.bf16.mxu0 %v1612
        %1640 = vmatpush1.bf16.msra.mxu0 %v1611
        %1641 = vmatprep.subr.bf16.mxu0 %v1614
        %1642 = vmatpush1.bf16.msra.mxu0 %v1613
        %1643 = vmatprep.subr.bf16.mxu0 %v1616
        %1644 = vmatpush1.bf16.msra.mxu0 %v1615
        %1645 = vmatprep.subr.bf16.mxu0 %v1618
        %1646 = vmatpush1.bf16.msra.mxu0 %v1617
        %1647 = vmatprep.subr.bf16.mxu0 %v1620
        %1648 = vmatpush1.bf16.msra.mxu0 %v1619
        %1649 = vmatprep.subr.bf16.mxu0 0
        %1650 = vmatpush1.bf16.msra.mxu0 0
        %1651 = vmatprep.subr.bf16.mxu0 0
        %1652 = vmatpush1.bf16.msra.mxu0 0
        %1653 = vmatprep.subr.bf16.mxu0 0
        %1654 = vmatpush1.bf16.msra.mxu0 0
        %1655 = vmatprep.subr.bf16.mxu0 0
        %1656 = vmatpush1.bf16.msra.mxu0 0
        %1657 = vmatprep.subr.bf16.mxu0 0
        %1658 = vmatpush1.bf16.msra.mxu0 0
        %1659 = vmatprep.subr.bf16.mxu0 0
        %1660 = vmatpush1.bf16.msra.mxu0 0
        %1661 = vmatprep.subr.bf16.mxu0 0
        %1662 = vmatpush1.bf16.msra.mxu0 0
        %1663 = vmatprep.subr.bf16.mxu0 0
        %1664 = vmatpush1.bf16.msra.mxu0 0
        %1665 = vmatprep.subr.bf16.mxu0 0
        %1666 = vmatpush1.bf16.msra.mxu0 0
        %1667 = vmatprep.subr.bf16.mxu0 0
        %1668 = vmatpush1.bf16.msra.mxu0 0
        %1669 = vmatprep.mubr.bf16.mxu0 0
        %1670 = vmatmul.mubr.bf16.gmra.mrb[0].mxu0 %v1635
        %v1671 = vpop.f32.mrb[0].mxu0
        %v1672 = vadd.f32 0.0, %v1671
        %v1673 = vpop.f32.mrb[0].mxu0
        %v1674 = vadd.f32 0.0, %v1673
        %v1675 = vpop.f32.mrb[0].mxu0
        %v1676 = vadd.f32 0.0, %v1675
        %v1677 = vpop.f32.mrb[0].mxu0
        %v1678 = vadd.f32 0.0, %v1677
        %1679 = vdwg.mxu0
        %v1681 = vlaneseq
        %v1682 = vshrl.u32 %v1681, 7
        %v1683 = vsub.s32 0, %v1682
        %v1684 = vrot.slane %v1559, %v1683
        %v1685 = vlaneseq
        %v1686 = vshrl.u32 %v1685, 7
        %v1687 = vsub.s32 1, %v1686
        %v1688 = vrot.slane %v1559, %v1687
        %v1691 = vadd.f32 %v1684, %v1672
        %v1692 = vadd.f32 %v1688, %v1674
        %v1693 = vadd.f32 %v1684, %v1676
        %v1694 = vadd.f32 %v1688, %v1678
        %s1695 = scalar_lea.vmem [#allocation10], 96
        %v1696 = vld [vmem:[%s1695] sm:$0xff]
        %v1697 = vld [vmem:[%s1695 + $0x8] sm:$0xff]
        %v1698 = vld [vmem:[%s1695 + $0x10] sm:$0xff]
        %v1699 = vld [vmem:[%s1695 + $0x18] sm:$0xff]
        %v1700 = vld [vmem:[%s1695 + $0x20] sm:$0xff]
        %v1701 = vld [vmem:[%s1695 + $0x28] sm:$0xff]
        %v1702 = vld [vmem:[%s1695 + $0x30] sm:$0xff]
        %v1703 = vld [vmem:[%s1695 + $0x38] sm:$0xff]
        %v1704 = vld [vmem:[%s1695 + $0x40] sm:$0xff]
        %v1705 = vld [vmem:[%s1695 + $0x48] sm:$0xff]
        %v1706 = vld [vmem:[%s1695 + $0x50] sm:$0xff]
        %v1707 = vld [vmem:[%s1695 + $0x58] sm:$0xff]
        %v1708 = vshrl.u32 %v1572, 16
        %v1710 = vshll.u32 %v1572, 16
        %v1712 = vrot.slane %v1710, 1
        %v1713 = vor.u32 %v1708, %v1712
        %v1726 = vunpack.c.l.b16 %v1696
        %v1727 = vunpack.c.h.b16 %v1696
        %v1728 = vunpack.c.l.b16 %v1697
        %v1729 = vunpack.c.h.b16 %v1697
        %v1730 = vunpack.c.l.b16 %v1698
        %v1731 = vunpack.c.h.b16 %v1698
        %v1732 = vunpack.c.l.b16 %v1699
        %v1733 = vunpack.c.h.b16 %v1699
        %v1734 = vunpack.c.l.b16 %v1700
        %v1735 = vunpack.c.h.b16 %v1700
        %v1736 = vunpack.c.l.b16 %v1701
        %v1737 = vunpack.c.h.b16 %v1701
        %v1738 = vunpack.c.l.b16 %v1702
        %v1739 = vunpack.c.h.b16 %v1702
        %v1740 = vunpack.c.l.b16 %v1703
        %v1741 = vunpack.c.h.b16 %v1703
        %v1742 = vunpack.c.l.b16 %v1704
        %v1743 = vunpack.c.h.b16 %v1704
        %v1744 = vunpack.c.l.b16 %v1705
        %v1745 = vunpack.c.h.b16 %v1705
        %v1746 = vunpack.c.l.b16 %v1706
        %v1747 = vunpack.c.h.b16 %v1706
        %v1748 = vunpack.c.l.b16 %v1707
        %v1749 = vunpack.c.h.b16 %v1707
        %v1750 = vpack.c.b16 %v1728, %v1726
        %v1751 = vpack.c.b16 %v1729, %v1727
        %v1752 = vpack.c.b16 %v1732, %v1730
        %v1753 = vpack.c.b16 %v1733, %v1731
        %v1754 = vpack.c.b16 %v1736, %v1734
        %v1755 = vpack.c.b16 %v1737, %v1735
        %v1756 = vpack.c.b16 %v1740, %v1738
        %v1757 = vpack.c.b16 %v1741, %v1739
        %v1758 = vpack.c.b16 %v1744, %v1742
        %v1759 = vpack.c.b16 %v1745, %v1743
        %v1760 = vpack.c.b16 %v1748, %v1746
        %v1761 = vpack.c.b16 %v1749, %v1747
        %v1775 = vsel %vm1633, %v1713, 0
        %1777 = vmatprep.subr.bf16.mxu0 %v1751
        %1778 = vmatpush1.bf16.msra.mxu0 %v1750
        %1779 = vmatprep.subr.bf16.mxu0 %v1753
        %1780 = vmatpush1.bf16.msra.mxu0 %v1752
        %1781 = vmatprep.subr.bf16.mxu0 %v1755
        %1782 = vmatpush1.bf16.msra.mxu0 %v1754
        %1783 = vmatprep.subr.bf16.mxu0 %v1757
        %1784 = vmatpush1.bf16.msra.mxu0 %v1756
        %1785 = vmatprep.subr.bf16.mxu0 %v1759
        %1786 = vmatpush1.bf16.msra.mxu0 %v1758
        %1787 = vmatprep.subr.bf16.mxu0 %v1761
        %1788 = vmatpush1.bf16.msra.mxu0 %v1760
        %1789 = vmatprep.subr.bf16.mxu0 0
        %1790 = vmatpush1.bf16.msra.mxu0 0
        %1791 = vmatprep.subr.bf16.mxu0 0
        %1792 = vmatpush1.bf16.msra.mxu0 0
        %1793 = vmatprep.subr.bf16.mxu0 0
        %1794 = vmatpush1.bf16.msra.mxu0 0
        %1795 = vmatprep.subr.bf16.mxu0 0
        %1796 = vmatpush1.bf16.msra.mxu0 0
        %1797 = vmatprep.subr.bf16.mxu0 0
        %1798 = vmatpush1.bf16.msra.mxu0 0
        %1799 = vmatprep.subr.bf16.mxu0 0
        %1800 = vmatpush1.bf16.msra.mxu0 0
        %1801 = vmatprep.subr.bf16.mxu0 0
        %1802 = vmatpush1.bf16.msra.mxu0 0
        %1803 = vmatprep.subr.bf16.mxu0 0
        %1804 = vmatpush1.bf16.msra.mxu0 0
        %1805 = vmatprep.subr.bf16.mxu0 0
        %1806 = vmatpush1.bf16.msra.mxu0 0
        %1807 = vmatprep.subr.bf16.mxu0 0
        %1808 = vmatpush1.bf16.msra.mxu0 0
        %1809 = vmatprep.mubr.bf16.mxu0 0
        %1810 = vmatmul.mubr.bf16.gmra.mrb[0].mxu0 %v1775
        %v1811 = vpop.f32.mrb[0].mxu0
        %v1812 = vadd.f32 0.0, %v1811
        %v1813 = vpop.f32.mrb[0].mxu0
        %v1814 = vadd.f32 0.0, %v1813
        %v1815 = vpop.f32.mrb[0].mxu0
        %v1816 = vadd.f32 0.0, %v1815
        %v1817 = vpop.f32.mrb[0].mxu0
        %v1818 = vadd.f32 0.0, %v1817
        %1819 = vdwg.mxu0
        %v1820 = vadd.f32 %v1691, %v1812
        %v1821 = vadd.f32 %v1692, %v1814
        %v1822 = vadd.f32 %v1693, %v1816
        %v1823 = vadd.f32 %v1694, %v1818
        %s1824 = scalar_lea.vmem [#allocation10], 192
        %v1825 = vld [vmem:[%s1824] sm:$0xff]
        %v1826 = vld [vmem:[%s1824 + $0x8] sm:$0xff]
        %v1827 = vld [vmem:[%s1824 + $0x10] sm:$0xff]
        %v1828 = vld [vmem:[%s1824 + $0x18] sm:$0xff]
        %v1829 = vld [vmem:[%s1824 + $0x20] sm:$0xff]
        %v1830 = vld [vmem:[%s1824 + $0x28] sm:$0xff]
        %v1831 = vld [vmem:[%s1824 + $0x30] sm:$0xff]
        %v1832 = vld [vmem:[%s1824 + $0x38] sm:$0xff]
        %v1833 = vld [vmem:[%s1824 + $0x40] sm:$0xff]
        %v1834 = vld [vmem:[%s1824 + $0x48] sm:$0xff]
        %v1835 = vld [vmem:[%s1824 + $0x50] sm:$0xff]
        %v1836 = vld [vmem:[%s1824 + $0x58] sm:$0xff]
        %v1838 = vrot.slane %v1572, 1
        %v1851 = vunpack.c.l.b16 %v1825
        %v1852 = vunpack.c.h.b16 %v1825
        %v1853 = vunpack.c.l.b16 %v1826
        %v1854 = vunpack.c.h.b16 %v1826
        %v1855 = vunpack.c.l.b16 %v1827
        %v1856 = vunpack.c.h.b16 %v1827
        %v1857 = vunpack.c.l.b16 %v1828
        %v1858 = vunpack.c.h.b16 %v1828
        %v1859 = vunpack.c.l.b16 %v1829
        %v1860 = vunpack.c.h.b16 %v1829
        %v1861 = vunpack.c.l.b16 %v1830
        %v1862 = vunpack.c.h.b16 %v1830
        %v1863 = vunpack.c.l.b16 %v1831
        %v1864 = vunpack.c.h.b16 %v1831
        %v1865 = vunpack.c.l.b16 %v1832
        %v1866 = vunpack.c.h.b16 %v1832
        %v1867 = vunpack.c.l.b16 %v1833
        %v1868 = vunpack.c.h.b16 %v1833
        %v1869 = vunpack.c.l.b16 %v1834
        %v1870 = vunpack.c.h.b16 %v1834
        %v1871 = vunpack.c.l.b16 %v1835
        %v1872 = vunpack.c.h.b16 %v1835
        %v1873 = vunpack.c.l.b16 %v1836
        %v1874 = vunpack.c.h.b16 %v1836
        %v1875 = vpack.c.b16 %v1853, %v1851
        %v1876 = vpack.c.b16 %v1854, %v1852
        %v1877 = vpack.c.b16 %v1857, %v1855
        %v1878 = vpack.c.b16 %v1858, %v1856
        %v1879 = vpack.c.b16 %v1861, %v1859
        %v1880 = vpack.c.b16 %v1862, %v1860
        %v1881 = vpack.c.b16 %v1865, %v1863
        %v1882 = vpack.c.b16 %v1866, %v1864
        %v1883 = vpack.c.b16 %v1869, %v1867
        %v1884 = vpack.c.b16 %v1870, %v1868
        %v1885 = vpack.c.b16 %v1873, %v1871
        %v1886 = vpack.c.b16 %v1874, %v1872
        %v1900 = vsel %vm1633, %v1838, 0
        %1902 = vmatprep.subr.bf16.mxu0 %v1876
        %1903 = vmatpush1.bf16.msra.mxu0 %v1875
        %1904 = vmatprep.subr.bf16.mxu0 %v1878
        %1905 = vmatpush1.bf16.msra.mxu0 %v1877
        %1906 = vmatprep.subr.bf16.mxu0 %v1880
        %1907 = vmatpush1.bf16.msra.mxu0 %v1879
        %1908 = vmatprep.subr.bf16.mxu0 %v1882
        %1909 = vmatpush1.bf16.msra.mxu0 %v1881
        %1910 = vmatprep.subr.bf16.mxu0 %v1884
        %1911 = vmatpush1.bf16.msra.mxu0 %v1883
        %1912 = vmatprep.subr.bf16.mxu0 %v1886
        %1913 = vmatpush1.bf16.msra.mxu0 %v1885
        %1914 = vmatprep.subr.bf16.mxu0 0
        %1915 = vmatpush1.bf16.msra.mxu0 0
        %1916 = vmatprep.subr.bf16.mxu0 0
        %1917 = vmatpush1.bf16.msra.mxu0 0
        %1918 = vmatprep.subr.bf16.mxu0 0
        %1919 = vmatpush1.bf16.msra.mxu0 0
        %1920 = vmatprep.subr.bf16.mxu0 0
        %1921 = vmatpush1.bf16.msra.mxu0 0
        %1922 = vmatprep.subr.bf16.mxu0 0
        %1923 = vmatpush1.bf16.msra.mxu0 0
        %1924 = vmatprep.subr.bf16.mxu0 0
        %1925 = vmatpush1.bf16.msra.mxu0 0
        %1926 = vmatprep.subr.bf16.mxu0 0
        %1927 = vmatpush1.bf16.msra.mxu0 0
        %1928 = vmatprep.subr.bf16.mxu0 0
        %1929 = vmatpush1.bf16.msra.mxu0 0
        %1930 = vmatprep.subr.bf16.mxu0 0
        %1931 = vmatpush1.bf16.msra.mxu0 0
        %1932 = vmatprep.subr.bf16.mxu0 0
        %1933 = vmatpush1.bf16.msra.mxu0 0
        %1934 = vmatprep.mubr.bf16.mxu0 0
        %1935 = vmatmul.mubr.bf16.gmra.mrb[0].mxu0 %v1900
        %v1936 = vpop.f32.mrb[0].mxu0
        %v1937 = vadd.f32 0.0, %v1936
        %v1938 = vpop.f32.mrb[0].mxu0
        %v1939 = vadd.f32 0.0, %v1938
        %v1940 = vpop.f32.mrb[0].mxu0
        %v1941 = vadd.f32 0.0, %v1940
        %v1942 = vpop.f32.mrb[0].mxu0
        %v1943 = vadd.f32 0.0, %v1942
        %1944 = vdwg.mxu0
        %v1945 = vadd.f32 %v1820, %v1937
        %v1946 = vadd.f32 %v1821, %v1939
        %v1947 = vadd.f32 %v1822, %v1941
        %v1948 = vadd.f32 %v1823, %v1943
        %s1949 = scalar_lea.vmem [#allocation10], 288
        %v1950 = vld [vmem:[%s1949] sm:$0xff]
        %v1951 = vld [vmem:[%s1949 + $0x8] sm:$0xff]
        %v1952 = vld [vmem:[%s1949 + $0x10] sm:$0xff]
        %v1953 = vld [vmem:[%s1949 + $0x18] sm:$0xff]
        %v1954 = vld [vmem:[%s1949 + $0x20] sm:$0xff]
        %v1955 = vld [vmem:[%s1949 + $0x28] sm:$0xff]
        %v1956 = vld [vmem:[%s1949 + $0x30] sm:$0xff]
        %v1957 = vld [vmem:[%s1949 + $0x38] sm:$0xff]
        %v1958 = vld [vmem:[%s1949 + $0x40] sm:$0xff]
        %v1959 = vld [vmem:[%s1949 + $0x48] sm:$0xff]
        %v1960 = vld [vmem:[%s1949 + $0x50] sm:$0xff]
        %v1961 = vld [vmem:[%s1949 + $0x58] sm:$0xff]
        %v1962 = vrot.slane %v1708, 1
        %v1963 = vrot.slane %v1710, 2
        %v1964 = vor.u32 %v1962, %v1963
        %v1977 = vunpack.c.l.b16 %v1950
        %v1978 = vunpack.c.h.b16 %v1950
        %v1979 = vunpack.c.l.b16 %v1951
        %v1980 = vunpack.c.h.b16 %v1951
        %v1981 = vunpack.c.l.b16 %v1952
        %v1982 = vunpack.c.h.b16 %v1952
        %v1983 = vunpack.c.l.b16 %v1953
        %v1984 = vunpack.c.h.b16 %v1953
        %v1985 = vunpack.c.l.b16 %v1954
        %v1986 = vunpack.c.h.b16 %v1954
        %v1987 = vunpack.c.l.b16 %v1955
        %v1988 = vunpack.c.h.b16 %v1955
        %v1989 = vunpack.c.l.b16 %v1956
        %v1990 = vunpack.c.h.b16 %v1956
        %v1991 = vunpack.c.l.b16 %v1957
        %v1992 = vunpack.c.h.b16 %v1957
        %v1993 = vunpack.c.l.b16 %v1958
        %v1994 = vunpack.c.h.b16 %v1958
        %v1995 = vunpack.c.l.b16 %v1959
        %v1996 = vunpack.c.h.b16 %v1959
        %v1997 = vunpack.c.l.b16 %v1960
        %v1998 = vunpack.c.h.b16 %v1960
        %v1999 = vunpack.c.l.b16 %v1961
        %v2000 = vunpack.c.h.b16 %v1961
        %v2001 = vpack.c.b16 %v1979, %v1977
        %v2002 = vpack.c.b16 %v1980, %v1978
        %v2003 = vpack.c.b16 %v1983, %v1981
        %v2004 = vpack.c.b16 %v1984, %v1982
        %v2005 = vpack.c.b16 %v1987, %v1985
        %v2006 = vpack.c.b16 %v1988, %v1986
        %v2007 = vpack.c.b16 %v1991, %v1989
        %v2008 = vpack.c.b16 %v1992, %v1990
        %v2009 = vpack.c.b16 %v1995, %v1993
        %v2010 = vpack.c.b16 %v1996, %v1994
        %v2011 = vpack.c.b16 %v1999, %v1997
        %v2012 = vpack.c.b16 %v2000, %v1998
        %v2026 = vsel %vm1633, %v1964, 0
        %2028 = vmatprep.subr.bf16.mxu0 %v2002
        %2029 = vmatpush1.bf16.msra.mxu0 %v2001
        %2030 = vmatprep.subr.bf16.mxu0 %v2004
        %2031 = vmatpush1.bf16.msra.mxu0 %v2003
        %2032 = vmatprep.subr.bf16.mxu0 %v2006
        %2033 = vmatpush1.bf16.msra.mxu0 %v2005
        %2034 = vmatprep.subr.bf16.mxu0 %v2008
        %2035 = vmatpush1.bf16.msra.mxu0 %v2007
        %2036 = vmatprep.subr.bf16.mxu0 %v2010
        %2037 = vmatpush1.bf16.msra.mxu0 %v2009
        %2038 = vmatprep.subr.bf16.mxu0 %v2012
        %2039 = vmatpush1.bf16.msra.mxu0 %v2011
        %2040 = vmatprep.subr.bf16.mxu0 0
        %2041 = vmatpush1.bf16.msra.mxu0 0
        %2042 = vmatprep.subr.bf16.mxu0 0
        %2043 = vmatpush1.bf16.msra.mxu0 0
        %2044 = vmatprep.subr.bf16.mxu0 0
        %2045 = vmatpush1.bf16.msra.mxu0 0
        %2046 = vmatprep.subr.bf16.mxu0 0
        %2047 = vmatpush1.bf16.msra.mxu0 0
        %2048 = vmatprep.subr.bf16.mxu0 0
        %2049 = vmatpush1.bf16.msra.mxu0 0
        %2050 = vmatprep.subr.bf16.mxu0 0
        %2051 = vmatpush1.bf16.msra.mxu0 0
        %2052 = vmatprep.subr.bf16.mxu0 0
        %2053 = vmatpush1.bf16.msra.mxu0 0
        %2054 = vmatprep.subr.bf16.mxu0 0
        %2055 = vmatpush1.bf16.msra.mxu0 0
        %2056 = vmatprep.subr.bf16.mxu0 0
        %2057 = vmatpush1.bf16.msra.mxu0 0
        %2058 = vmatprep.subr.bf16.mxu0 0
        %2059 = vmatpush1.bf16.msra.mxu0 0
        %2060 = vmatprep.mubr.bf16.mxu0 0
        %2061 = vmatmul.mubr.bf16.gmra.mrb[0].mxu0 %v2026
        %v2062 = vpop.f32.mrb[0].mxu0
        %v2063 = vadd.f32 0.0, %v2062
        %v2064 = vpop.f32.mrb[0].mxu0
        %v2065 = vadd.f32 0.0, %v2064
        %v2066 = vpop.f32.mrb[0].mxu0
        %v2067 = vadd.f32 0.0, %v2066
        %v2068 = vpop.f32.mrb[0].mxu0
        %v2069 = vadd.f32 0.0, %v2068
        %2070 = vdwg.mxu0
        %v2071 = vadd.f32 %v1945, %v2063
        %v2072 = vadd.f32 %v1946, %v2065
        %v2073 = vadd.f32 %v1947, %v2067
        %v2074 = vadd.f32 %v1948, %v2069
        %s2075 = scalar_lea.vmem [#allocation10], 384
        %v2076 = vld [vmem:[%s2075] sm:$0xff]
        %v2077 = vld [vmem:[%s2075 + $0x8] sm:$0xff]
        %v2078 = vld [vmem:[%s2075 + $0x10] sm:$0xff]
        %v2079 = vld [vmem:[%s2075 + $0x18] sm:$0xff]
        %v2080 = vld [vmem:[%s2075 + $0x20] sm:$0xff]
        %v2081 = vld [vmem:[%s2075 + $0x28] sm:$0xff]
        %v2082 = vld [vmem:[%s2075 + $0x30] sm:$0xff]
        %v2083 = vld [vmem:[%s2075 + $0x38] sm:$0xff]
        %v2084 = vld [vmem:[%s2075 + $0x40] sm:$0xff]
        %v2085 = vld [vmem:[%s2075 + $0x48] sm:$0xff]
        %v2086 = vld [vmem:[%s2075 + $0x50] sm:$0xff]
        %v2087 = vld [vmem:[%s2075 + $0x58] sm:$0xff]
        %v2088 = vrot.slane %v1572, 2
        %v2101 = vunpack.c.l.b16 %v2076
        %v2102 = vunpack.c.h.b16 %v2076
        %v2103 = vunpack.c.l.b16 %v2077
        %v2104 = vunpack.c.h.b16 %v2077
        %v2105 = vunpack.c.l.b16 %v2078
        %v2106 = vunpack.c.h.b16 %v2078
        %v2107 = vunpack.c.l.b16 %v2079
        %v2108 = vunpack.c.h.b16 %v2079
        %v2109 = vunpack.c.l.b16 %v2080
        %v2110 = vunpack.c.h.b16 %v2080
        %v2111 = vunpack.c.l.b16 %v2081
        %v2112 = vunpack.c.h.b16 %v2081
        %v2113 = vunpack.c.l.b16 %v2082
        %v2114 = vunpack.c.h.b16 %v2082
        %v2115 = vunpack.c.l.b16 %v2083
        %v2116 = vunpack.c.h.b16 %v2083
        %v2117 = vunpack.c.l.b16 %v2084
        %v2118 = vunpack.c.h.b16 %v2084
        %v2119 = vunpack.c.l.b16 %v2085
        %v2120 = vunpack.c.h.b16 %v2085
        %v2121 = vunpack.c.l.b16 %v2086
        %v2122 = vunpack.c.h.b16 %v2086
        %v2123 = vunpack.c.l.b16 %v2087
        %v2124 = vunpack.c.h.b16 %v2087
        %v2125 = vpack.c.b16 %v2103, %v2101
        %v2126 = vpack.c.b16 %v2104, %v2102
        %v2127 = vpack.c.b16 %v2107, %v2105
        %v2128 = vpack.c.b16 %v2108, %v2106
        %v2129 = vpack.c.b16 %v2111, %v2109
        %v2130 = vpack.c.b16 %v2112, %v2110
        %v2131 = vpack.c.b16 %v2115, %v2113
        %v2132 = vpack.c.b16 %v2116, %v2114
        %v2133 = vpack.c.b16 %v2119, %v2117
        %v2134 = vpack.c.b16 %v2120, %v2118
        %v2135 = vpack.c.b16 %v2123, %v2121
        %v2136 = vpack.c.b16 %v2124, %v2122
        %v2150 = vsel %vm1633, %v2088, 0
        %2152 = vmatprep.subr.bf16.mxu0 %v2126
        %2153 = vmatpush1.bf16.msra.mxu0 %v2125
        %2154 = vmatprep.subr.bf16.mxu0 %v2128
        %2155 = vmatpush1.bf16.msra.mxu0 %v2127
        %2156 = vmatprep.subr.bf16.mxu0 %v2130
        %2157 = vmatpush1.bf16.msra.mxu0 %v2129
        %2158 = vmatprep.subr.bf16.mxu0 %v2132
        %2159 = vmatpush1.bf16.msra.mxu0 %v2131
        %2160 = vmatprep.subr.bf16.mxu0 %v2134
        %2161 = vmatpush1.bf16.msra.mxu0 %v2133
        %2162 = vmatprep.subr.bf16.mxu0 %v2136
        %2163 = vmatpush1.bf16.msra.mxu0 %v2135
        %2164 = vmatprep.subr.bf16.mxu0 0
        %2165 = vmatpush1.bf16.msra.mxu0 0
        %2166 = vmatprep.subr.bf16.mxu0 0
        %2167 = vmatpush1.bf16.msra.mxu0 0
        %2168 = vmatprep.subr.bf16.mxu0 0
        %2169 = vmatpush1.bf16.msra.mxu0 0
        %2170 = vmatprep.subr.bf16.mxu0 0
        %2171 = vmatpush1.bf16.msra.mxu0 0
        %2172 = vmatprep.subr.bf16.mxu0 0
        %2173 = vmatpush1.bf16.msra.mxu0 0
        %2174 = vmatprep.subr.bf16.mxu0 0
        %2175 = vmatpush1.bf16.msra.mxu0 0
        %2176 = vmatprep.subr.bf16.mxu0 0
        %2177 = vmatpush1.bf16.msra.mxu0 0
        %2178 = vmatprep.subr.bf16.mxu0 0
        %2179 = vmatpush1.bf16.msra.mxu0 0
        %2180 = vmatprep.subr.bf16.mxu0 0
        %2181 = vmatpush1.bf16.msra.mxu0 0
        %2182 = vmatprep.subr.bf16.mxu0 0
        %2183 = vmatpush1.bf16.msra.mxu0 0
        %2184 = vmatprep.mubr.bf16.mxu0 0
        %2185 = vmatmul.mubr.bf16.gmra.mrb[0].mxu0 %v2150
        %v2186 = vpop.f32.mrb[0].mxu0
        %v2187 = vadd.f32 0.0, %v2186
        %v2188 = vpop.f32.mrb[0].mxu0
        %v2189 = vadd.f32 0.0, %v2188
        %v2190 = vpop.f32.mrb[0].mxu0
        %v2191 = vadd.f32 0.0, %v2190
        %v2192 = vpop.f32.mrb[0].mxu0
        %v2193 = vadd.f32 0.0, %v2192
        %2194 = vdwg.mxu0
        %v2195 = vadd.f32 %v2071, %v2187
        %v2196 = vadd.f32 %v2072, %v2189
        %v2197 = vadd.f32 %v2073, %v2191
        %v2198 = vadd.f32 %v2074, %v2193
        %v2199 = vld [vmem:[#allocation11] sm:$0xff]
        %v2200 = vld [vmem:[#allocation11 + $0x8] sm:$0xff]
        %v2201 = vld [vmem:[#allocation11 + $0x10] sm:$0xff]
        %v2202 = vld [vmem:[#allocation11 + $0x18] sm:$0xff]
        %v2203 = vld [vmem:[#allocation11 + $0x20] sm:$0xff]
        %v2204 = vld [vmem:[#allocation11 + $0x28] sm:$0xff]
        %v2205 = vld [vmem:[#allocation11 + $0x30] sm:$0xff]
        %v2206 = vld [vmem:[#allocation11 + $0x38] sm:$0xff]
        %v2207 = vld [vmem:[#allocation11 + $0x40] sm:$0xff]
        %v2208 = vld [vmem:[#allocation11 + $0x48] sm:$0xff]
        %v2209 = vld [vmem:[#allocation11 + $0x50] sm:$0xff]
        %v2210 = vld [vmem:[#allocation11 + $0x58] sm:$0xff]
        %v2211 = vld [vmem:[#allocation11 + $0x60] sm:$0xff]
        %v2212 = vld [vmem:[#allocation11 + $0x68] sm:$0xff]
        %v2213 = vld [vmem:[#allocation11 + $0x70] sm:$0xff]
        %v2214 = vld [vmem:[#allocation11 + $0x78] sm:$0xff]
        %v2215 = vld [vmem:[#allocation11 + $0x80] sm:$0xff]
        %v2216 = vld [vmem:[#allocation11 + $0x88] sm:$0xff]
        %v2217 = vld [vmem:[#allocation11 + $0x90] sm:$0xff]
        %v2218 = vld [vmem:[#allocation11 + $0x98] sm:$0xff]
        %v2219 = vld [vmem:[#allocation11 + $0xa0] sm:$0xff]
        %v2220 = vld [vmem:[#allocation11 + $0xa8] sm:$0xff]
        %v2221 = vld [vmem:[#allocation11 + $0xb0] sm:$0xff]
        %v2222 = vld [vmem:[#allocation11 + $0xb8] sm:$0xff]
        %v2223 = vld [vmem:[#allocation11 + $0xc0] sm:$0xff]
        %v2224 = vld [vmem:[#allocation11 + $0xc8] sm:$0xff]
        %v2225 = vld [vmem:[#allocation11 + $0xd0] sm:$0xff]
        %v2226 = vld [vmem:[#allocation11 + $0xd8] sm:$0xff]
        %v2227 = vld [vmem:[#allocation11 + $0xe0] sm:$0xff]
        %v2228 = vld [vmem:[#allocation11 + $0xe8] sm:$0xff]
        %v2229 = vld [vmem:[#allocation11 + $0xf0] sm:$0xff]
        %v2230 = vld [vmem:[#allocation11 + $0xf8] sm:$0xff]
        %2231 = vmatprep.subr.mxu0 0.0
        %2232 = vmatpush1.msra.mxu0 %v2199
        %2233 = vmatprep.subr.mxu0 0.0
        %2234 = vmatpush1.msra.mxu0 %v2200
        %2235 = vmatprep.subr.mxu0 0.0
        %2236 = vmatpush1.msra.mxu0 %v2201
        %2237 = vmatprep.subr.mxu0 0.0
        %2238 = vmatpush1.msra.mxu0 %v2202
        %2239 = vmatprep.subr.mxu0 0.0
        %2240 = vmatpush1.msra.mxu0 %v2203
        %2241 = vmatprep.subr.mxu0 0.0
        %2242 = vmatpush1.msra.mxu0 %v2204
        %2243 = vmatprep.subr.mxu0 0.0
        %2244 = vmatpush1.msra.mxu0 %v2205
        %2245 = vmatprep.subr.mxu0 0.0
        %2246 = vmatpush1.msra.mxu0 %v2206
        %2247 = vmatprep.subr.mxu0 0.0
        %2248 = vmatpush1.msra.mxu0 %v2207
        %2249 = vmatprep.subr.mxu0 0.0
        %2250 = vmatpush1.msra.mxu0 %v2208
        %2251 = vmatprep.subr.mxu0 0.0
        %2252 = vmatpush1.msra.mxu0 %v2209
        %2253 = vmatprep.subr.mxu0 0.0
        %2254 = vmatpush1.msra.mxu0 %v2210
        %2255 = vmatprep.subr.mxu0 0.0
        %2256 = vmatpush1.msra.mxu0 %v2211
        %2257 = vmatprep.subr.mxu0 0.0
        %2258 = vmatpush1.msra.mxu0 %v2212
        %2259 = vmatprep.subr.mxu0 0.0
        %2260 = vmatpush1.msra.mxu0 %v2213
        %2261 = vmatprep.subr.mxu0 0.0
        %2262 = vmatpush1.msra.mxu0 %v2214
        %2263 = vmatprep.subr.mxu0 0.0
        %2264 = vmatpush1.msra.mxu0 %v2215
        %2265 = vmatprep.subr.mxu0 0.0
        %2266 = vmatpush1.msra.mxu0 %v2216
        %2267 = vmatprep.subr.mxu0 0.0
        %2268 = vmatpush1.msra.mxu0 %v2217
        %2269 = vmatprep.subr.mxu0 0.0
        %2270 = vmatpush1.msra.mxu0 %v2218
        %2271 = vmatprep.subr.mxu0 0.0
        %2272 = vmatpush1.msra.mxu0 %v2219
        %2273 = vmatprep.subr.mxu0 0.0
        %2274 = vmatpush1.msra.mxu0 %v2220
        %2275 = vmatprep.subr.mxu0 0.0
        %2276 = vmatpush1.msra.mxu0 %v2221
        %2277 = vmatprep.subr.mxu0 0.0
        %2278 = vmatpush1.msra.mxu0 %v2222
        %2279 = vmatprep.subr.mxu0 0.0
        %2280 = vmatpush1.msra.mxu0 %v2223
        %2281 = vmatprep.subr.mxu0 0.0
        %2282 = vmatpush1.msra.mxu0 %v2224
        %2283 = vmatprep.subr.mxu0 0.0
        %2284 = vmatpush1.msra.mxu0 %v2225
        %2285 = vmatprep.subr.mxu0 0.0
        %2286 = vmatpush1.msra.mxu0 %v2226
        %2287 = vmatprep.subr.mxu0 0.0
        %2288 = vmatpush1.msra.mxu0 %v2227
        %2289 = vmatprep.subr.mxu0 0.0
        %2290 = vmatpush1.msra.mxu0 %v2228
        %2291 = vmatprep.subr.mxu0 0.0
        %2292 = vmatpush1.msra.mxu0 %v2229
        %2293 = vmatprep.subr.mxu0 0.0
        %2294 = vmatpush1.msra.mxu0 %v2230
        %2295 = vmatprep.mubr.f32.mxu0 %v2196
        %2296 = vmatmul.mubr.f32.gmra.mrb[0].mxu0 %v2195
        %v2297 = vpop.f32.mrb[0].mxu0
        %v2298 = vadd.f32 0.0, %v2297
        %v2299 = vpop.f32.mrb[0].mxu0
        %2300 = vmatprep.mubr.f32.mxu0 %v2198
        %2301 = vmatmul.mubr.f32.gmra.mrb[0].mxu0 %v2197
        %v2302 = vpop.f32.mrb[0].mxu0
        %v2303 = vadd.f32 0.0, %v2302
        %v2304 = vpop.f32.mrb[0].mxu0
        %2305 = vdwg.mxu0
        %s2306 = scalar_lea.vmem [#allocation11], 256
        %v2307 = vld [vmem:[%s2306] sm:$0xff]
        %v2308 = vld [vmem:[%s2306 + $0x8] sm:$0xff]
        %v2309 = vld [vmem:[%s2306 + $0x10] sm:$0xff]
        %v2310 = vld [vmem:[%s2306 + $0x18] sm:$0xff]
        %v2311 = vld [vmem:[%s2306 + $0x20] sm:$0xff]
        %v2312 = vld [vmem:[%s2306 + $0x28] sm:$0xff]
        %v2313 = vld [vmem:[%s2306 + $0x30] sm:$0xff]
        %v2314 = vld [vmem:[%s2306 + $0x38] sm:$0xff]
        %v2315 = vld [vmem:[%s2306 + $0x40] sm:$0xff]
        %v2316 = vld [vmem:[%s2306 + $0x48] sm:$0xff]
        %v2317 = vld [vmem:[%s2306 + $0x50] sm:$0xff]
        %v2318 = vld [vmem:[%s2306 + $0x58] sm:$0xff]
        %v2319 = vld [vmem:[%s2306 + $0x60] sm:$0xff]
        %v2320 = vld [vmem:[%s2306 + $0x68] sm:$0xff]
        %v2321 = vld [vmem:[%s2306 + $0x70] sm:$0xff]
        %v2322 = vld [vmem:[%s2306 + $0x78] sm:$0xff]
        %v2323 = vld [vmem:[%s2306 + $0x80] sm:$0xff]
        %v2324 = vld [vmem:[%s2306 + $0x88] sm:$0xff]
        %v2325 = vld [vmem:[%s2306 + $0x90] sm:$0xff]
        %v2326 = vld [vmem:[%s2306 + $0x98] sm:$0xff]
        %v2327 = vld [vmem:[%s2306 + $0xa0] sm:$0xff]
        %v2328 = vld [vmem:[%s2306 + $0xa8] sm:$0xff]
        %v2329 = vld [vmem:[%s2306 + $0xb0] sm:$0xff]
        %v2330 = vld [vmem:[%s2306 + $0xb8] sm:$0xff]
        %v2331 = vld [vmem:[%s2306 + $0xc0] sm:$0xff]
        %v2332 = vld [vmem:[%s2306 + $0xc8] sm:$0xff]
        %v2333 = vld [vmem:[%s2306 + $0xd0] sm:$0xff]
        %v2334 = vld [vmem:[%s2306 + $0xd8] sm:$0xff]
        %v2335 = vld [vmem:[%s2306 + $0xe0] sm:$0xff]
        %v2336 = vld [vmem:[%s2306 + $0xe8] sm:$0xff]
        %v2337 = vld [vmem:[%s2306 + $0xf0] sm:$0xff]
        %v2338 = vld [vmem:[%s2306 + $0xf8] sm:$0xff]
        %2339 = vmatprep.subr.mxu0 0.0
        %2340 = vmatpush1.msra.mxu0 %v2307
        %2341 = vmatprep.subr.mxu0 0.0
        %2342 = vmatpush1.msra.mxu0 %v2308
        %2343 = vmatprep.subr.mxu0 0.0
        %2344 = vmatpush1.msra.mxu0 %v2309
        %2345 = vmatprep.subr.mxu0 0.0
        %2346 = vmatpush1.msra.mxu0 %v2310
        %2347 = vmatprep.subr.mxu0 0.0
        %2348 = vmatpush1.msra.mxu0 %v2311
        %2349 = vmatprep.subr.mxu0 0.0
        %2350 = vmatpush1.msra.mxu0 %v2312
        %2351 = vmatprep.subr.mxu0 0.0
        %2352 = vmatpush1.msra.mxu0 %v2313
        %2353 = vmatprep.subr.mxu0 0.0
        %2354 = vmatpush1.msra.mxu0 %v2314
        %2355 = vmatprep.subr.mxu0 0.0
        %2356 = vmatpush1.msra.mxu0 %v2315
        %2357 = vmatprep.subr.mxu0 0.0
        %2358 = vmatpush1.msra.mxu0 %v2316
        %2359 = vmatprep.subr.mxu0 0.0
        %2360 = vmatpush1.msra.mxu0 %v2317
        %2361 = vmatprep.subr.mxu0 0.0
        %2362 = vmatpush1.msra.mxu0 %v2318
        %2363 = vmatprep.subr.mxu0 0.0
        %2364 = vmatpush1.msra.mxu0 %v2319
        %2365 = vmatprep.subr.mxu0 0.0
        %2366 = vmatpush1.msra.mxu0 %v2320
        %2367 = vmatprep.subr.mxu0 0.0
        %2368 = vmatpush1.msra.mxu0 %v2321
        %2369 = vmatprep.subr.mxu0 0.0
        %2370 = vmatpush1.msra.mxu0 %v2322
        %2371 = vmatprep.subr.mxu0 0.0
        %2372 = vmatpush1.msra.mxu0 %v2323
        %2373 = vmatprep.subr.mxu0 0.0
        %2374 = vmatpush1.msra.mxu0 %v2324
        %2375 = vmatprep.subr.mxu0 0.0
        %2376 = vmatpush1.msra.mxu0 %v2325
        %2377 = vmatprep.subr.mxu0 0.0
        %2378 = vmatpush1.msra.mxu0 %v2326
        %2379 = vmatprep.subr.mxu0 0.0
        %2380 = vmatpush1.msra.mxu0 %v2327
        %2381 = vmatprep.subr.mxu0 0.0
        %2382 = vmatpush1.msra.mxu0 %v2328
        %2383 = vmatprep.subr.mxu0 0.0
        %2384 = vmatpush1.msra.mxu0 %v2329
        %2385 = vmatprep.subr.mxu0 0.0
        %2386 = vmatpush1.msra.mxu0 %v2330
        %2387 = vmatprep.subr.mxu0 0.0
        %2388 = vmatpush1.msra.mxu0 %v2331
        %2389 = vmatprep.subr.mxu0 0.0
        %2390 = vmatpush1.msra.mxu0 %v2332
        %2391 = vmatprep.subr.mxu0 0.0
        %2392 = vmatpush1.msra.mxu0 %v2333
        %2393 = vmatprep.subr.mxu0 0.0
        %2394 = vmatpush1.msra.mxu0 %v2334
        %2395 = vmatprep.subr.mxu0 0.0
        %2396 = vmatpush1.msra.mxu0 %v2335
        %2397 = vmatprep.subr.mxu0 0.0
        %2398 = vmatpush1.msra.mxu0 %v2336
        %2399 = vmatprep.subr.mxu0 0.0
        %2400 = vmatpush1.msra.mxu0 %v2337
        %2401 = vmatprep.subr.mxu0 0.0
        %2402 = vmatpush1.msra.mxu0 %v2338
        %2403 = vmatprep.mubr.f32.mxu0 %v2196
        %2404 = vmatmul.mubr.f32.gmra.mrb[0].mxu0 %v2195
        %v2405 = vpop.f32.mrb[0].mxu0
        %v2406 = vadd.f32 0.0, %v2405
        %v2407 = vpop.f32.mrb[0].mxu0
        %2408 = vmatprep.mubr.f32.mxu0 %v2198
        %2409 = vmatmul.mubr.f32.gmra.mrb[0].mxu0 %v2197
        %v2410 = vpop.f32.mrb[0].mxu0
        %v2411 = vadd.f32 0.0, %v2410
        %v2412 = vpop.f32.mrb[0].mxu0
        %2413 = vdwg.mxu0
        %v2414 = vmax.f32 %v2298, %v2406
        %v2415 = vmax.f32 %v2303, %v2411
        %v2416 = vld [vmem:[%s8] sm:$0xff]
        %vm2417 = vcmask 80896
        %v2419 = vsel %vm2417, %v2416, 0
        %vm2421 = vcmask 1041408
        %v2423 = vsel %vm2421, %v2415, 0
        %2425 = vmatprep.subr.mxu0 0.0
        %2426 = vmatpush1.msra.mxu0 %v2414
        %2427 = vmatprep.subr.mxu0 0.0
        %2428 = vmatpush1.msra.mxu0 %v2423
        %2429 = vmatprep.subr.mxu0 0.0
        %2430 = vmatpush1.msra.mxu0 0.0
        %2431 = vmatprep.subr.mxu0 0.0
        %2432 = vmatpush1.msra.mxu0 0.0
        %2433 = vmatprep.subr.mxu0 0.0
        %2434 = vmatpush1.msra.mxu0 0.0
        %2435 = vmatprep.subr.mxu0 0.0
        %2436 = vmatpush1.msra.mxu0 0.0
        %2437 = vmatprep.subr.mxu0 0.0
        %2438 = vmatpush1.msra.mxu0 0.0
        %2439 = vmatprep.subr.mxu0 0.0
        %2440 = vmatpush1.msra.mxu0 0.0
        %2441 = vmatprep.subr.mxu0 0.0
        %2442 = vmatpush1.msra.mxu0 0.0
        %2443 = vmatprep.subr.mxu0 0.0
        %2444 = vmatpush1.msra.mxu0 0.0
        %2445 = vmatprep.subr.mxu0 0.0
        %2446 = vmatpush1.msra.mxu0 0.0
        %2447 = vmatprep.subr.mxu0 0.0
        %2448 = vmatpush1.msra.mxu0 0.0
        %2449 = vmatprep.subr.mxu0 0.0
        %2450 = vmatpush1.msra.mxu0 0.0
        %2451 = vmatprep.subr.mxu0 0.0
        %2452 = vmatpush1.msra.mxu0 0.0
        %2453 = vmatprep.subr.mxu0 0.0
        %2454 = vmatpush1.msra.mxu0 0.0
        %2455 = vmatprep.subr.mxu0 0.0
        %2456 = vmatpush1.msra.mxu0 0.0
        %2457 = vmatprep.subr.mxu0 0.0
        %2458 = vmatpush1.msra.mxu0 0.0
        %2459 = vmatprep.subr.mxu0 0.0
        %2460 = vmatpush1.msra.mxu0 0.0
        %2461 = vmatprep.subr.mxu0 0.0
        %2462 = vmatpush1.msra.mxu0 0.0
        %2463 = vmatprep.subr.mxu0 0.0
        %2464 = vmatpush1.msra.mxu0 0.0
        %2465 = vmatprep.subr.mxu0 0.0
        %2466 = vmatpush1.msra.mxu0 0.0
        %2467 = vmatprep.subr.mxu0 0.0
        %2468 = vmatpush1.msra.mxu0 0.0
        %2469 = vmatprep.subr.mxu0 0.0
        %2470 = vmatpush1.msra.mxu0 0.0
        %2471 = vmatprep.subr.mxu0 0.0
        %2472 = vmatpush1.msra.mxu0 0.0
        %2473 = vmatprep.subr.mxu0 0.0
        %2474 = vmatpush1.msra.mxu0 0.0
        %2475 = vmatprep.subr.mxu0 0.0
        %2476 = vmatpush1.msra.mxu0 0.0
        %2477 = vmatprep.subr.mxu0 0.0
        %2478 = vmatpush1.msra.mxu0 0.0
        %2479 = vmatprep.subr.mxu0 0.0
        %2480 = vmatpush1.msra.mxu0 0.0
        %2481 = vmatprep.subr.mxu0 0.0
        %2482 = vmatpush1.msra.mxu0 0.0
        %2483 = vmatprep.subr.mxu0 0.0
        %2484 = vmatpush1.msra.mxu0 0.0
        %2485 = vmatprep.subr.mxu0 0.0
        %2486 = vmatpush1.msra.mxu0 0.0
        %2487 = vmatprep.subr.mxu0 0.0
        %2488 = vmatpush1.msra.mxu0 0.0
        %2489 = vmatprep.mubr.f32.mxu0 0.0
        %2490 = vmatmul.mubr.f32.gmra.mrb[0].mxu0 %v2419
        %v2491 = vpop.f32.mrb[0].mxu0
        %v2492 = vadd.f32 0.0, %v2491
        %v2493 = vpop.f32.mrb[0].mxu0
        %2494 = vdwg.mxu0
        %s2495 = scalar_lea.vmem %s8, 8
        %v2496 = vld [vmem:[%s2495] sm:$0xff]
        %v2498 = vsel %vm2417, %v2496, 0
        %2500 = vmatprep.subr.mxu0 0.0
        %2501 = vmatpush1.msra.mxu0 %v2414
        %2502 = vmatprep.subr.mxu0 0.0
        %2503 = vmatpush1.msra.mxu0 %v2423
        %2504 = vmatprep.subr.mxu0 0.0
        %2505 = vmatpush1.msra.mxu0 0.0
        %2506 = vmatprep.subr.mxu0 0.0
        %2507 = vmatpush1.msra.mxu0 0.0
        %2508 = vmatprep.subr.mxu0 0.0
        %2509 = vmatpush1.msra.mxu0 0.0
        %2510 = vmatprep.subr.mxu0 0.0
        %2511 = vmatpush1.msra.mxu0 0.0
        %2512 = vmatprep.subr.mxu0 0.0
        %2513 = vmatpush1.msra.mxu0 0.0
        %2514 = vmatprep.subr.mxu0 0.0
        %2515 = vmatpush1.msra.mxu0 0.0
        %2516 = vmatprep.subr.mxu0 0.0
        %2517 = vmatpush1.msra.mxu0 0.0
        %2518 = vmatprep.subr.mxu0 0.0
        %2519 = vmatpush1.msra.mxu0 0.0
        %2520 = vmatprep.subr.mxu0 0.0
        %2521 = vmatpush1.msra.mxu0 0.0
        %2522 = vmatprep.subr.mxu0 0.0
        %2523 = vmatpush1.msra.mxu0 0.0
        %2524 = vmatprep.subr.mxu0 0.0
        %2525 = vmatpush1.msra.mxu0 0.0
        %2526 = vmatprep.subr.mxu0 0.0
        %2527 = vmatpush1.msra.mxu0 0.0
        %2528 = vmatprep.subr.mxu0 0.0
        %2529 = vmatpush1.msra.mxu0 0.0
        %2530 = vmatprep.subr.mxu0 0.0
        %2531 = vmatpush1.msra.mxu0 0.0
        %2532 = vmatprep.subr.mxu0 0.0
        %2533 = vmatpush1.msra.mxu0 0.0
        %2534 = vmatprep.subr.mxu0 0.0
        %2535 = vmatpush1.msra.mxu0 0.0
        %2536 = vmatprep.subr.mxu0 0.0
        %2537 = vmatpush1.msra.mxu0 0.0
        %2538 = vmatprep.subr.mxu0 0.0
        %2539 = vmatpush1.msra.mxu0 0.0
        %2540 = vmatprep.subr.mxu0 0.0
        %2541 = vmatpush1.msra.mxu0 0.0
        %2542 = vmatprep.subr.mxu0 0.0
        %2543 = vmatpush1.msra.mxu0 0.0
        %2544 = vmatprep.subr.mxu0 0.0
        %2545 = vmatpush1.msra.mxu0 0.0
        %2546 = vmatprep.subr.mxu0 0.0
        %2547 = vmatpush1.msra.mxu0 0.0
        %2548 = vmatprep.subr.mxu0 0.0
        %2549 = vmatpush1.msra.mxu0 0.0
        %2550 = vmatprep.subr.mxu0 0.0
        %2551 = vmatpush1.msra.mxu0 0.0
        %2552 = vmatprep.subr.mxu0 0.0
        %2553 = vmatpush1.msra.mxu0 0.0
        %2554 = vmatprep.subr.mxu0 0.0
        %2555 = vmatpush1.msra.mxu0 0.0
        %2556 = vmatprep.subr.mxu0 0.0
        %2557 = vmatpush1.msra.mxu0 0.0
        %2558 = vmatprep.subr.mxu0 0.0
        %2559 = vmatpush1.msra.mxu0 0.0
        %2560 = vmatprep.subr.mxu0 0.0
        %2561 = vmatpush1.msra.mxu0 0.0
        %2562 = vmatprep.subr.mxu0 0.0
        %2563 = vmatpush1.msra.mxu0 0.0
        %2564 = vmatprep.mubr.f32.mxu0 0.0
        %2565 = vmatmul.mubr.f32.gmra.mrb[0].mxu0 %v2498
        %v2566 = vpop.f32.mrb[0].mxu0
        %v2567 = vadd.f32 0.0, %v2566
        %v2568 = vpop.f32.mrb[0].mxu0
        %2569 = vdwg.mxu0
        %v2570 = vmax.f32 %v2492, %v2567
        %v2571 = vsub.f32 0.0, %v2570
        %v2572 = vmul.f32 %v2571, 1.442695
        %v2573 = vpow.pop %v2572
        %v2574 = vadd.f32 %v2573, 1.0
        %v2575 = vrcp.pop %v2574
        %v2576 = vld [vmem:[%s10] sm:$0x1]
        %v2577 = vld [vmem:[#allocation13] sm:$0xf]
        %v2578 = vld [vmem:[#allocation13 + $0x4] sm:$0xf]
        %v2579 = vld [vmem:[#allocation13 + $0x8] sm:$0xf]
        %v2580 = vld [vmem:[#allocation13 + $0xc] sm:$0xf]
        %v2581 = vld [vmem:[#allocation13 + $0x10] sm:$0xf]
        %v2582 = vld [vmem:[#allocation13 + $0x14] sm:$0xf]
        %v2583 = vld [vmem:[#allocation13 + $0x18] sm:$0xf]
        %v2584 = vld [vmem:[#allocation13 + $0x1c] sm:$0xf]
        %v2585 = vld [vmem:[#allocation13 + $0x20] sm:$0xf]
        %v2586 = vld [vmem:[#allocation13 + $0x24] sm:$0xf]
        %v2587 = vld [vmem:[#allocation13 + $0x28] sm:$0xf]
        %v2588 = vld [vmem:[#allocation13 + $0x2c] sm:$0xf]
        %v2589 = vld [vmem:[#allocation13 + $0x30] sm:$0xf]
        %v2590 = vld [vmem:[#allocation13 + $0x34] sm:$0xf]
        %v2591 = vld [vmem:[#allocation13 + $0x38] sm:$0xf]
        %v2592 = vld [vmem:[#allocation13 + $0x3c] sm:$0xf]
        %v2593 = vpack.c.bf16 %v2575, %v2575
        %v2610 = vunpack.c.l.b16 %v2577
        %v2611 = vunpack.c.l.b16 %v2578
        %v2612 = vunpack.c.l.b16 %v2579
        %v2613 = vunpack.c.l.b16 %v2580
        %v2614 = vunpack.c.l.b16 %v2581
        %v2615 = vunpack.c.l.b16 %v2582
        %v2616 = vunpack.c.l.b16 %v2583
        %v2617 = vunpack.c.l.b16 %v2584
        %v2618 = vunpack.c.l.b16 %v2585
        %v2619 = vunpack.c.l.b16 %v2586
        %v2620 = vunpack.c.l.b16 %v2587
        %v2621 = vunpack.c.l.b16 %v2588
        %v2622 = vunpack.c.l.b16 %v2589
        %v2623 = vunpack.c.l.b16 %v2590
        %v2624 = vunpack.c.l.b16 %v2591
        %v2625 = vunpack.c.l.b16 %v2592
        %v2626 = vpack.c.b16 %v2611, %v2610
        %v2627 = vpack.c.b16 %v2613, %v2612
        %v2628 = vpack.c.b16 %v2615, %v2614
        %v2629 = vpack.c.b16 %v2617, %v2616
        %v2630 = vpack.c.b16 %v2619, %v2618
        %v2631 = vpack.c.b16 %v2621, %v2620
        %v2632 = vpack.c.b16 %v2623, %v2622
        %v2633 = vpack.c.b16 %v2625, %v2624
        %2642 = vmatprep.subr.bf16.mxu0 0
        %2643 = vmatpush1.bf16.msra.mxu0 %v2626
        %2644 = vmatprep.subr.bf16.mxu0 0
        %2645 = vmatpush1.bf16.msra.mxu0 %v2627
        %2646 = vmatprep.subr.bf16.mxu0 0
        %2647 = vmatpush1.bf16.msra.mxu0 %v2628
        %2648 = vmatprep.subr.bf16.mxu0 0
        %2649 = vmatpush1.bf16.msra.mxu0 %v2629
        %2650 = vmatprep.subr.bf16.mxu0 0
        %2651 = vmatpush1.bf16.msra.mxu0 %v2630
        %2652 = vmatprep.subr.bf16.mxu0 0
        %2653 = vmatpush1.bf16.msra.mxu0 %v2631
        %2654 = vmatprep.subr.bf16.mxu0 0
        %2655 = vmatpush1.bf16.msra.mxu0 %v2632
        %2656 = vmatprep.subr.bf16.mxu0 0
        %2657 = vmatpush1.bf16.msra.mxu0 %v2633
        %2658 = vmatprep.subr.bf16.mxu0 0
        %2659 = vmatpush1.bf16.msra.mxu0 0
        %2660 = vmatprep.subr.bf16.mxu0 0
        %2661 = vmatpush1.bf16.msra.mxu0 0
        %2662 = vmatprep.subr.bf16.mxu0 0
        %2663 = vmatpush1.bf16.msra.mxu0 0
        %2664 = vmatprep.subr.bf16.mxu0 0
        %2665 = vmatpush1.bf16.msra.mxu0 0
        %2666 = vmatprep.subr.bf16.mxu0 0
        %2667 = vmatpush1.bf16.msra.mxu0 0
        %2668 = vmatprep.subr.bf16.mxu0 0
        %2669 = vmatpush1.bf16.msra.mxu0 0
        %2670 = vmatprep.subr.bf16.mxu0 0
        %2671 = vmatpush1.bf16.msra.mxu0 0
        %2672 = vmatprep.subr.bf16.mxu0 0
        %2673 = vmatpush1.bf16.msra.mxu0 0
        %2674 = vmatprep.mubr.bf16.mxu0 0
        %2675 = vmatmul.mubr.bf16.gmra.mrb[0].mxu0 %v2593
        %v2676 = vpop.f32.mrb[0].mxu0
        %v2677 = vadd.f32 0.0, %v2676
        %v2678 = vpop.f32.mrb[0].mxu0
        %v2679 = vpop.f32.mrb[0].mxu0
        %v2680 = vpop.f32.mrb[0].mxu0
        %2681 = vdwg.mxu0
        %v2682 = vadd.f32 %v2576, %v2677
        %s2683 = scalar_lea.vmem [#allocation13], 64
        %v2684 = vld [vmem:[%s2683] sm:$0xf]
        %v2685 = vld [vmem:[%s2683 + $0x4] sm:$0xf]
        %v2686 = vld [vmem:[%s2683 + $0x8] sm:$0xf]
        %v2687 = vld [vmem:[%s2683 + $0xc] sm:$0xf]
        %v2688 = vld [vmem:[%s2683 + $0x10] sm:$0xf]
        %v2689 = vld [vmem:[%s2683 + $0x14] sm:$0xf]
        %v2690 = vld [vmem:[%s2683 + $0x18] sm:$0xf]
        %v2691 = vld [vmem:[%s2683 + $0x1c] sm:$0xf]
        %v2692 = vld [vmem:[%s2683 + $0x20] sm:$0xf]
        %v2693 = vld [vmem:[%s2683 + $0x24] sm:$0xf]
        %v2694 = vld [vmem:[%s2683 + $0x28] sm:$0xf]
        %v2695 = vld [vmem:[%s2683 + $0x2c] sm:$0xf]
        %v2696 = vld [vmem:[%s2683 + $0x30] sm:$0xf]
        %v2697 = vld [vmem:[%s2683 + $0x34] sm:$0xf]
        %v2698 = vld [vmem:[%s2683 + $0x38] sm:$0xf]
        %v2699 = vld [vmem:[%s2683 + $0x3c] sm:$0xf]
        %v2701 = vshrl.u32 %v2593, 16
        %v2720 = vunpack.c.l.b16 %v2684
        %v2721 = vunpack.c.l.b16 %v2685
        %v2722 = vunpack.c.l.b16 %v2686
        %v2723 = vunpack.c.l.b16 %v2687
        %v2724 = vunpack.c.l.b16 %v2688
        %v2725 = vunpack.c.l.b16 %v2689
        %v2726 = vunpack.c.l.b16 %v2690
        %v2727 = vunpack.c.l.b16 %v2691
        %v2728 = vunpack.c.l.b16 %v2692
        %v2729 = vunpack.c.l.b16 %v2693
        %v2730 = vunpack.c.l.b16 %v2694
        %v2731 = vunpack.c.l.b16 %v2695
        %v2732 = vunpack.c.l.b16 %v2696
        %v2733 = vunpack.c.l.b16 %v2697
        %v2734 = vunpack.c.l.b16 %v2698
        %v2735 = vunpack.c.l.b16 %v2699
        %v2736 = vpack.c.b16 %v2721, %v2720
        %v2737 = vpack.c.b16 %v2723, %v2722
        %v2738 = vpack.c.b16 %v2725, %v2724
        %v2739 = vpack.c.b16 %v2727, %v2726
        %v2740 = vpack.c.b16 %v2729, %v2728
        %v2741 = vpack.c.b16 %v2731, %v2730
        %v2742 = vpack.c.b16 %v2733, %v2732
        %v2743 = vpack.c.b16 %v2735, %v2734
        %2752 = vmatprep.subr.bf16.mxu0 0
        %2753 = vmatpush1.bf16.msra.mxu0 %v2736
        %2754 = vmatprep.subr.bf16.mxu0 0
        %2755 = vmatpush1.bf16.msra.mxu0 %v2737
        %2756 = vmatprep.subr.bf16.mxu0 0
        %2757 = vmatpush1.bf16.msra.mxu0 %v2738
        %2758 = vmatprep.subr.bf16.mxu0 0
        %2759 = vmatpush1.bf16.msra.mxu0 %v2739
        %2760 = vmatprep.subr.bf16.mxu0 0
        %2761 = vmatpush1.bf16.msra.mxu0 %v2740
        %2762 = vmatprep.subr.bf16.mxu0 0
        %2763 = vmatpush1.bf16.msra.mxu0 %v2741
        %2764 = vmatprep.subr.bf16.mxu0 0
        %2765 = vmatpush1.bf16.msra.mxu0 %v2742
        %2766 = vmatprep.subr.bf16.mxu0 0
        %2767 = vmatpush1.bf16.msra.mxu0 %v2743
        %2768 = vmatprep.subr.bf16.mxu0 0
        %2769 = vmatpush1.bf16.msra.mxu0 0
        %2770 = vmatprep.subr.bf16.mxu0 0
        %2771 = vmatpush1.bf16.msra.mxu0 0
        %2772 = vmatprep.subr.bf16.mxu0 0
        %2773 = vmatpush1.bf16.msra.mxu0 0
        %2774 = vmatprep.subr.bf16.mxu0 0
        %2775 = vmatpush1.bf16.msra.mxu0 0
        %2776 = vmatprep.subr.bf16.mxu0 0
        %2777 = vmatpush1.bf16.msra.mxu0 0
        %2778 = vmatprep.subr.bf16.mxu0 0
        %2779 = vmatpush1.bf16.msra.mxu0 0
        %2780 = vmatprep.subr.bf16.mxu0 0
        %2781 = vmatpush1.bf16.msra.mxu0 0
        %2782 = vmatprep.subr.bf16.mxu0 0
        %2783 = vmatpush1.bf16.msra.mxu0 0
        %2784 = vmatprep.mubr.bf16.mxu0 0
        %2785 = vmatmul.mubr.bf16.gmra.mrb[0].mxu0 %v2701
        %v2786 = vpop.f32.mrb[0].mxu0
        %v2787 = vadd.f32 0.0, %v2786
        %v2788 = vpop.f32.mrb[0].mxu0
        %v2789 = vpop.f32.mrb[0].mxu0
        %v2790 = vpop.f32.mrb[0].mxu0
        %2791 = vdwg.mxu0
        %v2792 = vadd.f32 %v2682, %v2787
        %s2793 = scalar_lea.vmem [#allocation13], 128
        %v2794 = vld [vmem:[%s2793] sm:$0xf]
        %v2795 = vld [vmem:[%s2793 + $0x4] sm:$0xf]
        %v2796 = vld [vmem:[%s2793 + $0x8] sm:$0xf]
        %v2797 = vld [vmem:[%s2793 + $0xc] sm:$0xf]
        %v2798 = vld [vmem:[%s2793 + $0x10] sm:$0xf]
        %v2799 = vld [vmem:[%s2793 + $0x14] sm:$0xf]
        %v2800 = vld [vmem:[%s2793 + $0x18] sm:$0xf]
        %v2801 = vld [vmem:[%s2793 + $0x1c] sm:$0xf]
        %v2802 = vld [vmem:[%s2793 + $0x20] sm:$0xf]
        %v2803 = vld [vmem:[%s2793 + $0x24] sm:$0xf]
        %v2804 = vld [vmem:[%s2793 + $0x28] sm:$0xf]
        %v2805 = vld [vmem:[%s2793 + $0x2c] sm:$0xf]
        %v2806 = vld [vmem:[%s2793 + $0x30] sm:$0xf]
        %v2807 = vld [vmem:[%s2793 + $0x34] sm:$0xf]
        %v2808 = vld [vmem:[%s2793 + $0x38] sm:$0xf]
        %v2809 = vld [vmem:[%s2793 + $0x3c] sm:$0xf]
        %v2811 = vrot.slane %v2593, 1
        %v2829 = vunpack.c.l.b16 %v2794
        %v2830 = vunpack.c.l.b16 %v2795
        %v2831 = vunpack.c.l.b16 %v2796
        %v2832 = vunpack.c.l.b16 %v2797
        %v2833 = vunpack.c.l.b16 %v2798
        %v2834 = vunpack.c.l.b16 %v2799
        %v2835 = vunpack.c.l.b16 %v2800
        %v2836 = vunpack.c.l.b16 %v2801
        %v2837 = vunpack.c.l.b16 %v2802
        %v2838 = vunpack.c.l.b16 %v2803
        %v2839 = vunpack.c.l.b16 %v2804
        %v2840 = vunpack.c.l.b16 %v2805
        %v2841 = vunpack.c.l.b16 %v2806
        %v2842 = vunpack.c.l.b16 %v2807
        %v2843 = vunpack.c.l.b16 %v2808
        %v2844 = vunpack.c.l.b16 %v2809
        %v2845 = vpack.c.b16 %v2830, %v2829
        %v2846 = vpack.c.b16 %v2832, %v2831
        %v2847 = vpack.c.b16 %v2834, %v2833
        %v2848 = vpack.c.b16 %v2836, %v2835
        %v2849 = vpack.c.b16 %v2838, %v2837
        %v2850 = vpack.c.b16 %v2840, %v2839
        %v2851 = vpack.c.b16 %v2842, %v2841
        %v2852 = vpack.c.b16 %v2844, %v2843
        %2861 = vmatprep.subr.bf16.mxu0 0
        %2862 = vmatpush1.bf16.msra.mxu0 %v2845
        %2863 = vmatprep.subr.bf16.mxu0 0
        %2864 = vmatpush1.bf16.msra.mxu0 %v2846
        %2865 = vmatprep.subr.bf16.mxu0 0
        %2866 = vmatpush1.bf16.msra.mxu0 %v2847
        %2867 = vmatprep.subr.bf16.mxu0 0
        %2868 = vmatpush1.bf16.msra.mxu0 %v2848
        %2869 = vmatprep.subr.bf16.mxu0 0
        %2870 = vmatpush1.bf16.msra.mxu0 %v2849
        %2871 = vmatprep.subr.bf16.mxu0 0
        %2872 = vmatpush1.bf16.msra.mxu0 %v2850
        %2873 = vmatprep.subr.bf16.mxu0 0
        %2874 = vmatpush1.bf16.msra.mxu0 %v2851
        %2875 = vmatprep.subr.bf16.mxu0 0
        %2876 = vmatpush1.bf16.msra.mxu0 %v2852
        %2877 = vmatprep.subr.bf16.mxu0 0
        %2878 = vmatpush1.bf16.msra.mxu0 0
        %2879 = vmatprep.subr.bf16.mxu0 0
        %2880 = vmatpush1.bf16.msra.mxu0 0
        %2881 = vmatprep.subr.bf16.mxu0 0
        %2882 = vmatpush1.bf16.msra.mxu0 0
        %2883 = vmatprep.subr.bf16.mxu0 0
        %2884 = vmatpush1.bf16.msra.mxu0 0
        %2885 = vmatprep.subr.bf16.mxu0 0
        %2886 = vmatpush1.bf16.msra.mxu0 0
        %2887 = vmatprep.subr.bf16.mxu0 0
        %2888 = vmatpush1.bf16.msra.mxu0 0
        %2889 = vmatprep.subr.bf16.mxu0 0
        %2890 = vmatpush1.bf16.msra.mxu0 0
        %2891 = vmatprep.subr.bf16.mxu0 0
        %2892 = vmatpush1.bf16.msra.mxu0 0
        %2893 = vmatprep.mubr.bf16.mxu0 0
        %2894 = vmatmul.mubr.bf16.gmra.mrb[0].mxu0 %v2811
        %v2895 = vpop.f32.mrb[0].mxu0
        %v2896 = vadd.f32 0.0, %v2895
        %v2897 = vpop.f32.mrb[0].mxu0
        %v2898 = vpop.f32.mrb[0].mxu0
        %v2899 = vpop.f32.mrb[0].mxu0
        %2900 = vdwg.mxu0
        %v2901 = vadd.f32 %v2792, %v2896
        %s2902 = scalar_lea.vmem [#allocation13], 192
        %v2903 = vld [vmem:[%s2902] sm:$0xf]
        %v2904 = vld [vmem:[%s2902 + $0x4] sm:$0xf]
        %v2905 = vld [vmem:[%s2902 + $0x8] sm:$0xf]
        %v2906 = vld [vmem:[%s2902 + $0xc] sm:$0xf]
        %v2907 = vld [vmem:[%s2902 + $0x10] sm:$0xf]
        %v2908 = vld [vmem:[%s2902 + $0x14] sm:$0xf]
        %v2909 = vld [vmem:[%s2902 + $0x18] sm:$0xf]
        %v2910 = vld [vmem:[%s2902 + $0x1c] sm:$0xf]
        %v2911 = vld [vmem:[%s2902 + $0x20] sm:$0xf]
        %v2912 = vld [vmem:[%s2902 + $0x24] sm:$0xf]
        %v2913 = vld [vmem:[%s2902 + $0x28] sm:$0xf]
        %v2914 = vld [vmem:[%s2902 + $0x2c] sm:$0xf]
        %v2915 = vld [vmem:[%s2902 + $0x30] sm:$0xf]
        %v2916 = vld [vmem:[%s2902 + $0x34] sm:$0xf]
        %v2917 = vld [vmem:[%s2902 + $0x38] sm:$0xf]
        %v2918 = vld [vmem:[%s2902 + $0x3c] sm:$0xf]
        %v2919 = vrot.slane %v2701, 1
        %v2937 = vunpack.c.l.b16 %v2903
        %v2938 = vunpack.c.l.b16 %v2904
        %v2939 = vunpack.c.l.b16 %v2905
        %v2940 = vunpack.c.l.b16 %v2906
        %v2941 = vunpack.c.l.b16 %v2907
        %v2942 = vunpack.c.l.b16 %v2908
        %v2943 = vunpack.c.l.b16 %v2909
        %v2944 = vunpack.c.l.b16 %v2910
        %v2945 = vunpack.c.l.b16 %v2911
        %v2946 = vunpack.c.l.b16 %v2912
        %v2947 = vunpack.c.l.b16 %v2913
        %v2948 = vunpack.c.l.b16 %v2914
        %v2949 = vunpack.c.l.b16 %v2915
        %v2950 = vunpack.c.l.b16 %v2916
        %v2951 = vunpack.c.l.b16 %v2917
        %v2952 = vunpack.c.l.b16 %v2918
        %v2953 = vpack.c.b16 %v2938, %v2937
        %v2954 = vpack.c.b16 %v2940, %v2939
        %v2955 = vpack.c.b16 %v2942, %v2941
        %v2956 = vpack.c.b16 %v2944, %v2943
        %v2957 = vpack.c.b16 %v2946, %v2945
        %v2958 = vpack.c.b16 %v2948, %v2947
        %v2959 = vpack.c.b16 %v2950, %v2949
        %v2960 = vpack.c.b16 %v2952, %v2951
        %2969 = vmatprep.subr.bf16.mxu0 0
        %2970 = vmatpush1.bf16.msra.mxu0 %v2953
        %2971 = vmatprep.subr.bf16.mxu0 0
        %2972 = vmatpush1.bf16.msra.mxu0 %v2954
        %2973 = vmatprep.subr.bf16.mxu0 0
        %2974 = vmatpush1.bf16.msra.mxu0 %v2955
        %2975 = vmatprep.subr.bf16.mxu0 0
        %2976 = vmatpush1.bf16.msra.mxu0 %v2956
        %2977 = vmatprep.subr.bf16.mxu0 0
        %2978 = vmatpush1.bf16.msra.mxu0 %v2957
        %2979 = vmatprep.subr.bf16.mxu0 0
        %2980 = vmatpush1.bf16.msra.mxu0 %v2958
        %2981 = vmatprep.subr.bf16.mxu0 0
        %2982 = vmatpush1.bf16.msra.mxu0 %v2959
        %2983 = vmatprep.subr.bf16.mxu0 0
        %2984 = vmatpush1.bf16.msra.mxu0 %v2960
        %2985 = vmatprep.subr.bf16.mxu0 0
        %2986 = vmatpush1.bf16.msra.mxu0 0
        %2987 = vmatprep.subr.bf16.mxu0 0
        %2988 = vmatpush1.bf16.msra.mxu0 0
        %2989 = vmatprep.subr.bf16.mxu0 0
        %2990 = vmatpush1.bf16.msra.mxu0 0
        %2991 = vmatprep.subr.bf16.mxu0 0
        %2992 = vmatpush1.bf16.msra.mxu0 0
        %2993 = vmatprep.subr.bf16.mxu0 0
        %2994 = vmatpush1.bf16.msra.mxu0 0
        %2995 = vmatprep.subr.bf16.mxu0 0
        %2996 = vmatpush1.bf16.msra.mxu0 0
        %2997 = vmatprep.subr.bf16.mxu0 0
        %2998 = vmatpush1.bf16.msra.mxu0 0
        %2999 = vmatprep.subr.bf16.mxu0 0
        %3000 = vmatpush1.bf16.msra.mxu0 0
        %3001 = vmatprep.mubr.bf16.mxu0 0
        %3002 = vmatmul.mubr.bf16.gmra.mrb[0].mxu0 %v2919
        %v3003 = vpop.f32.mrb[0].mxu0
        %v3004 = vadd.f32 0.0, %v3003
        %v3005 = vpop.f32.mrb[0].mxu0
        %v3006 = vpop.f32.mrb[0].mxu0
        %v3007 = vpop.f32.mrb[0].mxu0
        %3008 = vdwg.mxu0
        %v3009 = vadd.f32 %v2901, %v3004
        %s3010 = scalar_lea.vmem [#allocation13], 256
        %v3011 = vld [vmem:[%s3010] sm:$0xf]
        %v3012 = vld [vmem:[%s3010 + $0x4] sm:$0xf]
        %v3013 = vld [vmem:[%s3010 + $0x8] sm:$0xf]
        %v3014 = vld [vmem:[%s3010 + $0xc] sm:$0xf]
        %v3015 = vld [vmem:[%s3010 + $0x10] sm:$0xf]
        %v3016 = vld [vmem:[%s3010 + $0x14] sm:$0xf]
        %v3017 = vld [vmem:[%s3010 + $0x18] sm:$0xf]
        %v3018 = vld [vmem:[%s3010 + $0x1c] sm:$0xf]
        %v3019 = vld [vmem:[%s3010 + $0x20] sm:$0xf]
        %v3020 = vld [vmem:[%s3010 + $0x24] sm:$0xf]
        %v3021 = vld [vmem:[%s3010 + $0x28] sm:$0xf]
        %v3022 = vld [vmem:[%s3010 + $0x2c] sm:$0xf]
        %v3023 = vld [vmem:[%s3010 + $0x30] sm:$0xf]
        %v3024 = vld [vmem:[%s3010 + $0x34] sm:$0xf]
        %v3025 = vld [vmem:[%s3010 + $0x38] sm:$0xf]
        %v3026 = vld [vmem:[%s3010 + $0x3c] sm:$0xf]
        %v3027 = vrot.slane %v2593, 2
        %v3045 = vunpack.c.l.b16 %v3011
        %v3046 = vunpack.c.l.b16 %v3012
        %v3047 = vunpack.c.l.b16 %v3013
        %v3048 = vunpack.c.l.b16 %v3014
        %v3049 = vunpack.c.l.b16 %v3015
        %v3050 = vunpack.c.l.b16 %v3016
        %v3051 = vunpack.c.l.b16 %v3017
        %v3052 = vunpack.c.l.b16 %v3018
        %v3053 = vunpack.c.l.b16 %v3019
        %v3054 = vunpack.c.l.b16 %v3020
        %v3055 = vunpack.c.l.b16 %v3021
        %v3056 = vunpack.c.l.b16 %v3022
        %v3057 = vunpack.c.l.b16 %v3023
        %v3058 = vunpack.c.l.b16 %v3024
        %v3059 = vunpack.c.l.b16 %v3025
        %v3060 = vunpack.c.l.b16 %v3026
        %v3061 = vpack.c.b16 %v3046, %v3045
        %v3062 = vpack.c.b16 %v3048, %v3047
        %v3063 = vpack.c.b16 %v3050, %v3049
        %v3064 = vpack.c.b16 %v3052, %v3051
        %v3065 = vpack.c.b16 %v3054, %v3053
        %v3066 = vpack.c.b16 %v3056, %v3055
        %v3067 = vpack.c.b16 %v3058, %v3057
        %v3068 = vpack.c.b16 %v3060, %v3059
        %3077 = vmatprep.subr.bf16.mxu0 0
        %3078 = vmatpush1.bf16.msra.mxu0 %v3061
        %3079 = vmatprep.subr.bf16.mxu0 0
        %3080 = vmatpush1.bf16.msra.mxu0 %v3062
        %3081 = vmatprep.subr.bf16.mxu0 0
        %3082 = vmatpush1.bf16.msra.mxu0 %v3063
        %3083 = vmatprep.subr.bf16.mxu0 0
        %3084 = vmatpush1.bf16.msra.mxu0 %v3064
        %3085 = vmatprep.subr.bf16.mxu0 0
        %3086 = vmatpush1.bf16.msra.mxu0 %v3065
        %3087 = vmatprep.subr.bf16.mxu0 0
        %3088 = vmatpush1.bf16.msra.mxu0 %v3066
        %3089 = vmatprep.subr.bf16.mxu0 0
        %3090 = vmatpush1.bf16.msra.mxu0 %v3067
        %3091 = vmatprep.subr.bf16.mxu0 0
        %3092 = vmatpush1.bf16.msra.mxu0 %v3068
        %3093 = vmatprep.subr.bf16.mxu0 0
        %3094 = vmatpush1.bf16.msra.mxu0 0
        %3095 = vmatprep.subr.bf16.mxu0 0
        %3096 = vmatpush1.bf16.msra.mxu0 0
        %3097 = vmatprep.subr.bf16.mxu0 0
        %3098 = vmatpush1.bf16.msra.mxu0 0
        %3099 = vmatprep.subr.bf16.mxu0 0
        %3100 = vmatpush1.bf16.msra.mxu0 0
        %3101 = vmatprep.subr.bf16.mxu0 0
        %3102 = vmatpush1.bf16.msra.mxu0 0
        %3103 = vmatprep.subr.bf16.mxu0 0
        %3104 = vmatpush1.bf16.msra.mxu0 0
        %3105 = vmatprep.subr.bf16.mxu0 0
        %3106 = vmatpush1.bf16.msra.mxu0 0
        %3107 = vmatprep.subr.bf16.mxu0 0
        %3108 = vmatpush1.bf16.msra.mxu0 0
        %3109 = vmatprep.mubr.bf16.mxu0 0
        %3110 = vmatmul.mubr.bf16.gmra.mrb[0].mxu0 %v3027
        %v3111 = vpop.f32.mrb[0].mxu0
        %v3112 = vadd.f32 0.0, %v3111
        %v3113 = vpop.f32.mrb[0].mxu0
        %v3114 = vpop.f32.mrb[0].mxu0
        %v3115 = vpop.f32.mrb[0].mxu0
        %3116 = vdwg.mxu0
        %v3117 = vadd.f32 %v3009, %v3112
        %v3118 = vld [vmem:[#allocation14] sm:$0xf]
        %v3119 = vld [vmem:[#allocation14 + $0x4] sm:$0xf]
        %v3120 = vld [vmem:[#allocation14 + $0x8] sm:$0xf]
        %v3121 = vld [vmem:[#allocation14 + $0xc] sm:$0xf]
        %v3122 = vld [vmem:[#allocation14 + $0x10] sm:$0xf]
        %v3123 = vld [vmem:[#allocation14 + $0x14] sm:$0xf]
        %v3124 = vld [vmem:[#allocation14 + $0x18] sm:$0xf]
        %v3125 = vld [vmem:[#allocation14 + $0x1c] sm:$0xf]
        %v3126 = vld [vmem:[#allocation14 + $0x20] sm:$0xf]
        %v3127 = vld [vmem:[#allocation14 + $0x24] sm:$0xf]
        %v3128 = vld [vmem:[#allocation14 + $0x28] sm:$0xf]
        %v3129 = vld [vmem:[#allocation14 + $0x2c] sm:$0xf]
        %v3130 = vld [vmem:[#allocation14 + $0x30] sm:$0xf]
        %v3131 = vld [vmem:[#allocation14 + $0x34] sm:$0xf]
        %v3132 = vld [vmem:[#allocation14 + $0x38] sm:$0xf]
        %v3133 = vld [vmem:[#allocation14 + $0x3c] sm:$0xf]
        %v3134 = vpack.c.bf16 %v3117, %v3117
        %v3135 = vld [vmem:[%s12] sm:$0x1]
        %v3152 = vunpack.c.l.b16 %v3118
        %v3153 = vunpack.c.l.b16 %v3119
        %v3154 = vunpack.c.l.b16 %v3120
        %v3155 = vunpack.c.l.b16 %v3121
        %v3156 = vunpack.c.l.b16 %v3122
        %v3157 = vunpack.c.l.b16 %v3123
        %v3158 = vunpack.c.l.b16 %v3124
        %v3159 = vunpack.c.l.b16 %v3125
        %v3160 = vunpack.c.l.b16 %v3126
        %v3161 = vunpack.c.l.b16 %v3127
        %v3162 = vunpack.c.l.b16 %v3128
        %v3163 = vunpack.c.l.b16 %v3129
        %v3164 = vunpack.c.l.b16 %v3130
        %v3165 = vunpack.c.l.b16 %v3131
        %v3166 = vunpack.c.l.b16 %v3132
        %v3167 = vunpack.c.l.b16 %v3133
        %v3168 = vpack.c.b16 %v3153, %v3152
        %v3169 = vpack.c.b16 %v3155, %v3154
        %v3170 = vpack.c.b16 %v3157, %v3156
        %v3171 = vpack.c.b16 %v3159, %v3158
        %v3172 = vpack.c.b16 %v3161, %v3160
        %v3173 = vpack.c.b16 %v3163, %v3162
        %v3174 = vpack.c.b16 %v3165, %v3164
        %v3175 = vpack.c.b16 %v3167, %v3166
        %3184 = vmatprep.subr.bf16.mxu0 0
        %3185 = vmatpush1.bf16.msra.mxu0 %v3168
        %3186 = vmatprep.subr.bf16.mxu0 0
        %3187 = vmatpush1.bf16.msra.mxu0 %v3169
        %3188 = vmatprep.subr.bf16.mxu0 0
        %3189 = vmatpush1.bf16.msra.mxu0 %v3170
        %3190 = vmatprep.subr.bf16.mxu0 0
        %3191 = vmatpush1.bf16.msra.mxu0 %v3171
        %3192 = vmatprep.subr.bf16.mxu0 0
        %3193 = vmatpush1.bf16.msra.mxu0 %v3172
        %3194 = vmatprep.subr.bf16.mxu0 0
        %3195 = vmatpush1.bf16.msra.mxu0 %v3173
        %3196 = vmatprep.subr.bf16.mxu0 0
        %3197 = vmatpush1.bf16.msra.mxu0 %v3174
        %3198 = vmatprep.subr.bf16.mxu0 0
        %3199 = vmatpush1.bf16.msra.mxu0 %v3175
        %3200 = vmatprep.subr.bf16.mxu0 0
        %3201 = vmatpush1.bf16.msra.mxu0 0
        %3202 = vmatprep.subr.bf16.mxu0 0
        %3203 = vmatpush1.bf16.msra.mxu0 0
        %3204 = vmatprep.subr.bf16.mxu0 0
        %3205 = vmatpush1.bf16.msra.mxu0 0
        %3206 = vmatprep.subr.bf16.mxu0 0
        %3207 = vmatpush1.bf16.msra.mxu0 0
        %3208 = vmatprep.subr.bf16.mxu0 0
        %3209 = vmatpush1.bf16.msra.mxu0 0
        %3210 = vmatprep.subr.bf16.mxu0 0
        %3211 = vmatpush1.bf16.msra.mxu0 0
        %3212 = vmatprep.subr.bf16.mxu0 0
        %3213 = vmatpush1.bf16.msra.mxu0 0
        %3214 = vmatprep.subr.bf16.mxu0 0
        %3215 = vmatpush1.bf16.msra.mxu0 0
        %3216 = vmatprep.mubr.bf16.mxu0 0
        %3217 = vmatmul.mubr.bf16.gmra.mrb[0].mxu0 %v3134
        %v3218 = vpop.f32.mrb[0].mxu0
        %v3219 = vadd.f32 %v3135, %v3218
        %v3220 = vpop.f32.mrb[0].mxu0
        %v3221 = vpop.f32.mrb[0].mxu0
        %v3222 = vpop.f32.mrb[0].mxu0
        %3223 = vdwg.mxu0
        %v3224 = vtanh.pop %v3219
        %v3225 = vmul.f32 %v3224, 1.7159
        %v3226 = vld [vmem:[#allocation16] sm:$0xf]
        %v3227 = vld [vmem:[#allocation16 + $0x4] sm:$0xf]
        %v3228 = vld [vmem:[#allocation16 + $0x8] sm:$0xf]
        %v3229 = vld [vmem:[#allocation16 + $0xc] sm:$0xf]
        %v3230 = vld [vmem:[#allocation16 + $0x10] sm:$0xf]
        %v3231 = vld [vmem:[#allocation16 + $0x14] sm:$0xf]
        %v3232 = vld [vmem:[#allocation16 + $0x18] sm:$0xf]
        %v3233 = vld [vmem:[#allocation16 + $0x1c] sm:$0xf]
        %v3234 = vld [vmem:[#allocation16 + $0x20] sm:$0xf]
        %v3235 = vld [vmem:[#allocation16 + $0x24] sm:$0xf]
        %v3236 = vld [vmem:[#allocation16 + $0x28] sm:$0xf]
        %v3237 = vld [vmem:[#allocation16 + $0x2c] sm:$0xf]
        %v3238 = vld [vmem:[#allocation16 + $0x30] sm:$0xf]
        %v3239 = vld [vmem:[#allocation16 + $0x34] sm:$0xf]
        %v3240 = vld [vmem:[#allocation16 + $0x38] sm:$0xf]
        %v3241 = vld [vmem:[#allocation16 + $0x3c] sm:$0xf]
        %v3242 = vpack.c.bf16 %v3225, %v3225
        %v3243 = vld [vmem:[%s14] sm:$0x1]
        %v3260 = vunpack.c.l.b16 %v3226
        %v3261 = vunpack.c.l.b16 %v3227
        %v3262 = vunpack.c.l.b16 %v3228
        %v3263 = vunpack.c.l.b16 %v3229
        %v3264 = vunpack.c.l.b16 %v3230
        %v3265 = vunpack.c.l.b16 %v3231
        %v3266 = vunpack.c.l.b16 %v3232
        %v3267 = vunpack.c.l.b16 %v3233
        %v3268 = vunpack.c.l.b16 %v3234
        %v3269 = vunpack.c.l.b16 %v3235
        %v3270 = vunpack.c.l.b16 %v3236
        %v3271 = vunpack.c.l.b16 %v3237
        %v3272 = vunpack.c.l.b16 %v3238
        %v3273 = vunpack.c.l.b16 %v3239
        %v3274 = vunpack.c.l.b16 %v3240
        %v3275 = vunpack.c.l.b16 %v3241
        %v3276 = vpack.c.b16 %v3261, %v3260
        %v3277 = vpack.c.b16 %v3263, %v3262
        %v3278 = vpack.c.b16 %v3265, %v3264
        %v3279 = vpack.c.b16 %v3267, %v3266
        %v3280 = vpack.c.b16 %v3269, %v3268
        %v3281 = vpack.c.b16 %v3271, %v3270
        %v3282 = vpack.c.b16 %v3273, %v3272
        %v3283 = vpack.c.b16 %v3275, %v3274
        %3292 = vmatprep.subr.bf16.mxu0 0
        %3293 = vmatpush1.bf16.msra.mxu0 %v3276
        %3294 = vmatprep.subr.bf16.mxu0 0
        %3295 = vmatpush1.bf16.msra.mxu0 %v3277
        %3296 = vmatprep.subr.bf16.mxu0 0
        %3297 = vmatpush1.bf16.msra.mxu0 %v3278
        %3298 = vmatprep.subr.bf16.mxu0 0
        %3299 = vmatpush1.bf16.msra.mxu0 %v3279
        %3300 = vmatprep.subr.bf16.mxu0 0
        %3301 = vmatpush1.bf16.msra.mxu0 %v3280
        %3302 = vmatprep.subr.bf16.mxu0 0
        %3303 = vmatpush1.bf16.msra.mxu0 %v3281
        %3304 = vmatprep.subr.bf16.mxu0 0
        %3305 = vmatpush1.bf16.msra.mxu0 %v3282
        %3306 = vmatprep.subr.bf16.mxu0 0
        %3307 = vmatpush1.bf16.msra.mxu0 %v3283
        %3308 = vmatprep.subr.bf16.mxu0 0
        %3309 = vmatpush1.bf16.msra.mxu0 0
        %3310 = vmatprep.subr.bf16.mxu0 0
        %3311 = vmatpush1.bf16.msra.mxu0 0
        %3312 = vmatprep.subr.bf16.mxu0 0
        %3313 = vmatpush1.bf16.msra.mxu0 0
        %3314 = vmatprep.subr.bf16.mxu0 0
        %3315 = vmatpush1.bf16.msra.mxu0 0
        %3316 = vmatprep.subr.bf16.mxu0 0
        %3317 = vmatpush1.bf16.msra.mxu0 0
        %3318 = vmatprep.subr.bf16.mxu0 0
        %3319 = vmatpush1.bf16.msra.mxu0 0
        %3320 = vmatprep.subr.bf16.mxu0 0
        %3321 = vmatpush1.bf16.msra.mxu0 0
        %3322 = vmatprep.subr.bf16.mxu0 0
        %3323 = vmatpush1.bf16.msra.mxu0 0
        %3324 = vmatprep.mubr.bf16.mxu0 0
        %3325 = vmatmul.mubr.bf16.gmra.mrb[0].mxu0 %v3242
        %v3326 = vpop.f32.mrb[0].mxu0
        %v3327 = vadd.f32 %v3243, %v3326
        %v3328 = vpop.f32.mrb[0].mxu0
        %v3329 = vpop.f32.mrb[0].mxu0
        %v3330 = vpop.f32.mrb[0].mxu0
        %3331 = vdwg.mxu0
        %vm3332 = vcmask 1040384
        %v3333 = vsel %vm3332, %v3327, -inf
        %3334 = vmax.xlane.f32.xlu0 %v3333
        %v3335 = vpop.xlane.xlu0 %3334
        %v3336 = vsub.f32 %v3327, %v3335
        %v3337 = vmul.f32 %v3336, 1.442695
        %v3338 = vpow.pop %v3337
        %v3339 = vsel %vm3332, %v3338, 0.0
        %3340 = vadd.xlane.f32.xlu0 %v3339
        %v3341 = vpop.xlane.xlu0 %3340
        %v3342 = vrcp.pop %v3341
        %v3343 = vmul.f32 %v3338, %v3342
        %3344 = vst [vmem:[%s627] sm:$0x1] %v3343
        %s3345 = sand.u32 %s364, 1
        %s3346 = scalar_lea.sflag [#allocation4], %s3345
        %s3347 = sand.u32 %s364, 1
        %s3348 = scalar_lea.vmem [#allocation17], %s3347
        // Predicated region
        $region117: #{lenet5_forward.1} parent=79 // pred_check
          %p3349 = pneg %p374
        $region118: #{lenet5_forward.1} parent=79 // pred_check_branch
          %3351 = sbr.rel (%p3349) target = $region120
        $region119: #{lenet5_forward.1} parent=79 // pred_region
          %s3353 = ssub.s32 16, 16
          %3354 = vsyncadd %s3346, %s3353
          %s3355 = smul.addr %s36, 16
          %s3356 = scalar_lea.hbm %s15, %s3355
          %s3358 = sshll.u32 %s3348, 4
          %s3359 = int_to_ptr.vmem [resolvable:$true] %s3358
          %3361 = dma.vmem_to_hbm [thread:$0]  %s3359, 16, %s3356, %s3346
        $region120: #{lenet5_forward.1} parent=79 // pred_fallthru
          _
      $region80: #{lenet5_forward.1} parent=5 // pred_fallthru
        _
      %p3362 = scmp.le.s32.totalorder 2, %s31
      // Predicated region
      $region121: #{lenet5_forward.1} parent=5 // pred_check
        %p3363 = pneg %p3362
      $region122: #{lenet5_forward.1} parent=5 // pred_check_branch
        %3365 = sbr.rel (%p3363) target = $region124
      $region123: #{lenet5_forward.1} parent=5 // pred_region
        %s3366 = ssub.s32 %s31, 2
        // Predicated region
        $region125: #{lenet5_forward.1} parent=123 // pred_check
          %p3367 = pneg %p380
        $region126: #{lenet5_forward.1} parent=123 // pred_check_branch
          %3369 = sbr.rel (%p3367) target = $region128
        $region127: #{lenet5_forward.1} parent=123 // pred_region
          %s3370 = sand.u32 %s365, 1
          %s3371 = scalar_lea.sflag [#allocation4], %s3370
          %s3372 = sand.u32 %s365, 1
          %s3373 = scalar_lea.vmem [#allocation17], %s3372
          %3374 = dma.done %s3371, 16
        $region128: #{lenet5_forward.1} parent=123 // pred_fallthru
          _
      $region124: #{lenet5_forward.1} parent=5 // pred_fallthru
        _
    $region6: #{lenet5_forward.1} parent=1 // loop_footer
      %s35 = sadd.s32 1, %s31
    $region7: #{lenet5_forward.1} parent=1 // loop_footer_branch
      %30 = sbr.rel target = $region3
    $region8: #{lenet5_forward.1} parent=1 // loop_exit
      _
    %3375 = vsyncpa [#allocation3], 1
    %s3376 = scalar_lea.sflag [#allocation3], 1
    %3377 = vsyncpa %s3376, 1
    %3378 = vsyncpa [#allocation6], 1
    %3379 = vsyncpa [#allocation9], 1
    %3380 = vsyncpa [#allocation12], 1
    %3381 = vsyncpa [#allocation15], 1
    %3382 = vsyncpa [#allocation4], 1
    %s3383 = scalar_lea.sflag [#allocation4], 1
    %3384 = vsyncpa %s3383, 1

</llo_original>
